<compile_context>
chip_gen: v7x
topology: tpu7x:2x2x1
jax: 0.10.0
libtpu: 0.0.40
codegen_flags: <defaults>
</compile_context>

<pallas_src>
import functools

import numpy as np
import jax
import jax.numpy as jnp
from jax.experimental import pallas as pl
from jax.experimental.pallas import tpu as pltpu

STAGE_CHANNELS = [8, 16, 16, 16, 16]
STAGE_POOL = [False, True, True, False, False]      # pool BEFORE stages 1 and 2
SOD_STAGE_WEIGHTS = (1.0, 1.0, 0.5, 0.25, 0.125)    # loss1 + loss2 + l3/2 + l4/4 + l5/8


def _vmem_specs(n):
    return [pl.BlockSpec(memory_space=pltpu.MemorySpace.VMEM) for _ in range(n)]


def stage_spatial(H, W):
    sizes, h, w = [], H, W
    for pool in STAGE_POOL:
        if pool:
            h, w = h // 2, w // 2
        sizes.append((h, w))
    return sizes


# ---------------- host-side small constant operators (bf16, per-image) ----------------

@functools.lru_cache(maxsize=None)
def _pool2_matrix(H, W):
    """(H*W, H/2*W/2) per-image 2x2 avg-pool as a matmul (no batch folding)."""
    Ho, Wo = H // 2, W // 2
    m = np.zeros((H * W, Ho * Wo), np.float32)
    idx = np.arange(H * W)
    h = idx // W
    w = idx % W
    m[idx, (h // 2) * Wo + (w // 2)] = 0.25
    return jnp.asarray(m, jnp.bfloat16)


@functools.lru_cache(maxsize=None)
def _bilinear_matrix_np(n_out, n_in):
    """1-D bilinear interp matrix A (n_out, n_in), align_corners=True."""
    if n_in == 1:
        return np.ones((n_out, 1), np.float32)
    if n_out == 1:
        a = np.zeros((1, n_in), np.float32)
        a[0, 0] = 1.0
        return a
    pos = np.arange(n_out, dtype=np.float64) * (n_in - 1) / (n_out - 1)
    i0 = np.clip(np.floor(pos).astype(np.int64), 0, n_in - 2)
    frac = (pos - i0).astype(np.float32)
    a = np.zeros((n_out, n_in), np.float32)
    rows = np.arange(n_out)
    a[rows, i0] += 1.0 - frac
    a[rows, i0 + 1] += frac
    return a


@functools.lru_cache(maxsize=None)
def _resize_matrix(h, w, H, W):
    """(h*w, H*W) per-image bilinear align_corners=True 2-D resize as one matmul."""
    k = np.kron(_bilinear_matrix_np(H, h), _bilinear_matrix_np(W, w))  # (H*W, h*w)
    return jnp.asarray(np.ascontiguousarray(k.T), jnp.bfloat16)        # (h*w, H*W)


# --------------------------------- fused kernel ----------------------------------------

def _fused_fitnet_kernel(*refs, n_stages, pooled, n_pool, batch):
    """Student backbone + teacher backbone + distillation loss + SOD loss, all in VMEM.

    Inputs (in order): x_s, x_t, student kron-weights[5], teacher kron-weights[5],
    student pool mats[2], teacher pool mats[2], resize mats[5], heads kron, labels
    tiled (5B, hw), per-row stage weights (5B, 1).
    Outputs: loss_sod (1,) SMEM, loss_distillation (1,) SMEM.
    """
    pos = 0

    def take(k):
        nonlocal pos
        out = refs[pos:pos + k]
        pos += k
        return list(out)

    xs_ref, xt_ref = take(2)
    w_s = take(n_stages)
    w_t = take(n_stages)
    p_s = take(n_pool)
    p_t = take(n_pool)
    k_r = take(n_stages)
    heads_ref, y_ref, wrow_ref = take(3)
    o_sod_ref, o_dist_ref = take(2)

    def backbone(x_ref, w_refs, p_refs):
        # features: (C*B, h*w) bf16, row = c*B + b, lanes = row-major pixels.
        f = x_ref[...]
        feats, pi = [], 0
        for i in range(n_stages):
            if pooled[i]:
                # per-image 2x2 avg-pool as a lane-side matmul (bf16 in, f32 acc)
                f = jnp.dot(f, p_refs[pi][...],
                            preferred_element_type=jnp.float32).astype(jnp.bfloat16)
                pi += 1
            # 1x1 conv = kron(W, I_B) left-matmul; ReLU in f32, store bf16
            f = jnp.maximum(
                jnp.dot(w_refs[i][...], f, preferred_element_type=jnp.float32),
                0.0).astype(jnp.bfloat16)
            feats.append(f)
        return feats

    s_feats = backbone(xs_ref, w_s, p_s)
    t_feats = backbone(xt_ref, w_t, p_t)   # teacher is eval()/no_grad in the reference

    # -------- FitNet distillation loss: sum_i MSE(bilinear(s_i -> t_i), t_i) --------
    dist = jnp.zeros((), jnp.float32)
    for sf, tf, kref in zip(s_feats, t_feats, k_r):
        r = jnp.dot(sf, kref[...], preferred_element_type=jnp.float32)   # resized student
        d = r - tf.astype(jnp.float32)
        dist = dist + jnp.sum(d * d) * (1.0 / d.size)                    # nn.MSELoss() mean
    o_dist_ref[0] = dist

    # -------- SOD loss: 5 smap heads + structure losses, weighted 1,1,1/2,1/4,1/8 ----
    # logits: kron(heads, I_B) @ feat0 -> (5*B, h*w); row = head*B + b
    x = jnp.dot(heads_ref[...], s_feats[0], preferred_element_type=jnp.float32)
    y = y_ref[...]                                                       # (5*B, h*w) f32
    hw = x.shape[1]

    ax = jnp.abs(x)
    e = jnp.exp(-ax)
    # stable BCE-with-logits: max(x,0) - x*y + log(1 + exp(-|x|))
    bce = jnp.maximum(x, 0.0) - x * y + jnp.log(1.0 + e)
    # sigmoid from the same exp; exact division (no approx reciprocal)
    sig = jnp.where(x >= 0.0, 1.0, e) / (1.0 + e)

    bce_row = jnp.sum(bce, axis=1, keepdims=True)                        # (5B, 1)
    inter = jnp.sum(sig * y, axis=1, keepdims=True)                      # (5B, 1) per-image
    union = jnp.sum(sig + y, axis=1, keepdims=True)                      # (5B, 1)
    wiou = 1.0 - (inter + 1.0) / (union - inter + 1.0)

    # structure_loss_k = mean_{b,p} bce + mean_b wiou ; weighted sum over stages
    per_row = bce_row * (1.0 / (batch * hw)) + wiou * (1.0 / batch)
    o_sod_ref[0] = jnp.sum(per_row * wrow_ref[...])


# ----------------------------------- wrappers -------------------------------------------

def init_params(key):
    keys = jax.random.split(key, 11)

    def stages(ks):
        ws, cin = [], 3
        for k, cout in zip(ks, STAGE_CHANNELS):
            ws.append(0.1 * jax.random.normal(k, (cout, cin), jnp.float32))
            cin = cout
        return ws

    student = stages(keys[0:5])
    teacher = stages(keys[5:10])
    # 5 smap heads (each Cout=1) concatenated into one (5, C0) matrix
    heads = 0.1 * jax.random.normal(keys[10], (5, STAGE_CHANNELS[0]), jnp.float32)
    return dict(student=student, teacher=teacher, smap_heads=heads)


def pspnet_fitnet_forward(params, x_lr, x_hr, labels_lr):
    """Training-mode forward of PSPNet_FitNet: returns (loss_sod, loss_distillation)."""
    B = x_lr.shape[0]
    Hs, Ws = x_lr.shape[2], x_lr.shape[3]
    Ht, Wt = x_hr.shape[2], x_hr.shape[3]
    n_stages = len(STAGE_CHANNELS)

    s_sizes = stage_spatial(Hs, Ws)
    t_sizes = stage_spatial(Ht, Wt)

    eye_b = jnp.eye(B, dtype=jnp.float32)

    def kron_weights(ws):
        return [jnp.kron(w, eye_b).astype(jnp.bfloat16) for w in ws]

    w_s = kron_weights(params['student'])
    # teacher is eval()/torch.no_grad() in the reference
    w_t = kron_weights(jax.lax.stop_gradient(params['teacher']))

    # inputs: (3*B, H*W), row = c*B + b, lanes = row-major pixels
    xs = jnp.transpose(x_lr, (1, 0, 2, 3)).reshape(3 * B, Hs * Ws).astype(jnp.bfloat16)
    xt = jnp.transpose(x_hr, (1, 0, 2, 3)).reshape(3 * B, Ht * Wt).astype(jnp.bfloat16)

    def pools_for(H, W):
        mats, h, w = [], H, W
        for p in STAGE_POOL:
            if p:
                mats.append(_pool2_matrix(h, w))
                h, w = h // 2, w // 2
        return mats

    p_s = pools_for(Hs, Ws)
    p_t = pools_for(Ht, Wt)

    k_r = [_resize_matrix(sh, sw, th, tw)
           for (sh, sw), (th, tw) in zip(s_sizes, t_sizes)]

    heads_k = jnp.kron(params['smap_heads'], eye_b).astype(jnp.bfloat16)   # (5B, C0*B)
    y2d = labels_lr.reshape(B, Hs * Ws).astype(jnp.float32)
    y_tiled = jnp.tile(y2d, (len(SOD_STAGE_WEIGHTS), 1))                   # (5B, hw)
    w_row = jnp.repeat(
        jnp.asarray(SOD_STAGE_WEIGHTS, jnp.float32), B).reshape(-1, 1)     # (5B, 1)

    inputs = [xs, xt, *w_s, *w_t, *p_s, *p_t, *k_r, heads_k, y_tiled, w_row]

    kernel = functools.partial(
        _fused_fitnet_kernel,
        n_stages=n_stages,
        pooled=tuple(STAGE_POOL),
        n_pool=sum(STAGE_POOL),
        batch=B)

    loss_sod, loss_dist = pl.pallas_call(
        kernel,
        out_shape=(jax.ShapeDtypeStruct((1,), jnp.float32),
                   jax.ShapeDtypeStruct((1,), jnp.float32)),
        in_specs=_vmem_specs(len(inputs)),
        out_specs=(pl.BlockSpec(memory_space=pltpu.MemorySpace.SMEM),
                   pl.BlockSpec(memory_space=pltpu.MemorySpace.SMEM)),
    )(*inputs)
    return loss_sod[0], loss_dist[0]


if __name__ == "__main__":
    key = jax.random.PRNGKey(0)
    kp, kx, kh, kl = jax.random.split(key, 4)
    params = init_params(kp)

    x_lr = jax.random.normal(kx, (2, 3, 16, 16), jnp.float32)       # low-res input (student)
    x_hr = jax.random.normal(kh, (2, 3, 32, 32), jnp.float32)       # high-res input (teacher)
    labels_lr = (jax.random.uniform(kl, (2, 1, 16, 16)) > 0.5).astype(jnp.float32)

    loss_sod, loss_distillation = pspnet_fitnet_forward(params, x_lr, x_hr, labels_lr)
    jax.block_until_ready((loss_sod, loss_distillation))
    print("KERNEL_OK")
</pallas_src>

<mosaic_0001>
module attributes {stable_mosaic.version = 11 : i64} {
  func.func @_fused_fitnet_kernel(%arg0: memref<6x256xbf16, #tpu.memory_space<vmem>>, %arg1: memref<6x1024xbf16, #tpu.memory_space<vmem>>, %arg2: memref<16x6xbf16, #tpu.memory_space<vmem>>, %arg3: memref<32x16xbf16, #tpu.memory_space<vmem>>, %arg4: memref<32x32xbf16, #tpu.memory_space<vmem>>, %arg5: memref<32x32xbf16, #tpu.memory_space<vmem>>, %arg6: memref<32x32xbf16, #tpu.memory_space<vmem>>, %arg7: memref<16x6xbf16, #tpu.memory_space<vmem>>, %arg8: memref<32x16xbf16, #tpu.memory_space<vmem>>, %arg9: memref<32x32xbf16, #tpu.memory_space<vmem>>, %arg10: memref<32x32xbf16, #tpu.memory_space<vmem>>, %arg11: memref<32x32xbf16, #tpu.memory_space<vmem>>, %arg12: memref<256x64xbf16, #tpu.memory_space<vmem>>, %arg13: memref<64x16xbf16, #tpu.memory_space<vmem>>, %arg14: memref<1024x256xbf16, #tpu.memory_space<vmem>>, %arg15: memref<256x64xbf16, #tpu.memory_space<vmem>>, %arg16: memref<256x1024xbf16, #tpu.memory_space<vmem>>, %arg17: memref<64x256xbf16, #tpu.memory_space<vmem>>, %arg18: memref<16x64xbf16, #tpu.memory_space<vmem>>, %arg19: memref<16x64xbf16, #tpu.memory_space<vmem>>, %arg20: memref<16x64xbf16, #tpu.memory_space<vmem>>, %arg21: memref<10x16xbf16, #tpu.memory_space<vmem>>, %arg22: memref<10x256xf32, #tpu.memory_space<vmem>>, %arg23: memref<10x1xf32, #tpu.memory_space<vmem>>, %arg24: memref<1xf32, #tpu.memory_space<smem>>, %arg25: memref<1xf32, #tpu.memory_space<smem>>) attributes {dimension_semantics = [], scalar_prefetch = 0 : i64, scratch_operands = 0 : i64, tpu.core_type = #tpu.core_type<tc>} {
    %c0 = arith.constant 0 : index
    %c0_0 = arith.constant 0 : index
    %0 = vector.load %arg0[%c0, %c0_0] : memref<6x256xbf16, #tpu.memory_space<vmem>>, vector<6x256xbf16>
    %c0_1 = arith.constant 0 : index
    %c0_2 = arith.constant 0 : index
    %1 = vector.load %arg2[%c0_1, %c0_2] : memref<16x6xbf16, #tpu.memory_space<vmem>>, vector<16x6xbf16>
    %cst = arith.constant dense<0.000000e+00> : vector<16x256xf32>
    %2 = tpu.matmul %1, %0, %cst {dimension_numbers = #tpu.dot_dimension_numbers<[1], [0], [0], [1], [0, 0, 1, 1], [], []>} : vector<16x6xbf16>, vector<6x256xbf16>, vector<16x256xf32> -> vector<16x256xf32>
    %cst_3 = arith.constant 0.000000e+00 : f32
    %3 = vector.broadcast %cst_3 : f32 to vector<16x256xf32>
    %4 = arith.maximumf %2, %3 : vector<16x256xf32>
    %5 = arith.truncf %4 : vector<16x256xf32> to vector<16x256xbf16>
    %c0_4 = arith.constant 0 : index
    %c0_5 = arith.constant 0 : index
    %6 = vector.load %arg12[%c0_4, %c0_5] : memref<256x64xbf16, #tpu.memory_space<vmem>>, vector<256x64xbf16>
    %cst_6 = arith.constant dense<0.000000e+00> : vector<16x64xf32>
    %7 = tpu.matmul %5, %6, %cst_6 {dimension_numbers = #tpu.dot_dimension_numbers<[1], [0], [0], [1], [0, 0, 1, 1], [], []>} : vector<16x256xbf16>, vector<256x64xbf16>, vector<16x64xf32> -> vector<16x64xf32>
    %8 = arith.truncf %7 : vector<16x64xf32> to vector<16x64xbf16>
    %c0_7 = arith.constant 0 : index
    %c0_8 = arith.constant 0 : index
    %9 = vector.load %arg3[%c0_7, %c0_8] : memref<32x16xbf16, #tpu.memory_space<vmem>>, vector<32x16xbf16>
    %cst_9 = arith.constant dense<0.000000e+00> : vector<32x64xf32>
    %10 = tpu.matmul %9, %8, %cst_9 {dimension_numbers = #tpu.dot_dimension_numbers<[1], [0], [0], [1], [0, 0, 1, 1], [], []>} : vector<32x16xbf16>, vector<16x64xbf16>, vector<32x64xf32> -> vector<32x64xf32>
    %cst_10 = arith.constant 0.000000e+00 : f32
    %11 = vector.broadcast %cst_10 : f32 to vector<32x64xf32>
    %12 = arith.maximumf %10, %11 : vector<32x64xf32>
    %13 = arith.truncf %12 : vector<32x64xf32> to vector<32x64xbf16>
    %c0_11 = arith.constant 0 : index
    %c0_12 = arith.constant 0 : index
    %14 = vector.load %arg13[%c0_11, %c0_12] : memref<64x16xbf16, #tpu.memory_space<vmem>>, vector<64x16xbf16>
    %cst_13 = arith.constant dense<0.000000e+00> : vector<32x16xf32>
    %15 = tpu.matmul %13, %14, %cst_13 {dimension_numbers = #tpu.dot_dimension_numbers<[1], [0], [0], [1], [0, 0, 1, 1], [], []>} : vector<32x64xbf16>, vector<64x16xbf16>, vector<32x16xf32> -> vector<32x16xf32>
    %16 = arith.truncf %15 : vector<32x16xf32> to vector<32x16xbf16>
    %c0_14 = arith.constant 0 : index
    %c0_15 = arith.constant 0 : index
    %17 = vector.load %arg4[%c0_14, %c0_15] : memref<32x32xbf16, #tpu.memory_space<vmem>>, vector<32x32xbf16>
    %cst_16 = arith.constant dense<0.000000e+00> : vector<32x16xf32>
    %18 = tpu.matmul %17, %16, %cst_16 {dimension_numbers = #tpu.dot_dimension_numbers<[1], [0], [0], [1], [0, 0, 1, 1], [], []>} : vector<32x32xbf16>, vector<32x16xbf16>, vector<32x16xf32> -> vector<32x16xf32>
    %cst_17 = arith.constant 0.000000e+00 : f32
    %19 = vector.broadcast %cst_17 : f32 to vector<32x16xf32>
    %20 = arith.maximumf %18, %19 : vector<32x16xf32>
    %21 = arith.truncf %20 : vector<32x16xf32> to vector<32x16xbf16>
    %c0_18 = arith.constant 0 : index
    %c0_19 = arith.constant 0 : index
    %22 = vector.load %arg5[%c0_18, %c0_19] : memref<32x32xbf16, #tpu.memory_space<vmem>>, vector<32x32xbf16>
    %cst_20 = arith.constant dense<0.000000e+00> : vector<32x16xf32>
    %23 = tpu.matmul %22, %21, %cst_20 {dimension_numbers = #tpu.dot_dimension_numbers<[1], [0], [0], [1], [0, 0, 1, 1], [], []>} : vector<32x32xbf16>, vector<32x16xbf16>, vector<32x16xf32> -> vector<32x16xf32>
    %cst_21 = arith.constant 0.000000e+00 : f32
    %24 = vector.broadcast %cst_21 : f32 to vector<32x16xf32>
    %25 = arith.maximumf %23, %24 : vector<32x16xf32>
    %26 = arith.truncf %25 : vector<32x16xf32> to vector<32x16xbf16>
    %c0_22 = arith.constant 0 : index
    %c0_23 = arith.constant 0 : index
    %27 = vector.load %arg6[%c0_22, %c0_23] : memref<32x32xbf16, #tpu.memory_space<vmem>>, vector<32x32xbf16>
    %cst_24 = arith.constant dense<0.000000e+00> : vector<32x16xf32>
    %28 = tpu.matmul %27, %26, %cst_24 {dimension_numbers = #tpu.dot_dimension_numbers<[1], [0], [0], [1], [0, 0, 1, 1], [], []>} : vector<32x32xbf16>, vector<32x16xbf16>, vector<32x16xf32> -> vector<32x16xf32>
    %cst_25 = arith.constant 0.000000e+00 : f32
    %29 = vector.broadcast %cst_25 : f32 to vector<32x16xf32>
    %30 = arith.maximumf %28, %29 : vector<32x16xf32>
    %31 = arith.truncf %30 : vector<32x16xf32> to vector<32x16xbf16>
    %c0_26 = arith.constant 0 : index
    %c0_27 = arith.constant 0 : index
    %32 = vector.load %arg1[%c0_26, %c0_27] : memref<6x1024xbf16, #tpu.memory_space<vmem>>, vector<6x1024xbf16>
    %c0_28 = arith.constant 0 : index
    %c0_29 = arith.constant 0 : index
    %33 = vector.load %arg7[%c0_28, %c0_29] : memref<16x6xbf16, #tpu.memory_space<vmem>>, vector<16x6xbf16>
    %cst_30 = arith.constant dense<0.000000e+00> : vector<16x1024xf32>
    %34 = tpu.matmul %33, %32, %cst_30 {dimension_numbers = #tpu.dot_dimension_numbers<[1], [0], [0], [1], [0, 0, 1, 1], [], []>} : vector<16x6xbf16>, vector<6x1024xbf16>, vector<16x1024xf32> -> vector<16x1024xf32>
    %cst_31 = arith.constant 0.000000e+00 : f32
    %35 = vector.broadcast %cst_31 : f32 to vector<16x1024xf32>
    %36 = arith.maximumf %34, %35 : vector<16x1024xf32>
    %37 = arith.truncf %36 : vector<16x1024xf32> to vector<16x1024xbf16>
    %c0_32 = arith.constant 0 : index
    %c0_33 = arith.constant 0 : index
    %38 = vector.load %arg14[%c0_32, %c0_33] : memref<1024x256xbf16, #tpu.memory_space<vmem>>, vector<1024x256xbf16>
    %cst_34 = arith.constant dense<0.000000e+00> : vector<16x256xf32>
    %39 = tpu.matmul %37, %38, %cst_34 {dimension_numbers = #tpu.dot_dimension_numbers<[1], [0], [0], [1], [0, 0, 1, 1], [], []>} : vector<16x1024xbf16>, vector<1024x256xbf16>, vector<16x256xf32> -> vector<16x256xf32>
    %40 = arith.truncf %39 : vector<16x256xf32> to vector<16x256xbf16>
    %c0_35 = arith.constant 0 : index
    %c0_36 = arith.constant 0 : index
    %41 = vector.load %arg8[%c0_35, %c0_36] : memref<32x16xbf16, #tpu.memory_space<vmem>>, vector<32x16xbf16>
    %cst_37 = arith.constant dense<0.000000e+00> : vector<32x256xf32>
    %42 = tpu.matmul %41, %40, %cst_37 {dimension_numbers = #tpu.dot_dimension_numbers<[1], [0], [0], [1], [0, 0, 1, 1], [], []>} : vector<32x16xbf16>, vector<16x256xbf16>, vector<32x256xf32> -> vector<32x256xf32>
    %cst_38 = arith.constant 0.000000e+00 : f32
    %43 = vector.broadcast %cst_38 : f32 to vector<32x256xf32>
    %44 = arith.maximumf %42, %43 : vector<32x256xf32>
    %45 = arith.truncf %44 : vector<32x256xf32> to vector<32x256xbf16>
    %c0_39 = arith.constant 0 : index
    %c0_40 = arith.constant 0 : index
    %46 = vector.load %arg15[%c0_39, %c0_40] : memref<256x64xbf16, #tpu.memory_space<vmem>>, vector<256x64xbf16>
    %cst_41 = arith.constant dense<0.000000e+00> : vector<32x64xf32>
    %47 = tpu.matmul %45, %46, %cst_41 {dimension_numbers = #tpu.dot_dimension_numbers<[1], [0], [0], [1], [0, 0, 1, 1], [], []>} : vector<32x256xbf16>, vector<256x64xbf16>, vector<32x64xf32> -> vector<32x64xf32>
    %48 = arith.truncf %47 : vector<32x64xf32> to vector<32x64xbf16>
    %c0_42 = arith.constant 0 : index
    %c0_43 = arith.constant 0 : index
    %49 = vector.load %arg9[%c0_42, %c0_43] : memref<32x32xbf16, #tpu.memory_space<vmem>>, vector<32x32xbf16>
    %cst_44 = arith.constant dense<0.000000e+00> : vector<32x64xf32>
    %50 = tpu.matmul %49, %48, %cst_44 {dimension_numbers = #tpu.dot_dimension_numbers<[1], [0], [0], [1], [0, 0, 1, 1], [], []>} : vector<32x32xbf16>, vector<32x64xbf16>, vector<32x64xf32> -> vector<32x64xf32>
    %cst_45 = arith.constant 0.000000e+00 : f32
    %51 = vector.broadcast %cst_45 : f32 to vector<32x64xf32>
    %52 = arith.maximumf %50, %51 : vector<32x64xf32>
    %53 = arith.truncf %52 : vector<32x64xf32> to vector<32x64xbf16>
    %c0_46 = arith.constant 0 : index
    %c0_47 = arith.constant 0 : index
    %54 = vector.load %arg10[%c0_46, %c0_47] : memref<32x32xbf16, #tpu.memory_space<vmem>>, vector<32x32xbf16>
    %cst_48 = arith.constant dense<0.000000e+00> : vector<32x64xf32>
    %55 = tpu.matmul %54, %53, %cst_48 {dimension_numbers = #tpu.dot_dimension_numbers<[1], [0], [0], [1], [0, 0, 1, 1], [], []>} : vector<32x32xbf16>, vector<32x64xbf16>, vector<32x64xf32> -> vector<32x64xf32>
    %cst_49 = arith.constant 0.000000e+00 : f32
    %56 = vector.broadcast %cst_49 : f32 to vector<32x64xf32>
    %57 = arith.maximumf %55, %56 : vector<32x64xf32>
    %58 = arith.truncf %57 : vector<32x64xf32> to vector<32x64xbf16>
    %c0_50 = arith.constant 0 : index
    %c0_51 = arith.constant 0 : index
    %59 = vector.load %arg11[%c0_50, %c0_51] : memref<32x32xbf16, #tpu.memory_space<vmem>>, vector<32x32xbf16>
    %cst_52 = arith.constant dense<0.000000e+00> : vector<32x64xf32>
    %60 = tpu.matmul %59, %58, %cst_52 {dimension_numbers = #tpu.dot_dimension_numbers<[1], [0], [0], [1], [0, 0, 1, 1], [], []>} : vector<32x32xbf16>, vector<32x64xbf16>, vector<32x64xf32> -> vector<32x64xf32>
    %cst_53 = arith.constant 0.000000e+00 : f32
    %61 = vector.broadcast %cst_53 : f32 to vector<32x64xf32>
    %62 = arith.maximumf %60, %61 : vector<32x64xf32>
    %63 = arith.truncf %62 : vector<32x64xf32> to vector<32x64xbf16>
    %c0_54 = arith.constant 0 : index
    %c0_55 = arith.constant 0 : index
    %64 = vector.load %arg16[%c0_54, %c0_55] : memref<256x1024xbf16, #tpu.memory_space<vmem>>, vector<256x1024xbf16>
    %cst_56 = arith.constant dense<0.000000e+00> : vector<16x1024xf32>
    %65 = tpu.matmul %5, %64, %cst_56 {dimension_numbers = #tpu.dot_dimension_numbers<[1], [0], [0], [1], [0, 0, 1, 1], [], []>} : vector<16x256xbf16>, vector<256x1024xbf16>, vector<16x1024xf32> -> vector<16x1024xf32>
    %66 = arith.extf %37 : vector<16x1024xbf16> to vector<16x1024xf32>
    %67 = arith.subf %65, %66 : vector<16x1024xf32>
    %68 = arith.mulf %67, %67 : vector<16x1024xf32>
    %69 = vector.shape_cast %68 : vector<16x1024xf32> to vector<1x16x1024xf32>
    %cst_57 = arith.constant dense<0.000000e+00> : vector<1xf32>
    %70 = vector.multi_reduction <add>, %69, %cst_57 [1, 2] : vector<1x16x1024xf32> to vector<1xf32>
    %71 = vector.shape_cast %70 : vector<1xf32> to vector<1x1x1xf32>
    %72 = vector.extract %71[0, 0, 0] : f32 from vector<1x1x1xf32>
    %cst_58 = arith.constant 6.10351563E-5 : f32
    %73 = arith.mulf %72, %cst_58 : f32
    %cst_59 = arith.constant 0.000000e+00 : f32
    %74 = arith.addf %cst_59, %73 : f32
    %c0_60 = arith.constant 0 : index
    %c0_61 = arith.constant 0 : index
    %75 = vector.load %arg17[%c0_60, %c0_61] : memref<64x256xbf16, #tpu.memory_space<vmem>>, vector<64x256xbf16>
    %cst_62 = arith.constant dense<0.000000e+00> : vector<32x256xf32>
    %76 = tpu.matmul %13, %75, %cst_62 {dimension_numbers = #tpu.dot_dimension_numbers<[1], [0], [0], [1], [0, 0, 1, 1], [], []>} : vector<32x64xbf16>, vector<64x256xbf16>, vector<32x256xf32> -> vector<32x256xf32>
    %77 = arith.extf %45 : vector<32x256xbf16> to vector<32x256xf32>
    %78 = arith.subf %76, %77 : vector<32x256xf32>
    %79 = arith.mulf %78, %78 : vector<32x256xf32>
    %80 = vector.shape_cast %79 : vector<32x256xf32> to vector<1x32x256xf32>
    %cst_63 = arith.constant dense<0.000000e+00> : vector<1xf32>
    %81 = vector.multi_reduction <add>, %80, %cst_63 [1, 2] : vector<1x32x256xf32> to vector<1xf32>
    %82 = vector.shape_cast %81 : vector<1xf32> to vector<1x1x1xf32>
    %83 = vector.extract %82[0, 0, 0] : f32 from vector<1x1x1xf32>
    %cst_64 = arith.constant 1.22070313E-4 : f32
    %84 = arith.mulf %83, %cst_64 : f32
    %85 = arith.addf %74, %84 : f32
    %c0_65 = arith.constant 0 : index
    %c0_66 = arith.constant 0 : index
    %86 = vector.load %arg18[%c0_65, %c0_66] : memref<16x64xbf16, #tpu.memory_space<vmem>>, vector<16x64xbf16>
    %cst_67 = arith.constant dense<0.000000e+00> : vector<32x64xf32>
    %87 = tpu.matmul %21, %86, %cst_67 {dimension_numbers = #tpu.dot_dimension_numbers<[1], [0], [0], [1], [0, 0, 1, 1], [], []>} : vector<32x16xbf16>, vector<16x64xbf16>, vector<32x64xf32> -> vector<32x64xf32>
    %88 = arith.extf %53 : vector<32x64xbf16> to vector<32x64xf32>
    %89 = arith.subf %87, %88 : vector<32x64xf32>
    %90 = arith.mulf %89, %89 : vector<32x64xf32>
    %91 = vector.shape_cast %90 : vector<32x64xf32> to vector<1x32x64xf32>
    %cst_68 = arith.constant dense<0.000000e+00> : vector<1xf32>
    %92 = vector.multi_reduction <add>, %91, %cst_68 [1, 2] : vector<1x32x64xf32> to vector<1xf32>
    %93 = vector.shape_cast %92 : vector<1xf32> to vector<1x1x1xf32>
    %94 = vector.extract %93[0, 0, 0] : f32 from vector<1x1x1xf32>
    %cst_69 = arith.constant 4.8828125E-4 : f32
    %95 = arith.mulf %94, %cst_69 : f32
    %96 = arith.addf %85, %95 : f32
    %c0_70 = arith.constant 0 : index
    %c0_71 = arith.constant 0 : index
    %97 = vector.load %arg19[%c0_70, %c0_71] : memref<16x64xbf16, #tpu.memory_space<vmem>>, vector<16x64xbf16>
    %cst_72 = arith.constant dense<0.000000e+00> : vector<32x64xf32>
    %98 = tpu.matmul %26, %97, %cst_72 {dimension_numbers = #tpu.dot_dimension_numbers<[1], [0], [0], [1], [0, 0, 1, 1], [], []>} : vector<32x16xbf16>, vector<16x64xbf16>, vector<32x64xf32> -> vector<32x64xf32>
    %99 = arith.extf %58 : vector<32x64xbf16> to vector<32x64xf32>
    %100 = arith.subf %98, %99 : vector<32x64xf32>
    %101 = arith.mulf %100, %100 : vector<32x64xf32>
    %102 = vector.shape_cast %101 : vector<32x64xf32> to vector<1x32x64xf32>
    %cst_73 = arith.constant dense<0.000000e+00> : vector<1xf32>
    %103 = vector.multi_reduction <add>, %102, %cst_73 [1, 2] : vector<1x32x64xf32> to vector<1xf32>
    %104 = vector.shape_cast %103 : vector<1xf32> to vector<1x1x1xf32>
    %105 = vector.extract %104[0, 0, 0] : f32 from vector<1x1x1xf32>
    %cst_74 = arith.constant 4.8828125E-4 : f32
    %106 = arith.mulf %105, %cst_74 : f32
    %107 = arith.addf %96, %106 : f32
    %c0_75 = arith.constant 0 : index
    %c0_76 = arith.constant 0 : index
    %108 = vector.load %arg20[%c0_75, %c0_76] : memref<16x64xbf16, #tpu.memory_space<vmem>>, vector<16x64xbf16>
    %cst_77 = arith.constant dense<0.000000e+00> : vector<32x64xf32>
    %109 = tpu.matmul %31, %108, %cst_77 {dimension_numbers = #tpu.dot_dimension_numbers<[1], [0], [0], [1], [0, 0, 1, 1], [], []>} : vector<32x16xbf16>, vector<16x64xbf16>, vector<32x64xf32> -> vector<32x64xf32>
    %110 = arith.extf %63 : vector<32x64xbf16> to vector<32x64xf32>
    %111 = arith.subf %109, %110 : vector<32x64xf32>
    %112 = arith.mulf %111, %111 : vector<32x64xf32>
    %113 = vector.shape_cast %112 : vector<32x64xf32> to vector<1x32x64xf32>
    %cst_78 = arith.constant dense<0.000000e+00> : vector<1xf32>
    %114 = vector.multi_reduction <add>, %113, %cst_78 [1, 2] : vector<1x32x64xf32> to vector<1xf32>
    %115 = vector.shape_cast %114 : vector<1xf32> to vector<1x1x1xf32>
    %116 = vector.extract %115[0, 0, 0] : f32 from vector<1x1x1xf32>
    %cst_79 = arith.constant 4.8828125E-4 : f32
    %117 = arith.mulf %116, %cst_79 : f32
    %118 = arith.addf %107, %117 : f32
    %c0_80 = arith.constant 0 : index
    %119 = memref.load %arg25[%c0_80] : memref<1xf32, #tpu.memory_space<smem>>
    memref.store %118, %arg25[%c0_80] : memref<1xf32, #tpu.memory_space<smem>>
    %c0_81 = arith.constant 0 : index
    %c0_82 = arith.constant 0 : index
    %120 = vector.load %arg21[%c0_81, %c0_82] : memref<10x16xbf16, #tpu.memory_space<vmem>>, vector<10x16xbf16>
    %cst_83 = arith.constant dense<0.000000e+00> : vector<10x256xf32>
    %121 = tpu.matmul %120, %5, %cst_83 {dimension_numbers = #tpu.dot_dimension_numbers<[1], [0], [0], [1], [0, 0, 1, 1], [], []>} : vector<10x16xbf16>, vector<16x256xbf16>, vector<10x256xf32> -> vector<10x256xf32>
    %c0_84 = arith.constant 0 : index
    %c0_85 = arith.constant 0 : index
    %122 = vector.load %arg22[%c0_84, %c0_85] : memref<10x256xf32, #tpu.memory_space<vmem>>, vector<10x256xf32>
    %123 = math.absf %121 : vector<10x256xf32>
    %cst_86 = arith.constant 0.000000e+00 : f32
    %124 = vector.broadcast %cst_86 : f32 to vector<10x256xf32>
    %125 = arith.subf %124, %123 : vector<10x256xf32>
    %126 = math.exp %125 : vector<10x256xf32>
    %cst_87 = arith.constant 0.000000e+00 : f32
    %127 = vector.broadcast %cst_87 : f32 to vector<10x256xf32>
    %128 = arith.maximumf %121, %127 : vector<10x256xf32>
    %129 = arith.mulf %121, %122 : vector<10x256xf32>
    %130 = arith.subf %128, %129 : vector<10x256xf32>
    %cst_88 = arith.constant 1.000000e+00 : f32
    %131 = vector.broadcast %cst_88 : f32 to vector<10x256xf32>
    %132 = arith.addf %131, %126 : vector<10x256xf32>
    %133 = math.log %132 : vector<10x256xf32>
    %134 = arith.addf %130, %133 : vector<10x256xf32>
    %cst_89 = arith.constant 0.000000e+00 : f32
    %135 = vector.broadcast %cst_89 : f32 to vector<10x256xf32>
    %136 = arith.cmpf oge, %121, %135 : vector<10x256xf32>
    %cst_90 = arith.constant 1.000000e+00 : f32
    %137 = vector.broadcast %cst_90 : f32 to vector<10x256xf32>
    %138 = arith.select %136, %137, %126 : vector<10x256xi1>, vector<10x256xf32>
    %cst_91 = arith.constant 1.000000e+00 : f32
    %139 = vector.broadcast %cst_91 : f32 to vector<10x256xf32>
    %140 = arith.addf %139, %126 : vector<10x256xf32>
    %141 = arith.divf %138, %140 : vector<10x256xf32>
    %cst_92 = arith.constant dense<0.000000e+00> : vector<10xf32>
    %142 = vector.multi_reduction <add>, %134, %cst_92 [1] : vector<10x256xf32> to vector<10xf32>
    %143 = vector.shape_cast %142 : vector<10xf32> to vector<10x1xf32>
    %144 = arith.mulf %141, %122 : vector<10x256xf32>
    %cst_93 = arith.constant dense<0.000000e+00> : vector<10xf32>
    %145 = vector.multi_reduction <add>, %144, %cst_93 [1] : vector<10x256xf32> to vector<10xf32>
    %146 = vector.shape_cast %145 : vector<10xf32> to vector<10x1xf32>
    %147 = arith.addf %141, %122 : vector<10x256xf32>
    %cst_94 = arith.constant dense<0.000000e+00> : vector<10xf32>
    %148 = vector.multi_reduction <add>, %147, %cst_94 [1] : vector<10x256xf32> to vector<10xf32>
    %149 = vector.shape_cast %148 : vector<10xf32> to vector<10x1xf32>
    %cst_95 = arith.constant 1.000000e+00 : f32
    %150 = vector.broadcast %cst_95 : f32 to vector<10x1xf32>
    %151 = arith.addf %146, %150 : vector<10x1xf32>
    %152 = arith.subf %149, %146 : vector<10x1xf32>
    %cst_96 = arith.constant 1.000000e+00 : f32
    %153 = vector.broadcast %cst_96 : f32 to vector<10x1xf32>
    %154 = arith.addf %152, %153 : vector<10x1xf32>
    %155 = arith.divf %151, %154 : vector<10x1xf32>
    %cst_97 = arith.constant 1.000000e+00 : f32
    %156 = vector.broadcast %cst_97 : f32 to vector<10x1xf32>
    %157 = arith.subf %156, %155 : vector<10x1xf32>
    %cst_98 = arith.constant 0.001953125 : f32
    %158 = vector.broadcast %cst_98 : f32 to vector<10x1xf32>
    %159 = arith.mulf %143, %158 : vector<10x1xf32>
    %cst_99 = arith.constant 5.000000e-01 : f32
    %160 = vector.broadcast %cst_99 : f32 to vector<10x1xf32>
    %161 = arith.mulf %157, %160 : vector<10x1xf32>
    %162 = arith.addf %159, %161 : vector<10x1xf32>
    %c0_100 = arith.constant 0 : index
    %c0_101 = arith.constant 0 : index
    %163 = vector.load %arg23[%c0_100, %c0_101] : memref<10x1xf32, #tpu.memory_space<vmem>>, vector<10x1xf32>
    %164 = arith.mulf %162, %163 : vector<10x1xf32>
    %165 = vector.shape_cast %164 : vector<10x1xf32> to vector<1x10x1xf32>
    %cst_102 = arith.constant dense<0.000000e+00> : vector<1xf32>
    %166 = vector.multi_reduction <add>, %165, %cst_102 [1, 2] : vector<1x10x1xf32> to vector<1xf32>
    %167 = vector.shape_cast %166 : vector<1xf32> to vector<1x1x1xf32>
    %168 = vector.extract %167[0, 0, 0] : f32 from vector<1x1x1xf32>
    %c0_103 = arith.constant 0 : index
    %169 = memref.load %arg24[%c0_103] : memref<1xf32, #tpu.memory_space<smem>>
    memref.store %168, %arg24[%c0_103] : memref<1xf32, #tpu.memory_space<smem>>
    return
  }
}

</mosaic_0001>

<llo_original>
// kernel: tpu_custom_call.1
$region0: #{tpu_custom_call.1}
  #allocation0 [shape = 'u32[]', space=smem, size = 0x4, offset = 0x4, fixed_abs, tag = 'smem constant byte address 0x4 - core index']
  #allocation1 [shape = 'u32[144,128]{1,0:T(1,128)}', space=vmem, size = 0x12000, scoped, tag = 'internal scratch']
  %s0 = inlined_call_operand.vmem [shape: bf16[6,256], index: 0, kind: input, shape index: {}]
  %s1 = inlined_call_operand.vmem [shape: bf16[6,1024], index: 1, kind: input, shape index: {}]
  %s2 = inlined_call_operand.vmem [shape: bf16[16,6], index: 2, kind: input, shape index: {}]
  %s3 = inlined_call_operand.vmem [shape: bf16[32,16], index: 3, kind: input, shape index: {}]
  %s4 = inlined_call_operand.vmem [shape: bf16[32,32], index: 4, kind: input, shape index: {}]
  %s5 = inlined_call_operand.vmem [shape: bf16[32,32], index: 5, kind: input, shape index: {}]
  %s6 = inlined_call_operand.vmem [shape: bf16[32,32], index: 6, kind: input, shape index: {}]
  %s7 = inlined_call_operand.vmem [shape: bf16[16,6], index: 7, kind: input, shape index: {}]
  %s8 = inlined_call_operand.vmem [shape: bf16[32,16], index: 8, kind: input, shape index: {}]
  %s9 = inlined_call_operand.vmem [shape: bf16[32,32], index: 9, kind: input, shape index: {}]
  %s10 = inlined_call_operand.vmem [shape: bf16[32,32], index: 10, kind: input, shape index: {}]
  %s11 = inlined_call_operand.vmem [shape: bf16[32,32], index: 11, kind: input, shape index: {}]
  %s12 = inlined_call_operand.vmem [shape: bf16[256,64], index: 12, kind: input, shape index: {}]
  %s13 = inlined_call_operand.vmem [shape: bf16[64,16], index: 13, kind: input, shape index: {}]
  %s14 = inlined_call_operand.hbm [shape: bf16[1024,256], index: 14, kind: input, shape index: {}]
  %s15 = inlined_call_operand.vmem [shape: bf16[256,64], index: 15, kind: input, shape index: {}]
  %s16 = inlined_call_operand.hbm [shape: bf16[256,1024], index: 16, kind: input, shape index: {}]
  %s17 = inlined_call_operand.vmem [shape: bf16[64,256], index: 17, kind: input, shape index: {}]
  %s18 = inlined_call_operand.vmem [shape: bf16[16,64], index: 18, kind: input, shape index: {}]
  %s19 = inlined_call_operand.vmem [shape: bf16[16,64], index: 19, kind: input, shape index: {}]
  %s20 = inlined_call_operand.vmem [shape: bf16[16,64], index: 20, kind: input, shape index: {}]
  %s21 = inlined_call_operand.vmem [shape: bf16[10,16], index: 21, kind: input, shape index: {}]
  %s22 = inlined_call_operand.vmem [shape: f32[10,256], index: 22, kind: input, shape index: {}]
  %s23 = inlined_call_operand.vmem [shape: f32[10,1], index: 23, kind: input, shape index: {}]
  %s24 = inlined_call_operand.hbm [shape: f32[1], index: 24, kind: output, shape index: {0}]
  %s25 = inlined_call_operand.hbm [shape: f32[1], index: 25, kind: output, shape index: {1}]
  %26 = xla_tuple %s24, %s25
  %s27 = sld [smem:[#allocation0]]
  $region122: #{tpu_custom_call.1} parent=0
    _
  %s29 = ssub.s32 1, %s27
  %s30 = scalar_select 0, %s29, %s27
  $region1: #{tpu_custom_call.1} parent=0
    #allocation2 [shape = 'u8[524288]{0}', space=vmem, size = 0x80000, scoped, tag = 'input window, operand 14, single buffered']
    #allocation3 [shape = 's32[1]{0}', space=sflag, size = 0x4, scoped, tag = 'scoped memory for tpu_custom_call.1']
    #allocation4 [shape = 's32[1]{0}', space=sflag, size = 0x4, scoped, tag = 'scoped memory for tpu_custom_call.1']
    #allocation5 [shape = 'u8[524288]{0}', space=vmem, size = 0x80000, scoped, tag = 'input window, operand 16, single buffered']
    #allocation6 [shape = 's32[1]{0}', space=sflag, size = 0x4, scoped, tag = 'scoped memory for tpu_custom_call.1']
    #allocation7 [shape = 'u8[512]{0}', space=smem, size = 0x200, scoped, tag = 'output window, operand 0, single buffered']
    #allocation8 [shape = 'u8[512]{0}', space=smem, size = 0x200, scoped, tag = 'output window, operand 1, single buffered']
    #allocation9 [shape = 's32[1]{0}', space=sflag, size = 0x4, scoped, tag = 'scoped memory for tpu_custom_call.1']
    %31 = vsyncpa [#allocation3], 0
    %32 = vsyncpa [#allocation6], 0
    %33 = vsyncpa [#allocation4], 0
    %34 = vsyncpa [#allocation9], 0
    // Predicated region
    $region2: #{tpu_custom_call.1} parent=1 // pred_check
      _
    $region3: #{tpu_custom_call.1} parent=1 // pred_check_branch
      %36 = sbr.rel (0) target = $region5
    $region4: #{tpu_custom_call.1} parent=1 // pred_region
      _
    $region5: #{tpu_custom_call.1} parent=1 // pred_fallthru
      _
    // Predicated region
    $region6: #{tpu_custom_call.1} parent=1 // pred_check
      _
    $region7: #{tpu_custom_call.1} parent=1 // pred_check_branch
      %38 = sbr.rel (0) target = $region9
    $region8: #{tpu_custom_call.1} parent=1 // pred_region
      _
    $region9: #{tpu_custom_call.1} parent=1 // pred_fallthru
      _
    // Predicated region
    $region10: #{tpu_custom_call.1} parent=1 // pred_check
      _
    $region11: #{tpu_custom_call.1} parent=1 // pred_check_branch
      %40 = sbr.rel (0) target = $region13
    $region12: #{tpu_custom_call.1} parent=1 // pred_region
      _
    $region13: #{tpu_custom_call.1} parent=1 // pred_fallthru
      _
    // Predicated region
    $region14: #{tpu_custom_call.1} parent=1 // pred_check
      _
    $region15: #{tpu_custom_call.1} parent=1 // pred_check_branch
      %42 = sbr.rel (0) target = $region17
    $region16: #{tpu_custom_call.1} parent=1 // pred_region
      _
    $region17: #{tpu_custom_call.1} parent=1 // pred_fallthru
      _
    // Predicated region
    $region18: #{tpu_custom_call.1} parent=1 // pred_check
      _
    $region19: #{tpu_custom_call.1} parent=1 // pred_check_branch
      %44 = sbr.rel (0) target = $region21
    $region20: #{tpu_custom_call.1} parent=1 // pred_region
      _
    $region21: #{tpu_custom_call.1} parent=1 // pred_fallthru
      _
    // Predicated region
    $region22: #{tpu_custom_call.1} parent=1 // pred_check
      _
    $region23: #{tpu_custom_call.1} parent=1 // pred_check_branch
      %46 = sbr.rel (0) target = $region25
    $region24: #{tpu_custom_call.1} parent=1 // pred_region
      _
    $region25: #{tpu_custom_call.1} parent=1 // pred_fallthru
      _
    // Predicated region
    $region26: #{tpu_custom_call.1} parent=1 // pred_check
      _
    $region27: #{tpu_custom_call.1} parent=1 // pred_check_branch
      %48 = sbr.rel (0) target = $region29
    $region28: #{tpu_custom_call.1} parent=1 // pred_region
      _
    $region29: #{tpu_custom_call.1} parent=1 // pred_fallthru
      _
    // Predicated region
    $region30: #{tpu_custom_call.1} parent=1 // pred_check
      _
    $region31: #{tpu_custom_call.1} parent=1 // pred_check_branch
      %50 = sbr.rel (0) target = $region33
    $region32: #{tpu_custom_call.1} parent=1 // pred_region
      _
    $region33: #{tpu_custom_call.1} parent=1 // pred_fallthru
      _
    // Predicated region
    $region34: #{tpu_custom_call.1} parent=1 // pred_check
      _
    $region35: #{tpu_custom_call.1} parent=1 // pred_check_branch
      %52 = sbr.rel (0) target = $region37
    $region36: #{tpu_custom_call.1} parent=1 // pred_region
      _
    $region37: #{tpu_custom_call.1} parent=1 // pred_fallthru
      _
    // Predicated region
    $region38: #{tpu_custom_call.1} parent=1 // pred_check
      _
    $region39: #{tpu_custom_call.1} parent=1 // pred_check_branch
      %54 = sbr.rel (0) target = $region41
    $region40: #{tpu_custom_call.1} parent=1 // pred_region
      _
    $region41: #{tpu_custom_call.1} parent=1 // pred_fallthru
      _
    // Predicated region
    $region42: #{tpu_custom_call.1} parent=1 // pred_check
      _
    $region43: #{tpu_custom_call.1} parent=1 // pred_check_branch
      %56 = sbr.rel (0) target = $region45
    $region44: #{tpu_custom_call.1} parent=1 // pred_region
      _
    $region45: #{tpu_custom_call.1} parent=1 // pred_fallthru
      _
    // Predicated region
    $region46: #{tpu_custom_call.1} parent=1 // pred_check
      _
    $region47: #{tpu_custom_call.1} parent=1 // pred_check_branch
      %58 = sbr.rel (0) target = $region49
    $region48: #{tpu_custom_call.1} parent=1 // pred_region
      _
    $region49: #{tpu_custom_call.1} parent=1 // pred_fallthru
      _
    // Predicated region
    $region50: #{tpu_custom_call.1} parent=1 // pred_check
      _
    $region51: #{tpu_custom_call.1} parent=1 // pred_check_branch
      %60 = sbr.rel (0) target = $region53
    $region52: #{tpu_custom_call.1} parent=1 // pred_region
      _
    $region53: #{tpu_custom_call.1} parent=1 // pred_fallthru
      _
    // Predicated region
    $region54: #{tpu_custom_call.1} parent=1 // pred_check
      _
    $region55: #{tpu_custom_call.1} parent=1 // pred_check_branch
      %62 = sbr.rel (0) target = $region57
    $region56: #{tpu_custom_call.1} parent=1 // pred_region
      _
    $region57: #{tpu_custom_call.1} parent=1 // pred_fallthru
      _
    // Predicated region
    $region58: #{tpu_custom_call.1} parent=1 // pred_check
      _
    $region59: #{tpu_custom_call.1} parent=1 // pred_check_branch
      %64 = sbr.rel (0) target = $region61
    $region60: #{tpu_custom_call.1} parent=1 // pred_region
      %s66 = ssub.s32 16384, 16384
      %67 = vsyncadd [#allocation3], %s66
      %s68 = sshll.u32 [#allocation2], 4
      %s69 = int_to_ptr.vmem [resolvable:$true] %s68
      %74 = dma.hbm_to_vmem [thread:$0]  %s14, 16384, %s69, [#allocation3], 128, 128, 8
    $region61: #{tpu_custom_call.1} parent=1 // pred_fallthru
      _
    // Predicated region
    $region62: #{tpu_custom_call.1} parent=1 // pred_check
      _
    $region63: #{tpu_custom_call.1} parent=1 // pred_check_branch
      %76 = sbr.rel (0) target = $region65
    $region64: #{tpu_custom_call.1} parent=1 // pred_region
      _
    $region65: #{tpu_custom_call.1} parent=1 // pred_fallthru
      _
    // Predicated region
    $region66: #{tpu_custom_call.1} parent=1 // pred_check
      _
    $region67: #{tpu_custom_call.1} parent=1 // pred_check_branch
      %78 = sbr.rel (0) target = $region69
    $region68: #{tpu_custom_call.1} parent=1 // pred_region
      %s80 = ssub.s32 16384, 16384
      %81 = vsyncadd [#allocation6], %s80
      %s82 = sshll.u32 [#allocation5], 4
      %s83 = int_to_ptr.vmem [resolvable:$true] %s82
      %88 = dma.hbm_to_vmem [thread:$0]  %s16, 16384, %s83, [#allocation6], 512, 512, 32
    $region69: #{tpu_custom_call.1} parent=1 // pred_fallthru
      _
    // Predicated region
    $region70: #{tpu_custom_call.1} parent=1 // pred_check
      _
    $region71: #{tpu_custom_call.1} parent=1 // pred_check_branch
      %90 = sbr.rel (0) target = $region73
    $region72: #{tpu_custom_call.1} parent=1 // pred_region
      _
    $region73: #{tpu_custom_call.1} parent=1 // pred_fallthru
      _
    // Predicated region
    $region74: #{tpu_custom_call.1} parent=1 // pred_check
      _
    $region75: #{tpu_custom_call.1} parent=1 // pred_check_branch
      %92 = sbr.rel (0) target = $region77
    $region76: #{tpu_custom_call.1} parent=1 // pred_region
      _
    $region77: #{tpu_custom_call.1} parent=1 // pred_fallthru
      _
    // Predicated region
    $region78: #{tpu_custom_call.1} parent=1 // pred_check
      _
    $region79: #{tpu_custom_call.1} parent=1 // pred_check_branch
      %94 = sbr.rel (0) target = $region81
    $region80: #{tpu_custom_call.1} parent=1 // pred_region
      _
    $region81: #{tpu_custom_call.1} parent=1 // pred_fallthru
      _
    // Predicated region
    $region82: #{tpu_custom_call.1} parent=1 // pred_check
      _
    $region83: #{tpu_custom_call.1} parent=1 // pred_check_branch
      %96 = sbr.rel (0) target = $region85
    $region84: #{tpu_custom_call.1} parent=1 // pred_region
      _
    $region85: #{tpu_custom_call.1} parent=1 // pred_fallthru
      _
    // Predicated region
    $region86: #{tpu_custom_call.1} parent=1 // pred_check
      _
    $region87: #{tpu_custom_call.1} parent=1 // pred_check_branch
      %98 = sbr.rel (0) target = $region89
    $region88: #{tpu_custom_call.1} parent=1 // pred_region
      _
    $region89: #{tpu_custom_call.1} parent=1 // pred_fallthru
      _
    // Predicated region
    $region90: #{tpu_custom_call.1} parent=1 // pred_check
      _
    $region91: #{tpu_custom_call.1} parent=1 // pred_check_branch
      %100 = sbr.rel (0) target = $region93
    $region92: #{tpu_custom_call.1} parent=1 // pred_region
      _
    $region93: #{tpu_custom_call.1} parent=1 // pred_fallthru
      _
    // Predicated region
    $region94: #{tpu_custom_call.1} parent=1 // pred_check
      _
    $region95: #{tpu_custom_call.1} parent=1 // pred_check_branch
      %102 = sbr.rel (0) target = $region97
    $region96: #{tpu_custom_call.1} parent=1 // pred_region
      _
    $region97: #{tpu_custom_call.1} parent=1 // pred_fallthru
      _
    // Predicated region
    $region98: #{tpu_custom_call.1} parent=1 // pred_check
      _
    $region99: #{tpu_custom_call.1} parent=1 // pred_check_branch
      %104 = sbr.rel (0) target = $region101
    $region100: #{tpu_custom_call.1} parent=1 // pred_region
      %105 = dma.done [#allocation3], 16384
    $region101: #{tpu_custom_call.1} parent=1 // pred_fallthru
      _
    // Predicated region
    $region102: #{tpu_custom_call.1} parent=1 // pred_check
      _
    $region103: #{tpu_custom_call.1} parent=1 // pred_check_branch
      %107 = sbr.rel (0) target = $region105
    $region104: #{tpu_custom_call.1} parent=1 // pred_region
      %108 = dma.done [#allocation6], 16384
    $region105: #{tpu_custom_call.1} parent=1 // pred_fallthru
      _
    %v110 = vld [vmem:[%s0] sm:$0x77]
    %v111 = vld [vmem:[%s2] sm:$0xf]
    %v112 = vld [vmem:[%s2 + $0x4] sm:$0xf]
    %v115 = vunpack.c.l.b16 %v111
    %v116 = vunpack.c.l.b16 %v112
    %v117 = vpack.c.b16 %v116, %v115
    %v119 = vunpack.c.l.b16 %v110
    %v120 = vunpack.c.h.b16 %v110
    %v121 = vpack.c.b16 %v119, %v119
    %v122 = vpack.c.b16 %v120, %v120
    %vm123 = vcmask 48128
    %v125 = vsel %vm123, %v117, 0
    %vm127 = vcmask 1042432
    %v129 = vsel %vm127, %v121, 0
    %v132 = vsel %vm127, %v122, 0
    %134 = vmatprep.subr.bf16.mxu0 %v132
    %135 = vmatpush1.bf16.msra.mxu0 %v129
    %136 = vmatprep.subr.bf16.mxu0 0
    %137 = vmatpush1.bf16.msra.mxu0 0
    %138 = vmatprep.subr.bf16.mxu0 0
    %139 = vmatpush1.bf16.msra.mxu0 0
    %140 = vmatprep.subr.bf16.mxu0 0
    %141 = vmatpush1.bf16.msra.mxu0 0
    %142 = vmatprep.subr.bf16.mxu0 0
    %143 = vmatpush1.bf16.msra.mxu0 0
    %144 = vmatprep.subr.bf16.mxu0 0
    %145 = vmatpush1.bf16.msra.mxu0 0
    %146 = vmatprep.subr.bf16.mxu0 0
    %147 = vmatpush1.bf16.msra.mxu0 0
    %148 = vmatprep.subr.bf16.mxu0 0
    %149 = vmatpush1.bf16.msra.mxu0 0
    %150 = vmatprep.subr.bf16.mxu0 0
    %151 = vmatpush1.bf16.msra.mxu0 0
    %152 = vmatprep.subr.bf16.mxu0 0
    %153 = vmatpush1.bf16.msra.mxu0 0
    %154 = vmatprep.subr.bf16.mxu0 0
    %155 = vmatpush1.bf16.msra.mxu0 0
    %156 = vmatprep.subr.bf16.mxu0 0
    %157 = vmatpush1.bf16.msra.mxu0 0
    %158 = vmatprep.subr.bf16.mxu0 0
    %159 = vmatpush1.bf16.msra.mxu0 0
    %160 = vmatprep.subr.bf16.mxu0 0
    %161 = vmatpush1.bf16.msra.mxu0 0
    %162 = vmatprep.subr.bf16.mxu0 0
    %163 = vmatpush1.bf16.msra.mxu0 0
    %164 = vmatprep.subr.bf16.mxu0 0
    %165 = vmatpush1.bf16.msra.mxu0 0
    %166 = vmatprep.mubr.bf16.mxu0 0
    %167 = vmatmul.mubr.bf16.gmra.mrb[0].mxu0 %v125
    %v168 = vpop.f32.mrb[0].mxu0
    %v169 = vadd.f32 0.0, %v168
    %v170 = vpop.f32.mrb[0].mxu0
    %v171 = vadd.f32 0.0, %v170
    %v172 = vpop.f32.mrb[0].mxu0
    %v173 = vadd.f32 0.0, %v172
    %v174 = vpop.f32.mrb[0].mxu0
    %v175 = vadd.f32 0.0, %v174
    %176 = vdwg.mxu0
    %v177 = vmax.f32 %v169, 0.0
    %v178 = vmax.f32 %v171, 0.0
    %v179 = vmax.f32 %v173, 0.0
    %v180 = vmax.f32 %v175, 0.0
    %v181 = vpack.c.bf16 %v179, %v177
    %v182 = vpack.c.bf16 %v180, %v178
    %v183 = vld [vmem:[%s12] sm:$0xf]
    %v184 = vld [vmem:[%s12 + $0x4] sm:$0xf]
    %v185 = vld [vmem:[%s12 + $0x8] sm:$0xf]
    %v186 = vld [vmem:[%s12 + $0xc] sm:$0xf]
    %v187 = vld [vmem:[%s12 + $0x10] sm:$0xf]
    %v188 = vld [vmem:[%s12 + $0x14] sm:$0xf]
    %v189 = vld [vmem:[%s12 + $0x18] sm:$0xf]
    %v190 = vld [vmem:[%s12 + $0x1c] sm:$0xf]
    %v191 = vld [vmem:[%s12 + $0x20] sm:$0xf]
    %v192 = vld [vmem:[%s12 + $0x24] sm:$0xf]
    %v193 = vld [vmem:[%s12 + $0x28] sm:$0xf]
    %v194 = vld [vmem:[%s12 + $0x2c] sm:$0xf]
    %v195 = vld [vmem:[%s12 + $0x30] sm:$0xf]
    %v196 = vld [vmem:[%s12 + $0x34] sm:$0xf]
    %v197 = vld [vmem:[%s12 + $0x38] sm:$0xf]
    %v198 = vld [vmem:[%s12 + $0x3c] sm:$0xf]
    %v199 = vld [vmem:[%s12 + $0x40] sm:$0xf]
    %v200 = vld [vmem:[%s12 + $0x44] sm:$0xf]
    %v201 = vld [vmem:[%s12 + $0x48] sm:$0xf]
    %v202 = vld [vmem:[%s12 + $0x4c] sm:$0xf]
    %v203 = vld [vmem:[%s12 + $0x50] sm:$0xf]
    %v204 = vld [vmem:[%s12 + $0x54] sm:$0xf]
    %v205 = vld [vmem:[%s12 + $0x58] sm:$0xf]
    %v206 = vld [vmem:[%s12 + $0x5c] sm:$0xf]
    %v207 = vld [vmem:[%s12 + $0x60] sm:$0xf]
    %v208 = vld [vmem:[%s12 + $0x64] sm:$0xf]
    %v209 = vld [vmem:[%s12 + $0x68] sm:$0xf]
    %v210 = vld [vmem:[%s12 + $0x6c] sm:$0xf]
    %v211 = vld [vmem:[%s12 + $0x70] sm:$0xf]
    %v212 = vld [vmem:[%s12 + $0x74] sm:$0xf]
    %v213 = vld [vmem:[%s12 + $0x78] sm:$0xf]
    %v214 = vld [vmem:[%s12 + $0x7c] sm:$0xf]
    %v247 = vunpack.c.l.b16 %v183
    %v248 = vunpack.c.l.b16 %v184
    %v249 = vunpack.c.l.b16 %v185
    %v250 = vunpack.c.l.b16 %v186
    %v251 = vunpack.c.l.b16 %v187
    %v252 = vunpack.c.l.b16 %v188
    %v253 = vunpack.c.l.b16 %v189
    %v254 = vunpack.c.l.b16 %v190
    %v255 = vunpack.c.l.b16 %v191
    %v256 = vunpack.c.l.b16 %v192
    %v257 = vunpack.c.l.b16 %v193
    %v258 = vunpack.c.l.b16 %v194
    %v259 = vunpack.c.l.b16 %v195
    %v260 = vunpack.c.l.b16 %v196
    %v261 = vunpack.c.l.b16 %v197
    %v262 = vunpack.c.l.b16 %v198
    %v263 = vunpack.c.l.b16 %v199
    %v264 = vunpack.c.l.b16 %v200
    %v265 = vunpack.c.l.b16 %v201
    %v266 = vunpack.c.l.b16 %v202
    %v267 = vunpack.c.l.b16 %v203
    %v268 = vunpack.c.l.b16 %v204
    %v269 = vunpack.c.l.b16 %v205
    %v270 = vunpack.c.l.b16 %v206
    %v271 = vunpack.c.l.b16 %v207
    %v272 = vunpack.c.l.b16 %v208
    %v273 = vunpack.c.l.b16 %v209
    %v274 = vunpack.c.l.b16 %v210
    %v275 = vunpack.c.l.b16 %v211
    %v276 = vunpack.c.l.b16 %v212
    %v277 = vunpack.c.l.b16 %v213
    %v278 = vunpack.c.l.b16 %v214
    %v279 = vpack.c.b16 %v248, %v247
    %v280 = vpack.c.b16 %v250, %v249
    %v281 = vpack.c.b16 %v252, %v251
    %v282 = vpack.c.b16 %v254, %v253
    %v283 = vpack.c.b16 %v256, %v255
    %v284 = vpack.c.b16 %v258, %v257
    %v285 = vpack.c.b16 %v260, %v259
    %v286 = vpack.c.b16 %v262, %v261
    %v287 = vpack.c.b16 %v264, %v263
    %v288 = vpack.c.b16 %v266, %v265
    %v289 = vpack.c.b16 %v268, %v267
    %v290 = vpack.c.b16 %v270, %v269
    %v291 = vpack.c.b16 %v272, %v271
    %v292 = vpack.c.b16 %v274, %v273
    %v293 = vpack.c.b16 %v276, %v275
    %v294 = vpack.c.b16 %v278, %v277
    %311 = vmatprep.subr.bf16.mxu0 0
    %312 = vmatpush1.bf16.msra.mxu0 %v279
    %313 = vmatprep.subr.bf16.mxu0 0
    %314 = vmatpush1.bf16.msra.mxu0 %v280
    %315 = vmatprep.subr.bf16.mxu0 0
    %316 = vmatpush1.bf16.msra.mxu0 %v281
    %317 = vmatprep.subr.bf16.mxu0 0
    %318 = vmatpush1.bf16.msra.mxu0 %v282
    %319 = vmatprep.subr.bf16.mxu0 0
    %320 = vmatpush1.bf16.msra.mxu0 %v283
    %321 = vmatprep.subr.bf16.mxu0 0
    %322 = vmatpush1.bf16.msra.mxu0 %v284
    %323 = vmatprep.subr.bf16.mxu0 0
    %324 = vmatpush1.bf16.msra.mxu0 %v285
    %325 = vmatprep.subr.bf16.mxu0 0
    %326 = vmatpush1.bf16.msra.mxu0 %v286
    %327 = vmatprep.subr.bf16.mxu0 0
    %328 = vmatpush1.bf16.msra.mxu0 %v287
    %329 = vmatprep.subr.bf16.mxu0 0
    %330 = vmatpush1.bf16.msra.mxu0 %v288
    %331 = vmatprep.subr.bf16.mxu0 0
    %332 = vmatpush1.bf16.msra.mxu0 %v289
    %333 = vmatprep.subr.bf16.mxu0 0
    %334 = vmatpush1.bf16.msra.mxu0 %v290
    %335 = vmatprep.subr.bf16.mxu0 0
    %336 = vmatpush1.bf16.msra.mxu0 %v291
    %337 = vmatprep.subr.bf16.mxu0 0
    %338 = vmatpush1.bf16.msra.mxu0 %v292
    %339 = vmatprep.subr.bf16.mxu0 0
    %340 = vmatpush1.bf16.msra.mxu0 %v293
    %341 = vmatprep.subr.bf16.mxu0 0
    %342 = vmatpush1.bf16.msra.mxu0 %v294
    %343 = vmatprep.mubr.bf16.mxu0 %v182
    %344 = vmatmul.mubr.bf16.gmra.mrb[0].mxu0 %v181
    %v345 = vpop.f32.mrb[0].mxu0
    %v346 = vadd.f32 0.0, %v345
    %v347 = vpop.f32.mrb[0].mxu0
    %v348 = vpop.f32.mrb[0].mxu0
    %v349 = vadd.f32 0.0, %v348
    %v350 = vpop.f32.mrb[0].mxu0
    %351 = vdwg.mxu0
    %v352 = vpack.c.bf16 %v349, %v346
    %v353 = vld [vmem:[%s3] sm:$0xf]
    %v354 = vld [vmem:[%s3 + $0x4] sm:$0xf]
    %v355 = vld [vmem:[%s3 + $0x8] sm:$0xf]
    %v356 = vld [vmem:[%s3 + $0xc] sm:$0xf]
    %v361 = vunpack.c.l.b16 %v353
    %v362 = vunpack.c.l.b16 %v354
    %v363 = vunpack.c.l.b16 %v355
    %v364 = vunpack.c.l.b16 %v356
    %v365 = vpack.c.b16 %v362, %v361
    %v366 = vpack.c.b16 %v364, %v363
    %vm367 = vcmask 130048
    %v369 = vsel %vm367, %v365, 0
    %v372 = vsel %vm367, %v366, 0
    %374 = vmatprep.subr.bf16.mxu0 0
    %375 = vmatpush1.bf16.msra.mxu0 %v352
    %376 = vmatprep.subr.bf16.mxu0 0
    %377 = vmatpush1.bf16.msra.mxu0 0
    %378 = vmatprep.subr.bf16.mxu0 0
    %379 = vmatpush1.bf16.msra.mxu0 0
    %380 = vmatprep.subr.bf16.mxu0 0
    %381 = vmatpush1.bf16.msra.mxu0 0
    %382 = vmatprep.subr.bf16.mxu0 0
    %383 = vmatpush1.bf16.msra.mxu0 0
    %384 = vmatprep.subr.bf16.mxu0 0
    %385 = vmatpush1.bf16.msra.mxu0 0
    %386 = vmatprep.subr.bf16.mxu0 0
    %387 = vmatpush1.bf16.msra.mxu0 0
    %388 = vmatprep.subr.bf16.mxu0 0
    %389 = vmatpush1.bf16.msra.mxu0 0
    %390 = vmatprep.subr.bf16.mxu0 0
    %391 = vmatpush1.bf16.msra.mxu0 0
    %392 = vmatprep.subr.bf16.mxu0 0
    %393 = vmatpush1.bf16.msra.mxu0 0
    %394 = vmatprep.subr.bf16.mxu0 0
    %395 = vmatpush1.bf16.msra.mxu0 0
    %396 = vmatprep.subr.bf16.mxu0 0
    %397 = vmatpush1.bf16.msra.mxu0 0
    %398 = vmatprep.subr.bf16.mxu0 0
    %399 = vmatpush1.bf16.msra.mxu0 0
    %400 = vmatprep.subr.bf16.mxu0 0
    %401 = vmatpush1.bf16.msra.mxu0 0
    %402 = vmatprep.subr.bf16.mxu0 0
    %403 = vmatpush1.bf16.msra.mxu0 0
    %404 = vmatprep.subr.bf16.mxu0 0
    %405 = vmatpush1.bf16.msra.mxu0 0
    %406 = vmatprep.mubr.bf16.mxu0 0
    %407 = vmatmul.mubr.bf16.gmra.mrb[0].mxu0 %v369
    %v408 = vpop.f32.mrb[0].mxu0
    %v409 = vadd.f32 0.0, %v408
    %v410 = vpop.f32.mrb[0].mxu0
    %v411 = vpop.f32.mrb[0].mxu0
    %v412 = vadd.f32 0.0, %v411
    %v413 = vpop.f32.mrb[0].mxu0
    %414 = vmatprep.mubr.bf16.mxu0 0
    %415 = vmatmul.mubr.bf16.gmra.mrb[0].mxu0 %v372
    %v416 = vpop.f32.mrb[0].mxu0
    %v417 = vadd.f32 0.0, %v416
    %v418 = vpop.f32.mrb[0].mxu0
    %v419 = vpop.f32.mrb[0].mxu0
    %v420 = vadd.f32 0.0, %v419
    %v421 = vpop.f32.mrb[0].mxu0
    %422 = vdwg.mxu0
    %v423 = vmax.f32 %v409, 0.0
    %v424 = vmax.f32 %v412, 0.0
    %v425 = vmax.f32 %v417, 0.0
    %v426 = vmax.f32 %v420, 0.0
    %v427 = vpack.c.bf16 %v424, %v423
    %v428 = vpack.c.bf16 %v426, %v425
    %v429 = vld [vmem:[%s13] sm:$0xf]
    %v430 = vld [vmem:[%s13 + $0x4] sm:$0xf]
    %v431 = vld [vmem:[%s13 + $0x8] sm:$0xf]
    %v432 = vld [vmem:[%s13 + $0xc] sm:$0xf]
    %v433 = vld [vmem:[%s13 + $0x10] sm:$0xf]
    %v434 = vld [vmem:[%s13 + $0x14] sm:$0xf]
    %v435 = vld [vmem:[%s13 + $0x18] sm:$0xf]
    %v436 = vld [vmem:[%s13 + $0x1c] sm:$0xf]
    %v445 = vunpack.c.l.b16 %v429
    %v446 = vunpack.c.l.b16 %v430
    %v447 = vunpack.c.l.b16 %v431
    %v448 = vunpack.c.l.b16 %v432
    %v449 = vunpack.c.l.b16 %v433
    %v450 = vunpack.c.l.b16 %v434
    %v451 = vunpack.c.l.b16 %v435
    %v452 = vunpack.c.l.b16 %v436
    %v453 = vpack.c.b16 %v446, %v445
    %v454 = vpack.c.b16 %v448, %v447
    %v455 = vpack.c.b16 %v450, %v449
    %v456 = vpack.c.b16 %v452, %v451
    %vm461 = vcmask 523264
    %v463 = vsel %vm461, %v427, 0
    %v466 = vsel %vm461, %v428, 0
    %468 = vmatprep.subr.bf16.mxu0 0
    %469 = vmatpush1.bf16.msra.mxu0 %v453
    %470 = vmatprep.subr.bf16.mxu0 0
    %471 = vmatpush1.bf16.msra.mxu0 %v454
    %472 = vmatprep.subr.bf16.mxu0 0
    %473 = vmatpush1.bf16.msra.mxu0 %v455
    %474 = vmatprep.subr.bf16.mxu0 0
    %475 = vmatpush1.bf16.msra.mxu0 %v456
    %476 = vmatprep.subr.bf16.mxu0 0
    %477 = vmatpush1.bf16.msra.mxu0 0
    %478 = vmatprep.subr.bf16.mxu0 0
    %479 = vmatpush1.bf16.msra.mxu0 0
    %480 = vmatprep.subr.bf16.mxu0 0
    %481 = vmatpush1.bf16.msra.mxu0 0
    %482 = vmatprep.subr.bf16.mxu0 0
    %483 = vmatpush1.bf16.msra.mxu0 0
    %484 = vmatprep.subr.bf16.mxu0 0
    %485 = vmatpush1.bf16.msra.mxu0 0
    %486 = vmatprep.subr.bf16.mxu0 0
    %487 = vmatpush1.bf16.msra.mxu0 0
    %488 = vmatprep.subr.bf16.mxu0 0
    %489 = vmatpush1.bf16.msra.mxu0 0
    %490 = vmatprep.subr.bf16.mxu0 0
    %491 = vmatpush1.bf16.msra.mxu0 0
    %492 = vmatprep.subr.bf16.mxu0 0
    %493 = vmatpush1.bf16.msra.mxu0 0
    %494 = vmatprep.subr.bf16.mxu0 0
    %495 = vmatpush1.bf16.msra.mxu0 0
    %496 = vmatprep.subr.bf16.mxu0 0
    %497 = vmatpush1.bf16.msra.mxu0 0
    %498 = vmatprep.subr.bf16.mxu0 0
    %499 = vmatpush1.bf16.msra.mxu0 0
    %500 = vmatprep.mubr.bf16.mxu0 0
    %501 = vmatmul.mubr.bf16.gmra.mrb[0].mxu0 %v463
    %v502 = vpop.f32.mrb[0].mxu0
    %v503 = vadd.f32 0.0, %v502
    %v504 = vpop.f32.mrb[0].mxu0
    %v505 = vpop.f32.mrb[0].mxu0
    %v506 = vadd.f32 0.0, %v505
    %v507 = vpop.f32.mrb[0].mxu0
    %508 = vmatprep.mubr.bf16.mxu0 0
    %509 = vmatmul.mubr.bf16.gmra.mrb[0].mxu0 %v466
    %v510 = vpop.f32.mrb[0].mxu0
    %v511 = vadd.f32 0.0, %v510
    %v512 = vpop.f32.mrb[0].mxu0
    %v513 = vpop.f32.mrb[0].mxu0
    %v514 = vadd.f32 0.0, %v513
    %v515 = vpop.f32.mrb[0].mxu0
    %516 = vdwg.mxu0
    %v517 = vpack.c.bf16 %v506, %v503
    %v518 = vpack.c.bf16 %v514, %v511
    %v519 = vld [vmem:[%s4] sm:$0xf]
    %v520 = vld [vmem:[%s4 + $0x4] sm:$0xf]
    %v521 = vld [vmem:[%s4 + $0x8] sm:$0xf]
    %v522 = vld [vmem:[%s4 + $0xc] sm:$0xf]
    %v527 = vunpack.c.l.b16 %v519
    %v528 = vunpack.c.l.b16 %v520
    %v529 = vunpack.c.l.b16 %v521
    %v530 = vunpack.c.l.b16 %v522
    %v531 = vpack.c.b16 %v528, %v527
    %v532 = vpack.c.b16 %v530, %v529
    %vm533 = vcmask 261120
    %v535 = vsel %vm533, %v531, 0
    %v538 = vsel %vm533, %v532, 0
    %540 = vmatprep.subr.bf16.mxu0 0
    %541 = vmatpush1.bf16.msra.mxu0 %v517
    %542 = vmatprep.subr.bf16.mxu0 0
    %543 = vmatpush1.bf16.msra.mxu0 %v518
    %544 = vmatprep.subr.bf16.mxu0 0
    %545 = vmatpush1.bf16.msra.mxu0 0
    %546 = vmatprep.subr.bf16.mxu0 0
    %547 = vmatpush1.bf16.msra.mxu0 0
    %548 = vmatprep.subr.bf16.mxu0 0
    %549 = vmatpush1.bf16.msra.mxu0 0
    %550 = vmatprep.subr.bf16.mxu0 0
    %551 = vmatpush1.bf16.msra.mxu0 0
    %552 = vmatprep.subr.bf16.mxu0 0
    %553 = vmatpush1.bf16.msra.mxu0 0
    %554 = vmatprep.subr.bf16.mxu0 0
    %555 = vmatpush1.bf16.msra.mxu0 0
    %556 = vmatprep.subr.bf16.mxu0 0
    %557 = vmatpush1.bf16.msra.mxu0 0
    %558 = vmatprep.subr.bf16.mxu0 0
    %559 = vmatpush1.bf16.msra.mxu0 0
    %560 = vmatprep.subr.bf16.mxu0 0
    %561 = vmatpush1.bf16.msra.mxu0 0
    %562 = vmatprep.subr.bf16.mxu0 0
    %563 = vmatpush1.bf16.msra.mxu0 0
    %564 = vmatprep.subr.bf16.mxu0 0
    %565 = vmatpush1.bf16.msra.mxu0 0
    %566 = vmatprep.subr.bf16.mxu0 0
    %567 = vmatpush1.bf16.msra.mxu0 0
    %568 = vmatprep.subr.bf16.mxu0 0
    %569 = vmatpush1.bf16.msra.mxu0 0
    %570 = vmatprep.subr.bf16.mxu0 0
    %571 = vmatpush1.bf16.msra.mxu0 0
    %572 = vmatprep.mubr.bf16.mxu0 0
    %573 = vmatmul.mubr.bf16.gmra.mrb[0].mxu0 %v535
    %v574 = vpop.f32.mrb[0].mxu0
    %v575 = vadd.f32 0.0, %v574
    %v576 = vpop.f32.mrb[0].mxu0
    %v577 = vpop.f32.mrb[0].mxu0
    %v578 = vadd.f32 0.0, %v577
    %v579 = vpop.f32.mrb[0].mxu0
    %580 = vmatprep.mubr.bf16.mxu0 0
    %581 = vmatmul.mubr.bf16.gmra.mrb[0].mxu0 %v538
    %v582 = vpop.f32.mrb[0].mxu0
    %v583 = vadd.f32 0.0, %v582
    %v584 = vpop.f32.mrb[0].mxu0
    %v585 = vpop.f32.mrb[0].mxu0
    %v586 = vadd.f32 0.0, %v585
    %v587 = vpop.f32.mrb[0].mxu0
    %588 = vdwg.mxu0
    %v589 = vmax.f32 %v575, 0.0
    %v590 = vmax.f32 %v578, 0.0
    %v591 = vmax.f32 %v583, 0.0
    %v592 = vmax.f32 %v586, 0.0
    %v593 = vpack.c.bf16 %v590, %v589
    %v594 = vpack.c.bf16 %v592, %v591
    %v595 = vld [vmem:[%s5] sm:$0xf]
    %v596 = vld [vmem:[%s5 + $0x4] sm:$0xf]
    %v597 = vld [vmem:[%s5 + $0x8] sm:$0xf]
    %v598 = vld [vmem:[%s5 + $0xc] sm:$0xf]
    %v603 = vunpack.c.l.b16 %v595
    %v604 = vunpack.c.l.b16 %v596
    %v605 = vunpack.c.l.b16 %v597
    %v606 = vunpack.c.l.b16 %v598
    %v607 = vpack.c.b16 %v604, %v603
    %v608 = vpack.c.b16 %v606, %v605
    %v610 = vsel %vm533, %v607, 0
    %v613 = vsel %vm533, %v608, 0
    %615 = vmatprep.subr.bf16.mxu0 0
    %616 = vmatpush1.bf16.msra.mxu0 %v593
    %617 = vmatprep.subr.bf16.mxu0 0
    %618 = vmatpush1.bf16.msra.mxu0 %v594
    %619 = vmatprep.subr.bf16.mxu0 0
    %620 = vmatpush1.bf16.msra.mxu0 0
    %621 = vmatprep.subr.bf16.mxu0 0
    %622 = vmatpush1.bf16.msra.mxu0 0
    %623 = vmatprep.subr.bf16.mxu0 0
    %624 = vmatpush1.bf16.msra.mxu0 0
    %625 = vmatprep.subr.bf16.mxu0 0
    %626 = vmatpush1.bf16.msra.mxu0 0
    %627 = vmatprep.subr.bf16.mxu0 0
    %628 = vmatpush1.bf16.msra.mxu0 0
    %629 = vmatprep.subr.bf16.mxu0 0
    %630 = vmatpush1.bf16.msra.mxu0 0
    %631 = vmatprep.subr.bf16.mxu0 0
    %632 = vmatpush1.bf16.msra.mxu0 0
    %633 = vmatprep.subr.bf16.mxu0 0
    %634 = vmatpush1.bf16.msra.mxu0 0
    %635 = vmatprep.subr.bf16.mxu0 0
    %636 = vmatpush1.bf16.msra.mxu0 0
    %637 = vmatprep.subr.bf16.mxu0 0
    %638 = vmatpush1.bf16.msra.mxu0 0
    %639 = vmatprep.subr.bf16.mxu0 0
    %640 = vmatpush1.bf16.msra.mxu0 0
    %641 = vmatprep.subr.bf16.mxu0 0
    %642 = vmatpush1.bf16.msra.mxu0 0
    %643 = vmatprep.subr.bf16.mxu0 0
    %644 = vmatpush1.bf16.msra.mxu0 0
    %645 = vmatprep.subr.bf16.mxu0 0
    %646 = vmatpush1.bf16.msra.mxu0 0
    %647 = vmatprep.mubr.bf16.mxu0 0
    %648 = vmatmul.mubr.bf16.gmra.mrb[0].mxu0 %v610
    %v649 = vpop.f32.mrb[0].mxu0
    %v650 = vadd.f32 0.0, %v649
    %v651 = vpop.f32.mrb[0].mxu0
    %v652 = vpop.f32.mrb[0].mxu0
    %v653 = vadd.f32 0.0, %v652
    %v654 = vpop.f32.mrb[0].mxu0
    %655 = vmatprep.mubr.bf16.mxu0 0
    %656 = vmatmul.mubr.bf16.gmra.mrb[0].mxu0 %v613
    %v657 = vpop.f32.mrb[0].mxu0
    %v658 = vadd.f32 0.0, %v657
    %v659 = vpop.f32.mrb[0].mxu0
    %v660 = vpop.f32.mrb[0].mxu0
    %v661 = vadd.f32 0.0, %v660
    %v662 = vpop.f32.mrb[0].mxu0
    %663 = vdwg.mxu0
    %v664 = vmax.f32 %v650, 0.0
    %v665 = vmax.f32 %v653, 0.0
    %v666 = vmax.f32 %v658, 0.0
    %v667 = vmax.f32 %v661, 0.0
    %v668 = vpack.c.bf16 %v665, %v664
    %v669 = vpack.c.bf16 %v667, %v666
    %v670 = vld [vmem:[%s6] sm:$0xf]
    %v671 = vld [vmem:[%s6 + $0x4] sm:$0xf]
    %v672 = vld [vmem:[%s6 + $0x8] sm:$0xf]
    %v673 = vld [vmem:[%s6 + $0xc] sm:$0xf]
    %v678 = vunpack.c.l.b16 %v670
    %v679 = vunpack.c.l.b16 %v671
    %v680 = vunpack.c.l.b16 %v672
    %v681 = vunpack.c.l.b16 %v673
    %v682 = vpack.c.b16 %v679, %v678
    %v683 = vpack.c.b16 %v681, %v680
    %v685 = vsel %vm533, %v682, 0
    %v688 = vsel %vm533, %v683, 0
    %690 = vmatprep.subr.bf16.mxu0 0
    %691 = vmatpush1.bf16.msra.mxu0 %v668
    %692 = vmatprep.subr.bf16.mxu0 0
    %693 = vmatpush1.bf16.msra.mxu0 %v669
    %694 = vmatprep.subr.bf16.mxu0 0
    %695 = vmatpush1.bf16.msra.mxu0 0
    %696 = vmatprep.subr.bf16.mxu0 0
    %697 = vmatpush1.bf16.msra.mxu0 0
    %698 = vmatprep.subr.bf16.mxu0 0
    %699 = vmatpush1.bf16.msra.mxu0 0
    %700 = vmatprep.subr.bf16.mxu0 0
    %701 = vmatpush1.bf16.msra.mxu0 0
    %702 = vmatprep.subr.bf16.mxu0 0
    %703 = vmatpush1.bf16.msra.mxu0 0
    %704 = vmatprep.subr.bf16.mxu0 0
    %705 = vmatpush1.bf16.msra.mxu0 0
    %706 = vmatprep.subr.bf16.mxu0 0
    %707 = vmatpush1.bf16.msra.mxu0 0
    %708 = vmatprep.subr.bf16.mxu0 0
    %709 = vmatpush1.bf16.msra.mxu0 0
    %710 = vmatprep.subr.bf16.mxu0 0
    %711 = vmatpush1.bf16.msra.mxu0 0
    %712 = vmatprep.subr.bf16.mxu0 0
    %713 = vmatpush1.bf16.msra.mxu0 0
    %714 = vmatprep.subr.bf16.mxu0 0
    %715 = vmatpush1.bf16.msra.mxu0 0
    %716 = vmatprep.subr.bf16.mxu0 0
    %717 = vmatpush1.bf16.msra.mxu0 0
    %718 = vmatprep.subr.bf16.mxu0 0
    %719 = vmatpush1.bf16.msra.mxu0 0
    %720 = vmatprep.subr.bf16.mxu0 0
    %721 = vmatpush1.bf16.msra.mxu0 0
    %722 = vmatprep.mubr.bf16.mxu0 0
    %723 = vmatmul.mubr.bf16.gmra.mrb[0].mxu0 %v685
    %v724 = vpop.f32.mrb[0].mxu0
    %v725 = vadd.f32 0.0, %v724
    %v726 = vpop.f32.mrb[0].mxu0
    %v727 = vpop.f32.mrb[0].mxu0
    %v728 = vadd.f32 0.0, %v727
    %v729 = vpop.f32.mrb[0].mxu0
    %730 = vmatprep.mubr.bf16.mxu0 0
    %731 = vmatmul.mubr.bf16.gmra.mrb[0].mxu0 %v688
    %v732 = vpop.f32.mrb[0].mxu0
    %v733 = vadd.f32 0.0, %v732
    %v734 = vpop.f32.mrb[0].mxu0
    %v735 = vpop.f32.mrb[0].mxu0
    %v736 = vadd.f32 0.0, %v735
    %v737 = vpop.f32.mrb[0].mxu0
    %738 = vdwg.mxu0
    %v739 = vmax.f32 %v725, 0.0
    %v740 = vmax.f32 %v728, 0.0
    %v741 = vmax.f32 %v733, 0.0
    %v742 = vmax.f32 %v736, 0.0
    %v743 = vpack.c.bf16 %v740, %v739
    %v744 = vpack.c.bf16 %v742, %v741
    %v745 = vld [vmem:[%s1] sm:$0x77]
    %v746 = vld [vmem:[%s1 + $0x8] sm:$0x77]
    %v747 = vld [vmem:[%s1 + $0x10] sm:$0x77]
    %v748 = vld [vmem:[%s1 + $0x18] sm:$0x77]
    %v749 = vld [vmem:[%s7] sm:$0xf]
    %v750 = vld [vmem:[%s7 + $0x4] sm:$0xf]
    %v753 = vunpack.c.l.b16 %v749
    %v754 = vunpack.c.l.b16 %v750
    %v755 = vpack.c.b16 %v754, %v753
    %v760 = vunpack.c.l.b16 %v745
    %v761 = vunpack.c.h.b16 %v745
    %v762 = vunpack.c.l.b16 %v746
    %v763 = vunpack.c.h.b16 %v746
    %v764 = vunpack.c.l.b16 %v747
    %v765 = vunpack.c.h.b16 %v747
    %v766 = vunpack.c.l.b16 %v748
    %v767 = vunpack.c.h.b16 %v748
    %v768 = vpack.c.b16 %v760, %v760
    %v769 = vpack.c.b16 %v761, %v761
    %v770 = vpack.c.b16 %v762, %v762
    %v771 = vpack.c.b16 %v763, %v763
    %v772 = vpack.c.b16 %v764, %v764
    %v773 = vpack.c.b16 %v765, %v765
    %v774 = vpack.c.b16 %v766, %v766
    %v775 = vpack.c.b16 %v767, %v767
    %v777 = vsel %vm123, %v755, 0
    %v780 = vsel %vm127, %v768, 0
    %v783 = vsel %vm127, %v769, 0
    %v786 = vsel %vm127, %v770, 0
    %v789 = vsel %vm127, %v771, 0
    %v792 = vsel %vm127, %v772, 0
    %v795 = vsel %vm127, %v773, 0
    %v798 = vsel %vm127, %v774, 0
    %v801 = vsel %vm127, %v775, 0
    %803 = vmatprep.subr.bf16.mxu0 %v783
    %804 = vmatpush1.bf16.msra.mxu0 %v780
    %805 = vmatprep.subr.bf16.mxu0 0
    %806 = vmatpush1.bf16.msra.mxu0 0
    %807 = vmatprep.subr.bf16.mxu0 0
    %808 = vmatpush1.bf16.msra.mxu0 0
    %809 = vmatprep.subr.bf16.mxu0 0
    %810 = vmatpush1.bf16.msra.mxu0 0
    %811 = vmatprep.subr.bf16.mxu0 0
    %812 = vmatpush1.bf16.msra.mxu0 0
    %813 = vmatprep.subr.bf16.mxu0 0
    %814 = vmatpush1.bf16.msra.mxu0 0
    %815 = vmatprep.subr.bf16.mxu0 0
    %816 = vmatpush1.bf16.msra.mxu0 0
    %817 = vmatprep.subr.bf16.mxu0 0
    %818 = vmatpush1.bf16.msra.mxu0 0
    %819 = vmatprep.subr.bf16.mxu0 0
    %820 = vmatpush1.bf16.msra.mxu0 0
    %821 = vmatprep.subr.bf16.mxu0 0
    %822 = vmatpush1.bf16.msra.mxu0 0
    %823 = vmatprep.subr.bf16.mxu0 0
    %824 = vmatpush1.bf16.msra.mxu0 0
    %825 = vmatprep.subr.bf16.mxu0 0
    %826 = vmatpush1.bf16.msra.mxu0 0
    %827 = vmatprep.subr.bf16.mxu0 0
    %828 = vmatpush1.bf16.msra.mxu0 0
    %829 = vmatprep.subr.bf16.mxu0 0
    %830 = vmatpush1.bf16.msra.mxu0 0
    %831 = vmatprep.subr.bf16.mxu0 0
    %832 = vmatpush1.bf16.msra.mxu0 0
    %833 = vmatprep.subr.bf16.mxu0 0
    %834 = vmatpush1.bf16.msra.mxu0 0
    %835 = vmatprep.mubr.bf16.mxu0 0
    %836 = vmatmul.mubr.bf16.gmra.mrb[0].mxu0 %v777
    %v837 = vpop.f32.mrb[0].mxu0
    %v838 = vadd.f32 0.0, %v837
    %v839 = vpop.f32.mrb[0].mxu0
    %v840 = vadd.f32 0.0, %v839
    %v841 = vpop.f32.mrb[0].mxu0
    %v842 = vadd.f32 0.0, %v841
    %v843 = vpop.f32.mrb[0].mxu0
    %v844 = vadd.f32 0.0, %v843
    %845 = vdwg.mxu0
    %846 = vmatprep.subr.bf16.mxu0 %v789
    %847 = vmatpush1.bf16.msra.mxu0 %v786
    %848 = vmatprep.subr.bf16.mxu0 0
    %849 = vmatpush1.bf16.msra.mxu0 0
    %850 = vmatprep.subr.bf16.mxu0 0
    %851 = vmatpush1.bf16.msra.mxu0 0
    %852 = vmatprep.subr.bf16.mxu0 0
    %853 = vmatpush1.bf16.msra.mxu0 0
    %854 = vmatprep.subr.bf16.mxu0 0
    %855 = vmatpush1.bf16.msra.mxu0 0
    %856 = vmatprep.subr.bf16.mxu0 0
    %857 = vmatpush1.bf16.msra.mxu0 0
    %858 = vmatprep.subr.bf16.mxu0 0
    %859 = vmatpush1.bf16.msra.mxu0 0
    %860 = vmatprep.subr.bf16.mxu0 0
    %861 = vmatpush1.bf16.msra.mxu0 0
    %862 = vmatprep.subr.bf16.mxu0 0
    %863 = vmatpush1.bf16.msra.mxu0 0
    %864 = vmatprep.subr.bf16.mxu0 0
    %865 = vmatpush1.bf16.msra.mxu0 0
    %866 = vmatprep.subr.bf16.mxu0 0
    %867 = vmatpush1.bf16.msra.mxu0 0
    %868 = vmatprep.subr.bf16.mxu0 0
    %869 = vmatpush1.bf16.msra.mxu0 0
    %870 = vmatprep.subr.bf16.mxu0 0
    %871 = vmatpush1.bf16.msra.mxu0 0
    %872 = vmatprep.subr.bf16.mxu0 0
    %873 = vmatpush1.bf16.msra.mxu0 0
    %874 = vmatprep.subr.bf16.mxu0 0
    %875 = vmatpush1.bf16.msra.mxu0 0
    %876 = vmatprep.subr.bf16.mxu0 0
    %877 = vmatpush1.bf16.msra.mxu0 0
    %878 = vmatprep.mubr.bf16.mxu0 0
    %879 = vmatmul.mubr.bf16.gmra.mrb[0].mxu0 %v777
    %v880 = vpop.f32.mrb[0].mxu0
    %v881 = vadd.f32 0.0, %v880
    %v882 = vpop.f32.mrb[0].mxu0
    %v883 = vadd.f32 0.0, %v882
    %v884 = vpop.f32.mrb[0].mxu0
    %v885 = vadd.f32 0.0, %v884
    %v886 = vpop.f32.mrb[0].mxu0
    %v887 = vadd.f32 0.0, %v886
    %888 = vdwg.mxu0
    %889 = vmatprep.subr.bf16.mxu0 %v795
    %890 = vmatpush1.bf16.msra.mxu0 %v792
    %891 = vmatprep.subr.bf16.mxu0 0
    %892 = vmatpush1.bf16.msra.mxu0 0
    %893 = vmatprep.subr.bf16.mxu0 0
    %894 = vmatpush1.bf16.msra.mxu0 0
    %895 = vmatprep.subr.bf16.mxu0 0
    %896 = vmatpush1.bf16.msra.mxu0 0
    %897 = vmatprep.subr.bf16.mxu0 0
    %898 = vmatpush1.bf16.msra.mxu0 0
    %899 = vmatprep.subr.bf16.mxu0 0
    %900 = vmatpush1.bf16.msra.mxu0 0
    %901 = vmatprep.subr.bf16.mxu0 0
    %902 = vmatpush1.bf16.msra.mxu0 0
    %903 = vmatprep.subr.bf16.mxu0 0
    %904 = vmatpush1.bf16.msra.mxu0 0
    %905 = vmatprep.subr.bf16.mxu0 0
    %906 = vmatpush1.bf16.msra.mxu0 0
    %907 = vmatprep.subr.bf16.mxu0 0
    %908 = vmatpush1.bf16.msra.mxu0 0
    %909 = vmatprep.subr.bf16.mxu0 0
    %910 = vmatpush1.bf16.msra.mxu0 0
    %911 = vmatprep.subr.bf16.mxu0 0
    %912 = vmatpush1.bf16.msra.mxu0 0
    %913 = vmatprep.subr.bf16.mxu0 0
    %914 = vmatpush1.bf16.msra.mxu0 0
    %915 = vmatprep.subr.bf16.mxu0 0
    %916 = vmatpush1.bf16.msra.mxu0 0
    %917 = vmatprep.subr.bf16.mxu0 0
    %918 = vmatpush1.bf16.msra.mxu0 0
    %919 = vmatprep.subr.bf16.mxu0 0
    %920 = vmatpush1.bf16.msra.mxu0 0
    %921 = vmatprep.mubr.bf16.mxu0 0
    %922 = vmatmul.mubr.bf16.gmra.mrb[0].mxu0 %v777
    %v923 = vpop.f32.mrb[0].mxu0
    %v924 = vadd.f32 0.0, %v923
    %v925 = vpop.f32.mrb[0].mxu0
    %v926 = vadd.f32 0.0, %v925
    %v927 = vpop.f32.mrb[0].mxu0
    %v928 = vadd.f32 0.0, %v927
    %v929 = vpop.f32.mrb[0].mxu0
    %v930 = vadd.f32 0.0, %v929
    %931 = vdwg.mxu0
    %932 = vmatprep.subr.bf16.mxu0 %v801
    %933 = vmatpush1.bf16.msra.mxu0 %v798
    %934 = vmatprep.subr.bf16.mxu0 0
    %935 = vmatpush1.bf16.msra.mxu0 0
    %936 = vmatprep.subr.bf16.mxu0 0
    %937 = vmatpush1.bf16.msra.mxu0 0
    %938 = vmatprep.subr.bf16.mxu0 0
    %939 = vmatpush1.bf16.msra.mxu0 0
    %940 = vmatprep.subr.bf16.mxu0 0
    %941 = vmatpush1.bf16.msra.mxu0 0
    %942 = vmatprep.subr.bf16.mxu0 0
    %943 = vmatpush1.bf16.msra.mxu0 0
    %944 = vmatprep.subr.bf16.mxu0 0
    %945 = vmatpush1.bf16.msra.mxu0 0
    %946 = vmatprep.subr.bf16.mxu0 0
    %947 = vmatpush1.bf16.msra.mxu0 0
    %948 = vmatprep.subr.bf16.mxu0 0
    %949 = vmatpush1.bf16.msra.mxu0 0
    %950 = vmatprep.subr.bf16.mxu0 0
    %951 = vmatpush1.bf16.msra.mxu0 0
    %952 = vmatprep.subr.bf16.mxu0 0
    %953 = vmatpush1.bf16.msra.mxu0 0
    %954 = vmatprep.subr.bf16.mxu0 0
    %955 = vmatpush1.bf16.msra.mxu0 0
    %956 = vmatprep.subr.bf16.mxu0 0
    %957 = vmatpush1.bf16.msra.mxu0 0
    %958 = vmatprep.subr.bf16.mxu0 0
    %959 = vmatpush1.bf16.msra.mxu0 0
    %960 = vmatprep.subr.bf16.mxu0 0
    %961 = vmatpush1.bf16.msra.mxu0 0
    %962 = vmatprep.subr.bf16.mxu0 0
    %963 = vmatpush1.bf16.msra.mxu0 0
    %964 = vmatprep.mubr.bf16.mxu0 0
    %965 = vmatmul.mubr.bf16.gmra.mrb[0].mxu0 %v777
    %v966 = vpop.f32.mrb[0].mxu0
    %v967 = vadd.f32 0.0, %v966
    %v968 = vpop.f32.mrb[0].mxu0
    %v969 = vadd.f32 0.0, %v968
    %v970 = vpop.f32.mrb[0].mxu0
    %v971 = vadd.f32 0.0, %v970
    %v972 = vpop.f32.mrb[0].mxu0
    %v973 = vadd.f32 0.0, %v972
    %974 = vdwg.mxu0
    %v975 = vmax.f32 %v838, 0.0
    %v976 = vmax.f32 %v840, 0.0
    %v977 = vmax.f32 %v881, 0.0
    %v978 = vmax.f32 %v883, 0.0
    %v979 = vmax.f32 %v924, 0.0
    %v980 = vmax.f32 %v926, 0.0
    %v981 = vmax.f32 %v967, 0.0
    %v982 = vmax.f32 %v969, 0.0
    %v983 = vmax.f32 %v842, 0.0
    %v984 = vmax.f32 %v844, 0.0
    %v985 = vmax.f32 %v885, 0.0
    %v986 = vmax.f32 %v887, 0.0
    %v987 = vmax.f32 %v928, 0.0
    %v988 = vmax.f32 %v930, 0.0
    %v989 = vmax.f32 %v971, 0.0
    %v990 = vmax.f32 %v973, 0.0
    %v991 = vpack.c.bf16 %v983, %v975
    %v992 = vpack.c.bf16 %v984, %v976
    %v993 = vpack.c.bf16 %v985, %v977
    %v994 = vpack.c.bf16 %v986, %v978
    %v995 = vpack.c.bf16 %v987, %v979
    %v996 = vpack.c.bf16 %v988, %v980
    %v997 = vpack.c.bf16 %v989, %v981
    %v998 = vpack.c.bf16 %v990, %v982
    %v999 = vld [vmem:[#allocation2] sm:$0xff]
    %v1000 = vld [vmem:[#allocation2 + $0x8] sm:$0xff]
    %v1001 = vld [vmem:[#allocation2 + $0x10] sm:$0xff]
    %v1002 = vld [vmem:[#allocation2 + $0x18] sm:$0xff]
    %v1003 = vld [vmem:[#allocation2 + $0x20] sm:$0xff]
    %v1004 = vld [vmem:[#allocation2 + $0x28] sm:$0xff]
    %v1005 = vld [vmem:[#allocation2 + $0x30] sm:$0xff]
    %v1006 = vld [vmem:[#allocation2 + $0x38] sm:$0xff]
    %v1007 = vld [vmem:[#allocation2 + $0x40] sm:$0xff]
    %v1008 = vld [vmem:[#allocation2 + $0x48] sm:$0xff]
    %v1009 = vld [vmem:[#allocation2 + $0x50] sm:$0xff]
    %v1010 = vld [vmem:[#allocation2 + $0x58] sm:$0xff]
    %v1011 = vld [vmem:[#allocation2 + $0x60] sm:$0xff]
    %v1012 = vld [vmem:[#allocation2 + $0x68] sm:$0xff]
    %v1013 = vld [vmem:[#allocation2 + $0x70] sm:$0xff]
    %v1014 = vld [vmem:[#allocation2 + $0x78] sm:$0xff]
    %v1015 = vld [vmem:[#allocation2 + $0x80] sm:$0xff]
    %v1016 = vld [vmem:[#allocation2 + $0x88] sm:$0xff]
    %v1017 = vld [vmem:[#allocation2 + $0x90] sm:$0xff]
    %v1018 = vld [vmem:[#allocation2 + $0x98] sm:$0xff]
    %v1019 = vld [vmem:[#allocation2 + $0xa0] sm:$0xff]
    %v1020 = vld [vmem:[#allocation2 + $0xa8] sm:$0xff]
    %v1021 = vld [vmem:[#allocation2 + $0xb0] sm:$0xff]
    %v1022 = vld [vmem:[#allocation2 + $0xb8] sm:$0xff]
    %v1023 = vld [vmem:[#allocation2 + $0xc0] sm:$0xff]
    %v1024 = vld [vmem:[#allocation2 + $0xc8] sm:$0xff]
    %v1025 = vld [vmem:[#allocation2 + $0xd0] sm:$0xff]
    %v1026 = vld [vmem:[#allocation2 + $0xd8] sm:$0xff]
    %v1027 = vld [vmem:[#allocation2 + $0xe0] sm:$0xff]
    %v1028 = vld [vmem:[#allocation2 + $0xe8] sm:$0xff]
    %v1029 = vld [vmem:[#allocation2 + $0xf0] sm:$0xff]
    %v1030 = vld [vmem:[#allocation2 + $0xf8] sm:$0xff]
    %v1031 = vld [vmem:[#allocation2 + $0x100] sm:$0xff]
    %v1032 = vld [vmem:[#allocation2 + $0x108] sm:$0xff]
    %v1033 = vld [vmem:[#allocation2 + $0x110] sm:$0xff]
    %v1034 = vld [vmem:[#allocation2 + $0x118] sm:$0xff]
    %v1035 = vld [vmem:[#allocation2 + $0x120] sm:$0xff]
    %v1036 = vld [vmem:[#allocation2 + $0x128] sm:$0xff]
    %v1037 = vld [vmem:[#allocation2 + $0x130] sm:$0xff]
    %v1038 = vld [vmem:[#allocation2 + $0x138] sm:$0xff]
    %v1039 = vld [vmem:[#allocation2 + $0x140] sm:$0xff]
    %v1040 = vld [vmem:[#allocation2 + $0x148] sm:$0xff]
    %v1041 = vld [vmem:[#allocation2 + $0x150] sm:$0xff]
    %v1042 = vld [vmem:[#allocation2 + $0x158] sm:$0xff]
    %v1043 = vld [vmem:[#allocation2 + $0x160] sm:$0xff]
    %v1044 = vld [vmem:[#allocation2 + $0x168] sm:$0xff]
    %v1045 = vld [vmem:[#allocation2 + $0x170] sm:$0xff]
    %v1046 = vld [vmem:[#allocation2 + $0x178] sm:$0xff]
    %v1047 = vld [vmem:[#allocation2 + $0x180] sm:$0xff]
    %v1048 = vld [vmem:[#allocation2 + $0x188] sm:$0xff]
    %v1049 = vld [vmem:[#allocation2 + $0x190] sm:$0xff]
    %v1050 = vld [vmem:[#allocation2 + $0x198] sm:$0xff]
    %v1051 = vld [vmem:[#allocation2 + $0x1a0] sm:$0xff]
    %v1052 = vld [vmem:[#allocation2 + $0x1a8] sm:$0xff]
    %v1053 = vld [vmem:[#allocation2 + $0x1b0] sm:$0xff]
    %v1054 = vld [vmem:[#allocation2 + $0x1b8] sm:$0xff]
    %v1055 = vld [vmem:[#allocation2 + $0x1c0] sm:$0xff]
    %v1056 = vld [vmem:[#allocation2 + $0x1c8] sm:$0xff]
    %v1057 = vld [vmem:[#allocation2 + $0x1d0] sm:$0xff]
    %v1058 = vld [vmem:[#allocation2 + $0x1d8] sm:$0xff]
    %v1059 = vld [vmem:[#allocation2 + $0x1e0] sm:$0xff]
    %v1060 = vld [vmem:[#allocation2 + $0x1e8] sm:$0xff]
    %v1061 = vld [vmem:[#allocation2 + $0x1f0] sm:$0xff]
    %v1062 = vld [vmem:[#allocation2 + $0x1f8] sm:$0xff]
    %v1063 = vld [vmem:[#allocation2 + $0x200] sm:$0xff]
    %v1064 = vld [vmem:[#allocation2 + $0x208] sm:$0xff]
    %v1065 = vld [vmem:[#allocation2 + $0x210] sm:$0xff]
    %v1066 = vld [vmem:[#allocation2 + $0x218] sm:$0xff]
    %v1067 = vld [vmem:[#allocation2 + $0x220] sm:$0xff]
    %v1068 = vld [vmem:[#allocation2 + $0x228] sm:$0xff]
    %v1069 = vld [vmem:[#allocation2 + $0x230] sm:$0xff]
    %v1070 = vld [vmem:[#allocation2 + $0x238] sm:$0xff]
    %v1071 = vld [vmem:[#allocation2 + $0x240] sm:$0xff]
    %v1072 = vld [vmem:[#allocation2 + $0x248] sm:$0xff]
    %v1073 = vld [vmem:[#allocation2 + $0x250] sm:$0xff]
    %v1074 = vld [vmem:[#allocation2 + $0x258] sm:$0xff]
    %v1075 = vld [vmem:[#allocation2 + $0x260] sm:$0xff]
    %v1076 = vld [vmem:[#allocation2 + $0x268] sm:$0xff]
    %v1077 = vld [vmem:[#allocation2 + $0x270] sm:$0xff]
    %v1078 = vld [vmem:[#allocation2 + $0x278] sm:$0xff]
    %v1079 = vld [vmem:[#allocation2 + $0x280] sm:$0xff]
    %v1080 = vld [vmem:[#allocation2 + $0x288] sm:$0xff]
    %v1081 = vld [vmem:[#allocation2 + $0x290] sm:$0xff]
    %v1082 = vld [vmem:[#allocation2 + $0x298] sm:$0xff]
    %v1083 = vld [vmem:[#allocation2 + $0x2a0] sm:$0xff]
    %v1084 = vld [vmem:[#allocation2 + $0x2a8] sm:$0xff]
    %v1085 = vld [vmem:[#allocation2 + $0x2b0] sm:$0xff]
    %v1086 = vld [vmem:[#allocation2 + $0x2b8] sm:$0xff]
    %v1087 = vld [vmem:[#allocation2 + $0x2c0] sm:$0xff]
    %v1088 = vld [vmem:[#allocation2 + $0x2c8] sm:$0xff]
    %v1089 = vld [vmem:[#allocation2 + $0x2d0] sm:$0xff]
    %v1090 = vld [vmem:[#allocation2 + $0x2d8] sm:$0xff]
    %v1091 = vld [vmem:[#allocation2 + $0x2e0] sm:$0xff]
    %v1092 = vld [vmem:[#allocation2 + $0x2e8] sm:$0xff]
    %v1093 = vld [vmem:[#allocation2 + $0x2f0] sm:$0xff]
    %v1094 = vld [vmem:[#allocation2 + $0x2f8] sm:$0xff]
    %v1095 = vld [vmem:[#allocation2 + $0x300] sm:$0xff]
    %v1096 = vld [vmem:[#allocation2 + $0x308] sm:$0xff]
    %v1097 = vld [vmem:[#allocation2 + $0x310] sm:$0xff]
    %v1098 = vld [vmem:[#allocation2 + $0x318] sm:$0xff]
    %v1099 = vld [vmem:[#allocation2 + $0x320] sm:$0xff]
    %v1100 = vld [vmem:[#allocation2 + $0x328] sm:$0xff]
    %v1101 = vld [vmem:[#allocation2 + $0x330] sm:$0xff]
    %v1102 = vld [vmem:[#allocation2 + $0x338] sm:$0xff]
    %v1103 = vld [vmem:[#allocation2 + $0x340] sm:$0xff]
    %v1104 = vld [vmem:[#allocation2 + $0x348] sm:$0xff]
    %v1105 = vld [vmem:[#allocation2 + $0x350] sm:$0xff]
    %v1106 = vld [vmem:[#allocation2 + $0x358] sm:$0xff]
    %v1107 = vld [vmem:[#allocation2 + $0x360] sm:$0xff]
    %v1108 = vld [vmem:[#allocation2 + $0x368] sm:$0xff]
    %v1109 = vld [vmem:[#allocation2 + $0x370] sm:$0xff]
    %v1110 = vld [vmem:[#allocation2 + $0x378] sm:$0xff]
    %v1111 = vld [vmem:[#allocation2 + $0x380] sm:$0xff]
    %v1112 = vld [vmem:[#allocation2 + $0x388] sm:$0xff]
    %v1113 = vld [vmem:[#allocation2 + $0x390] sm:$0xff]
    %v1114 = vld [vmem:[#allocation2 + $0x398] sm:$0xff]
    %v1115 = vld [vmem:[#allocation2 + $0x3a0] sm:$0xff]
    %v1116 = vld [vmem:[#allocation2 + $0x3a8] sm:$0xff]
    %v1117 = vld [vmem:[#allocation2 + $0x3b0] sm:$0xff]
    %v1118 = vld [vmem:[#allocation2 + $0x3b8] sm:$0xff]
    %v1119 = vld [vmem:[#allocation2 + $0x3c0] sm:$0xff]
    %v1120 = vld [vmem:[#allocation2 + $0x3c8] sm:$0xff]
    %v1121 = vld [vmem:[#allocation2 + $0x3d0] sm:$0xff]
    %v1122 = vld [vmem:[#allocation2 + $0x3d8] sm:$0xff]
    %v1123 = vld [vmem:[#allocation2 + $0x3e0] sm:$0xff]
    %v1124 = vld [vmem:[#allocation2 + $0x3e8] sm:$0xff]
    %v1125 = vld [vmem:[#allocation2 + $0x3f0] sm:$0xff]
    %v1126 = vld [vmem:[#allocation2 + $0x3f8] sm:$0xff]
    %v1255 = vunpack.c.l.b16 %v999
    %v1256 = vunpack.c.h.b16 %v999
    %v1257 = vunpack.c.l.b16 %v1000
    %v1258 = vunpack.c.h.b16 %v1000
    %v1259 = vunpack.c.l.b16 %v1001
    %v1260 = vunpack.c.h.b16 %v1001
    %v1261 = vunpack.c.l.b16 %v1002
    %v1262 = vunpack.c.h.b16 %v1002
    %v1263 = vunpack.c.l.b16 %v1003
    %v1264 = vunpack.c.h.b16 %v1003
    %v1265 = vunpack.c.l.b16 %v1004
    %v1266 = vunpack.c.h.b16 %v1004
    %v1267 = vunpack.c.l.b16 %v1005
    %v1268 = vunpack.c.h.b16 %v1005
    %v1269 = vunpack.c.l.b16 %v1006
    %v1270 = vunpack.c.h.b16 %v1006
    %v1271 = vunpack.c.l.b16 %v1007
    %v1272 = vunpack.c.h.b16 %v1007
    %v1273 = vunpack.c.l.b16 %v1008
    %v1274 = vunpack.c.h.b16 %v1008
    %v1275 = vunpack.c.l.b16 %v1009
    %v1276 = vunpack.c.h.b16 %v1009
    %v1277 = vunpack.c.l.b16 %v1010
    %v1278 = vunpack.c.h.b16 %v1010
    %v1279 = vunpack.c.l.b16 %v1011
    %v1280 = vunpack.c.h.b16 %v1011
    %v1281 = vunpack.c.l.b16 %v1012
    %v1282 = vunpack.c.h.b16 %v1012
    %v1283 = vunpack.c.l.b16 %v1013
    %v1284 = vunpack.c.h.b16 %v1013
    %v1285 = vunpack.c.l.b16 %v1014
    %v1286 = vunpack.c.h.b16 %v1014
    %v1287 = vunpack.c.l.b16 %v1015
    %v1288 = vunpack.c.h.b16 %v1015
    %v1289 = vunpack.c.l.b16 %v1016
    %v1290 = vunpack.c.h.b16 %v1016
    %v1291 = vunpack.c.l.b16 %v1017
    %v1292 = vunpack.c.h.b16 %v1017
    %v1293 = vunpack.c.l.b16 %v1018
    %v1294 = vunpack.c.h.b16 %v1018
    %v1295 = vunpack.c.l.b16 %v1019
    %v1296 = vunpack.c.h.b16 %v1019
    %v1297 = vunpack.c.l.b16 %v1020
    %v1298 = vunpack.c.h.b16 %v1020
    %v1299 = vunpack.c.l.b16 %v1021
    %v1300 = vunpack.c.h.b16 %v1021
    %v1301 = vunpack.c.l.b16 %v1022
    %v1302 = vunpack.c.h.b16 %v1022
    %v1303 = vunpack.c.l.b16 %v1023
    %v1304 = vunpack.c.h.b16 %v1023
    %v1305 = vunpack.c.l.b16 %v1024
    %v1306 = vunpack.c.h.b16 %v1024
    %v1307 = vunpack.c.l.b16 %v1025
    %v1308 = vunpack.c.h.b16 %v1025
    %v1309 = vunpack.c.l.b16 %v1026
    %v1310 = vunpack.c.h.b16 %v1026
    %v1311 = vunpack.c.l.b16 %v1027
    %v1312 = vunpack.c.h.b16 %v1027
    %v1313 = vunpack.c.l.b16 %v1028
    %v1314 = vunpack.c.h.b16 %v1028
    %v1315 = vunpack.c.l.b16 %v1029
    %v1316 = vunpack.c.h.b16 %v1029
    %v1317 = vunpack.c.l.b16 %v1030
    %v1318 = vunpack.c.h.b16 %v1030
    %v1319 = vunpack.c.l.b16 %v1031
    %v1320 = vunpack.c.h.b16 %v1031
    %v1321 = vunpack.c.l.b16 %v1032
    %v1322 = vunpack.c.h.b16 %v1032
    %v1323 = vunpack.c.l.b16 %v1033
    %v1324 = vunpack.c.h.b16 %v1033
    %v1325 = vunpack.c.l.b16 %v1034
    %v1326 = vunpack.c.h.b16 %v1034
    %v1327 = vunpack.c.l.b16 %v1035
    %v1328 = vunpack.c.h.b16 %v1035
    %v1329 = vunpack.c.l.b16 %v1036
    %v1330 = vunpack.c.h.b16 %v1036
    %v1331 = vunpack.c.l.b16 %v1037
    %v1332 = vunpack.c.h.b16 %v1037
    %v1333 = vunpack.c.l.b16 %v1038
    %v1334 = vunpack.c.h.b16 %v1038
    %v1335 = vunpack.c.l.b16 %v1039
    %v1336 = vunpack.c.h.b16 %v1039
    %v1337 = vunpack.c.l.b16 %v1040
    %v1338 = vunpack.c.h.b16 %v1040
    %v1339 = vunpack.c.l.b16 %v1041
    %v1340 = vunpack.c.h.b16 %v1041
    %v1341 = vunpack.c.l.b16 %v1042
    %v1342 = vunpack.c.h.b16 %v1042
    %v1343 = vunpack.c.l.b16 %v1043
    %v1344 = vunpack.c.h.b16 %v1043
    %v1345 = vunpack.c.l.b16 %v1044
    %v1346 = vunpack.c.h.b16 %v1044
    %v1347 = vunpack.c.l.b16 %v1045
    %v1348 = vunpack.c.h.b16 %v1045
    %v1349 = vunpack.c.l.b16 %v1046
    %v1350 = vunpack.c.h.b16 %v1046
    %v1351 = vunpack.c.l.b16 %v1047
    %v1352 = vunpack.c.h.b16 %v1047
    %v1353 = vunpack.c.l.b16 %v1048
    %v1354 = vunpack.c.h.b16 %v1048
    %v1355 = vunpack.c.l.b16 %v1049
    %v1356 = vunpack.c.h.b16 %v1049
    %v1357 = vunpack.c.l.b16 %v1050
    %v1358 = vunpack.c.h.b16 %v1050
    %v1359 = vunpack.c.l.b16 %v1051
    %v1360 = vunpack.c.h.b16 %v1051
    %v1361 = vunpack.c.l.b16 %v1052
    %v1362 = vunpack.c.h.b16 %v1052
    %v1363 = vunpack.c.l.b16 %v1053
    %v1364 = vunpack.c.h.b16 %v1053
    %v1365 = vunpack.c.l.b16 %v1054
    %v1366 = vunpack.c.h.b16 %v1054
    %v1367 = vunpack.c.l.b16 %v1055
    %v1368 = vunpack.c.h.b16 %v1055
    %v1369 = vunpack.c.l.b16 %v1056
    %v1370 = vunpack.c.h.b16 %v1056
    %v1371 = vunpack.c.l.b16 %v1057
    %v1372 = vunpack.c.h.b16 %v1057
    %v1373 = vunpack.c.l.b16 %v1058
    %v1374 = vunpack.c.h.b16 %v1058
    %v1375 = vunpack.c.l.b16 %v1059
    %v1376 = vunpack.c.h.b16 %v1059
    %v1377 = vunpack.c.l.b16 %v1060
    %v1378 = vunpack.c.h.b16 %v1060
    %v1379 = vunpack.c.l.b16 %v1061
    %v1380 = vunpack.c.h.b16 %v1061
    %v1381 = vunpack.c.l.b16 %v1062
    %v1382 = vunpack.c.h.b16 %v1062
    %v1383 = vunpack.c.l.b16 %v1063
    %v1384 = vunpack.c.h.b16 %v1063
    %v1385 = vunpack.c.l.b16 %v1064
    %v1386 = vunpack.c.h.b16 %v1064
    %v1387 = vunpack.c.l.b16 %v1065
    %v1388 = vunpack.c.h.b16 %v1065
    %v1389 = vunpack.c.l.b16 %v1066
    %v1390 = vunpack.c.h.b16 %v1066
    %v1391 = vunpack.c.l.b16 %v1067
    %v1392 = vunpack.c.h.b16 %v1067
    %v1393 = vunpack.c.l.b16 %v1068
    %v1394 = vunpack.c.h.b16 %v1068
    %v1395 = vunpack.c.l.b16 %v1069
    %v1396 = vunpack.c.h.b16 %v1069
    %v1397 = vunpack.c.l.b16 %v1070
    %v1398 = vunpack.c.h.b16 %v1070
    %v1399 = vunpack.c.l.b16 %v1071
    %v1400 = vunpack.c.h.b16 %v1071
    %v1401 = vunpack.c.l.b16 %v1072
    %v1402 = vunpack.c.h.b16 %v1072
    %v1403 = vunpack.c.l.b16 %v1073
    %v1404 = vunpack.c.h.b16 %v1073
    %v1405 = vunpack.c.l.b16 %v1074
    %v1406 = vunpack.c.h.b16 %v1074
    %v1407 = vunpack.c.l.b16 %v1075
    %v1408 = vunpack.c.h.b16 %v1075
    %v1409 = vunpack.c.l.b16 %v1076
    %v1410 = vunpack.c.h.b16 %v1076
    %v1411 = vunpack.c.l.b16 %v1077
    %v1412 = vunpack.c.h.b16 %v1077
    %v1413 = vunpack.c.l.b16 %v1078
    %v1414 = vunpack.c.h.b16 %v1078
    %v1415 = vunpack.c.l.b16 %v1079
    %v1416 = vunpack.c.h.b16 %v1079
    %v1417 = vunpack.c.l.b16 %v1080
    %v1418 = vunpack.c.h.b16 %v1080
    %v1419 = vunpack.c.l.b16 %v1081
    %v1420 = vunpack.c.h.b16 %v1081
    %v1421 = vunpack.c.l.b16 %v1082
    %v1422 = vunpack.c.h.b16 %v1082
    %v1423 = vunpack.c.l.b16 %v1083
    %v1424 = vunpack.c.h.b16 %v1083
    %v1425 = vunpack.c.l.b16 %v1084
    %v1426 = vunpack.c.h.b16 %v1084
    %v1427 = vunpack.c.l.b16 %v1085
    %v1428 = vunpack.c.h.b16 %v1085
    %v1429 = vunpack.c.l.b16 %v1086
    %v1430 = vunpack.c.h.b16 %v1086
    %v1431 = vunpack.c.l.b16 %v1087
    %v1432 = vunpack.c.h.b16 %v1087
    %v1433 = vunpack.c.l.b16 %v1088
    %v1434 = vunpack.c.h.b16 %v1088
    %v1435 = vunpack.c.l.b16 %v1089
    %v1436 = vunpack.c.h.b16 %v1089
    %v1437 = vunpack.c.l.b16 %v1090
    %v1438 = vunpack.c.h.b16 %v1090
    %v1439 = vunpack.c.l.b16 %v1091
    %v1440 = vunpack.c.h.b16 %v1091
    %v1441 = vunpack.c.l.b16 %v1092
    %v1442 = vunpack.c.h.b16 %v1092
    %v1443 = vunpack.c.l.b16 %v1093
    %v1444 = vunpack.c.h.b16 %v1093
    %v1445 = vunpack.c.l.b16 %v1094
    %v1446 = vunpack.c.h.b16 %v1094
    %v1447 = vunpack.c.l.b16 %v1095
    %v1448 = vunpack.c.h.b16 %v1095
    %v1449 = vunpack.c.l.b16 %v1096
    %v1450 = vunpack.c.h.b16 %v1096
    %v1451 = vunpack.c.l.b16 %v1097
    %v1452 = vunpack.c.h.b16 %v1097
    %v1453 = vunpack.c.l.b16 %v1098
    %v1454 = vunpack.c.h.b16 %v1098
    %v1455 = vunpack.c.l.b16 %v1099
    %v1456 = vunpack.c.h.b16 %v1099
    %v1457 = vunpack.c.l.b16 %v1100
    %v1458 = vunpack.c.h.b16 %v1100
    %v1459 = vunpack.c.l.b16 %v1101
    %v1460 = vunpack.c.h.b16 %v1101
    %v1461 = vunpack.c.l.b16 %v1102
    %v1462 = vunpack.c.h.b16 %v1102
    %v1463 = vunpack.c.l.b16 %v1103
    %v1464 = vunpack.c.h.b16 %v1103
    %v1465 = vunpack.c.l.b16 %v1104
    %v1466 = vunpack.c.h.b16 %v1104
    %v1467 = vunpack.c.l.b16 %v1105
    %v1468 = vunpack.c.h.b16 %v1105
    %v1469 = vunpack.c.l.b16 %v1106
    %v1470 = vunpack.c.h.b16 %v1106
    %v1471 = vunpack.c.l.b16 %v1107
    %v1472 = vunpack.c.h.b16 %v1107
    %v1473 = vunpack.c.l.b16 %v1108
    %v1474 = vunpack.c.h.b16 %v1108
    %v1475 = vunpack.c.l.b16 %v1109
    %v1476 = vunpack.c.h.b16 %v1109
    %v1477 = vunpack.c.l.b16 %v1110
    %v1478 = vunpack.c.h.b16 %v1110
    %v1479 = vunpack.c.l.b16 %v1111
    %v1480 = vunpack.c.h.b16 %v1111
    %v1481 = vunpack.c.l.b16 %v1112
    %v1482 = vunpack.c.h.b16 %v1112
    %v1483 = vunpack.c.l.b16 %v1113
    %v1484 = vunpack.c.h.b16 %v1113
    %v1485 = vunpack.c.l.b16 %v1114
    %v1486 = vunpack.c.h.b16 %v1114
    %v1487 = vunpack.c.l.b16 %v1115
    %v1488 = vunpack.c.h.b16 %v1115
    %v1489 = vunpack.c.l.b16 %v1116
    %v1490 = vunpack.c.h.b16 %v1116
    %v1491 = vunpack.c.l.b16 %v1117
    %v1492 = vunpack.c.h.b16 %v1117
    %v1493 = vunpack.c.l.b16 %v1118
    %v1494 = vunpack.c.h.b16 %v1118
    %v1495 = vunpack.c.l.b16 %v1119
    %v1496 = vunpack.c.h.b16 %v1119
    %v1497 = vunpack.c.l.b16 %v1120
    %v1498 = vunpack.c.h.b16 %v1120
    %v1499 = vunpack.c.l.b16 %v1121
    %v1500 = vunpack.c.h.b16 %v1121
    %v1501 = vunpack.c.l.b16 %v1122
    %v1502 = vunpack.c.h.b16 %v1122
    %v1503 = vunpack.c.l.b16 %v1123
    %v1504 = vunpack.c.h.b16 %v1123
    %v1505 = vunpack.c.l.b16 %v1124
    %v1506 = vunpack.c.h.b16 %v1124
    %v1507 = vunpack.c.l.b16 %v1125
    %v1508 = vunpack.c.h.b16 %v1125
    %v1509 = vunpack.c.l.b16 %v1126
    %v1510 = vunpack.c.h.b16 %v1126
    %v1511 = vpack.c.b16 %v1257, %v1255
    %v1512 = vpack.c.b16 %v1258, %v1256
    %v1513 = vpack.c.b16 %v1261, %v1259
    %v1514 = vpack.c.b16 %v1262, %v1260
    %v1515 = vpack.c.b16 %v1265, %v1263
    %v1516 = vpack.c.b16 %v1266, %v1264
    %v1517 = vpack.c.b16 %v1269, %v1267
    %v1518 = vpack.c.b16 %v1270, %v1268
    %v1519 = vpack.c.b16 %v1273, %v1271
    %v1520 = vpack.c.b16 %v1274, %v1272
    %v1521 = vpack.c.b16 %v1277, %v1275
    %v1522 = vpack.c.b16 %v1278, %v1276
    %v1523 = vpack.c.b16 %v1281, %v1279
    %v1524 = vpack.c.b16 %v1282, %v1280
    %v1525 = vpack.c.b16 %v1285, %v1283
    %v1526 = vpack.c.b16 %v1286, %v1284
    %v1527 = vpack.c.b16 %v1289, %v1287
    %v1528 = vpack.c.b16 %v1290, %v1288
    %v1529 = vpack.c.b16 %v1293, %v1291
    %v1530 = vpack.c.b16 %v1294, %v1292
    %v1531 = vpack.c.b16 %v1297, %v1295
    %v1532 = vpack.c.b16 %v1298, %v1296
    %v1533 = vpack.c.b16 %v1301, %v1299
    %v1534 = vpack.c.b16 %v1302, %v1300
    %v1535 = vpack.c.b16 %v1305, %v1303
    %v1536 = vpack.c.b16 %v1306, %v1304
    %v1537 = vpack.c.b16 %v1309, %v1307
    %v1538 = vpack.c.b16 %v1310, %v1308
    %v1539 = vpack.c.b16 %v1313, %v1311
    %v1540 = vpack.c.b16 %v1314, %v1312
    %v1541 = vpack.c.b16 %v1317, %v1315
    %v1542 = vpack.c.b16 %v1318, %v1316
    %v1543 = vpack.c.b16 %v1321, %v1319
    %v1544 = vpack.c.b16 %v1322, %v1320
    %v1545 = vpack.c.b16 %v1325, %v1323
    %v1546 = vpack.c.b16 %v1326, %v1324
    %v1547 = vpack.c.b16 %v1329, %v1327
    %v1548 = vpack.c.b16 %v1330, %v1328
    %v1549 = vpack.c.b16 %v1333, %v1331
    %v1550 = vpack.c.b16 %v1334, %v1332
    %v1551 = vpack.c.b16 %v1337, %v1335
    %v1552 = vpack.c.b16 %v1338, %v1336
    %v1553 = vpack.c.b16 %v1341, %v1339
    %v1554 = vpack.c.b16 %v1342, %v1340
    %v1555 = vpack.c.b16 %v1345, %v1343
    %v1556 = vpack.c.b16 %v1346, %v1344
    %v1557 = vpack.c.b16 %v1349, %v1347
    %v1558 = vpack.c.b16 %v1350, %v1348
    %v1559 = vpack.c.b16 %v1353, %v1351
    %v1560 = vpack.c.b16 %v1354, %v1352
    %v1561 = vpack.c.b16 %v1357, %v1355
    %v1562 = vpack.c.b16 %v1358, %v1356
    %v1563 = vpack.c.b16 %v1361, %v1359
    %v1564 = vpack.c.b16 %v1362, %v1360
    %v1565 = vpack.c.b16 %v1365, %v1363
    %v1566 = vpack.c.b16 %v1366, %v1364
    %v1567 = vpack.c.b16 %v1369, %v1367
    %v1568 = vpack.c.b16 %v1370, %v1368
    %v1569 = vpack.c.b16 %v1373, %v1371
    %v1570 = vpack.c.b16 %v1374, %v1372
    %v1571 = vpack.c.b16 %v1377, %v1375
    %v1572 = vpack.c.b16 %v1378, %v1376
    %v1573 = vpack.c.b16 %v1381, %v1379
    %v1574 = vpack.c.b16 %v1382, %v1380
    %v1575 = vpack.c.b16 %v1385, %v1383
    %v1576 = vpack.c.b16 %v1386, %v1384
    %v1577 = vpack.c.b16 %v1389, %v1387
    %v1578 = vpack.c.b16 %v1390, %v1388
    %v1579 = vpack.c.b16 %v1393, %v1391
    %v1580 = vpack.c.b16 %v1394, %v1392
    %v1581 = vpack.c.b16 %v1397, %v1395
    %v1582 = vpack.c.b16 %v1398, %v1396
    %v1583 = vpack.c.b16 %v1401, %v1399
    %v1584 = vpack.c.b16 %v1402, %v1400
    %v1585 = vpack.c.b16 %v1405, %v1403
    %v1586 = vpack.c.b16 %v1406, %v1404
    %v1587 = vpack.c.b16 %v1409, %v1407
    %v1588 = vpack.c.b16 %v1410, %v1408
    %v1589 = vpack.c.b16 %v1413, %v1411
    %v1590 = vpack.c.b16 %v1414, %v1412
    %v1591 = vpack.c.b16 %v1417, %v1415
    %v1592 = vpack.c.b16 %v1418, %v1416
    %v1593 = vpack.c.b16 %v1421, %v1419
    %v1594 = vpack.c.b16 %v1422, %v1420
    %v1595 = vpack.c.b16 %v1425, %v1423
    %v1596 = vpack.c.b16 %v1426, %v1424
    %v1597 = vpack.c.b16 %v1429, %v1427
    %v1598 = vpack.c.b16 %v1430, %v1428
    %v1599 = vpack.c.b16 %v1433, %v1431
    %v1600 = vpack.c.b16 %v1434, %v1432
    %v1601 = vpack.c.b16 %v1437, %v1435
    %v1602 = vpack.c.b16 %v1438, %v1436
    %v1603 = vpack.c.b16 %v1441, %v1439
    %v1604 = vpack.c.b16 %v1442, %v1440
    %v1605 = vpack.c.b16 %v1445, %v1443
    %v1606 = vpack.c.b16 %v1446, %v1444
    %v1607 = vpack.c.b16 %v1449, %v1447
    %v1608 = vpack.c.b16 %v1450, %v1448
    %v1609 = vpack.c.b16 %v1453, %v1451
    %v1610 = vpack.c.b16 %v1454, %v1452
    %v1611 = vpack.c.b16 %v1457, %v1455
    %v1612 = vpack.c.b16 %v1458, %v1456
    %v1613 = vpack.c.b16 %v1461, %v1459
    %v1614 = vpack.c.b16 %v1462, %v1460
    %v1615 = vpack.c.b16 %v1465, %v1463
    %v1616 = vpack.c.b16 %v1466, %v1464
    %v1617 = vpack.c.b16 %v1469, %v1467
    %v1618 = vpack.c.b16 %v1470, %v1468
    %v1619 = vpack.c.b16 %v1473, %v1471
    %v1620 = vpack.c.b16 %v1474, %v1472
    %v1621 = vpack.c.b16 %v1477, %v1475
    %v1622 = vpack.c.b16 %v1478, %v1476
    %v1623 = vpack.c.b16 %v1481, %v1479
    %v1624 = vpack.c.b16 %v1482, %v1480
    %v1625 = vpack.c.b16 %v1485, %v1483
    %v1626 = vpack.c.b16 %v1486, %v1484
    %v1627 = vpack.c.b16 %v1489, %v1487
    %v1628 = vpack.c.b16 %v1490, %v1488
    %v1629 = vpack.c.b16 %v1493, %v1491
    %v1630 = vpack.c.b16 %v1494, %v1492
    %v1631 = vpack.c.b16 %v1497, %v1495
    %v1632 = vpack.c.b16 %v1498, %v1496
    %v1633 = vpack.c.b16 %v1501, %v1499
    %v1634 = vpack.c.b16 %v1502, %v1500
    %v1635 = vpack.c.b16 %v1505, %v1503
    %v1636 = vpack.c.b16 %v1506, %v1504
    %v1637 = vpack.c.b16 %v1509, %v1507
    %v1638 = vpack.c.b16 %v1510, %v1508
    %1767 = vmatprep.subr.bf16.mxu0 %v1512
    %1768 = vmatpush1.bf16.msra.mxu0 %v1511
    %1769 = vmatprep.subr.bf16.mxu0 %v1514
    %1770 = vmatpush1.bf16.msra.mxu0 %v1513
    %1771 = vmatprep.subr.bf16.mxu0 %v1516
    %1772 = vmatpush1.bf16.msra.mxu0 %v1515
    %1773 = vmatprep.subr.bf16.mxu0 %v1518
    %1774 = vmatpush1.bf16.msra.mxu0 %v1517
    %1775 = vmatprep.subr.bf16.mxu0 %v1520
    %1776 = vmatpush1.bf16.msra.mxu0 %v1519
    %1777 = vmatprep.subr.bf16.mxu0 %v1522
    %1778 = vmatpush1.bf16.msra.mxu0 %v1521
    %1779 = vmatprep.subr.bf16.mxu0 %v1524
    %1780 = vmatpush1.bf16.msra.mxu0 %v1523
    %1781 = vmatprep.subr.bf16.mxu0 %v1526
    %1782 = vmatpush1.bf16.msra.mxu0 %v1525
    %1783 = vmatprep.subr.bf16.mxu0 %v1528
    %1784 = vmatpush1.bf16.msra.mxu0 %v1527
    %1785 = vmatprep.subr.bf16.mxu0 %v1530
    %1786 = vmatpush1.bf16.msra.mxu0 %v1529
    %1787 = vmatprep.subr.bf16.mxu0 %v1532
    %1788 = vmatpush1.bf16.msra.mxu0 %v1531
    %1789 = vmatprep.subr.bf16.mxu0 %v1534
    %1790 = vmatpush1.bf16.msra.mxu0 %v1533
    %1791 = vmatprep.subr.bf16.mxu0 %v1536
    %1792 = vmatpush1.bf16.msra.mxu0 %v1535
    %1793 = vmatprep.subr.bf16.mxu0 %v1538
    %1794 = vmatpush1.bf16.msra.mxu0 %v1537
    %1795 = vmatprep.subr.bf16.mxu0 %v1540
    %1796 = vmatpush1.bf16.msra.mxu0 %v1539
    %1797 = vmatprep.subr.bf16.mxu0 %v1542
    %1798 = vmatpush1.bf16.msra.mxu0 %v1541
    %1799 = vmatprep.mubr.bf16.mxu0 %v992
    %1800 = vmatmul.mubr.bf16.gmra.mrb[0].mxu0 %v991
    %v1801 = vpop.f32.mrb[0].mxu0
    %v1802 = vadd.f32 0.0, %v1801
    %v1803 = vpop.f32.mrb[0].mxu0
    %v1804 = vadd.f32 0.0, %v1803
    %v1805 = vpop.f32.mrb[0].mxu0
    %v1806 = vadd.f32 0.0, %v1805
    %v1807 = vpop.f32.mrb[0].mxu0
    %v1808 = vadd.f32 0.0, %v1807
    %1809 = vdwg.mxu0
    %1810 = vmatprep.subr.bf16.mxu0 %v1544
    %1811 = vmatpush1.bf16.msra.mxu0 %v1543
    %1812 = vmatprep.subr.bf16.mxu0 %v1546
    %1813 = vmatpush1.bf16.msra.mxu0 %v1545
    %1814 = vmatprep.subr.bf16.mxu0 %v1548
    %1815 = vmatpush1.bf16.msra.mxu0 %v1547
    %1816 = vmatprep.subr.bf16.mxu0 %v1550
    %1817 = vmatpush1.bf16.msra.mxu0 %v1549
    %1818 = vmatprep.subr.bf16.mxu0 %v1552
    %1819 = vmatpush1.bf16.msra.mxu0 %v1551
    %1820 = vmatprep.subr.bf16.mxu0 %v1554
    %1821 = vmatpush1.bf16.msra.mxu0 %v1553
    %1822 = vmatprep.subr.bf16.mxu0 %v1556
    %1823 = vmatpush1.bf16.msra.mxu0 %v1555
    %1824 = vmatprep.subr.bf16.mxu0 %v1558
    %1825 = vmatpush1.bf16.msra.mxu0 %v1557
    %1826 = vmatprep.subr.bf16.mxu0 %v1560
    %1827 = vmatpush1.bf16.msra.mxu0 %v1559
    %1828 = vmatprep.subr.bf16.mxu0 %v1562
    %1829 = vmatpush1.bf16.msra.mxu0 %v1561
    %1830 = vmatprep.subr.bf16.mxu0 %v1564
    %1831 = vmatpush1.bf16.msra.mxu0 %v1563
    %1832 = vmatprep.subr.bf16.mxu0 %v1566
    %1833 = vmatpush1.bf16.msra.mxu0 %v1565
    %1834 = vmatprep.subr.bf16.mxu0 %v1568
    %1835 = vmatpush1.bf16.msra.mxu0 %v1567
    %1836 = vmatprep.subr.bf16.mxu0 %v1570
    %1837 = vmatpush1.bf16.msra.mxu0 %v1569
    %1838 = vmatprep.subr.bf16.mxu0 %v1572
    %1839 = vmatpush1.bf16.msra.mxu0 %v1571
    %1840 = vmatprep.subr.bf16.mxu0 %v1574
    %1841 = vmatpush1.bf16.msra.mxu0 %v1573
    %1842 = vmatprep.mubr.bf16.mxu0 %v994
    %1843 = vmatmul.mubr.bf16.gmra.mrb[0].mxu0 %v993
    %v1844 = vpop.f32.mrb[0].mxu0
    %v1845 = vadd.f32 %v1802, %v1844
    %v1846 = vpop.f32.mrb[0].mxu0
    %v1847 = vadd.f32 %v1804, %v1846
    %v1848 = vpop.f32.mrb[0].mxu0
    %v1849 = vadd.f32 %v1806, %v1848
    %v1850 = vpop.f32.mrb[0].mxu0
    %v1851 = vadd.f32 %v1808, %v1850
    %1852 = vdwg.mxu0
    %1853 = vmatprep.subr.bf16.mxu0 %v1576
    %1854 = vmatpush1.bf16.msra.mxu0 %v1575
    %1855 = vmatprep.subr.bf16.mxu0 %v1578
    %1856 = vmatpush1.bf16.msra.mxu0 %v1577
    %1857 = vmatprep.subr.bf16.mxu0 %v1580
    %1858 = vmatpush1.bf16.msra.mxu0 %v1579
    %1859 = vmatprep.subr.bf16.mxu0 %v1582
    %1860 = vmatpush1.bf16.msra.mxu0 %v1581
    %1861 = vmatprep.subr.bf16.mxu0 %v1584
    %1862 = vmatpush1.bf16.msra.mxu0 %v1583
    %1863 = vmatprep.subr.bf16.mxu0 %v1586
    %1864 = vmatpush1.bf16.msra.mxu0 %v1585
    %1865 = vmatprep.subr.bf16.mxu0 %v1588
    %1866 = vmatpush1.bf16.msra.mxu0 %v1587
    %1867 = vmatprep.subr.bf16.mxu0 %v1590
    %1868 = vmatpush1.bf16.msra.mxu0 %v1589
    %1869 = vmatprep.subr.bf16.mxu0 %v1592
    %1870 = vmatpush1.bf16.msra.mxu0 %v1591
    %1871 = vmatprep.subr.bf16.mxu0 %v1594
    %1872 = vmatpush1.bf16.msra.mxu0 %v1593
    %1873 = vmatprep.subr.bf16.mxu0 %v1596
    %1874 = vmatpush1.bf16.msra.mxu0 %v1595
    %1875 = vmatprep.subr.bf16.mxu0 %v1598
    %1876 = vmatpush1.bf16.msra.mxu0 %v1597
    %1877 = vmatprep.subr.bf16.mxu0 %v1600
    %1878 = vmatpush1.bf16.msra.mxu0 %v1599
    %1879 = vmatprep.subr.bf16.mxu0 %v1602
    %1880 = vmatpush1.bf16.msra.mxu0 %v1601
    %1881 = vmatprep.subr.bf16.mxu0 %v1604
    %1882 = vmatpush1.bf16.msra.mxu0 %v1603
    %1883 = vmatprep.subr.bf16.mxu0 %v1606
    %1884 = vmatpush1.bf16.msra.mxu0 %v1605
    %1885 = vmatprep.mubr.bf16.mxu0 %v996
    %1886 = vmatmul.mubr.bf16.gmra.mrb[0].mxu0 %v995
    %v1887 = vpop.f32.mrb[0].mxu0
    %v1888 = vadd.f32 %v1845, %v1887
    %v1889 = vpop.f32.mrb[0].mxu0
    %v1890 = vadd.f32 %v1847, %v1889
    %v1891 = vpop.f32.mrb[0].mxu0
    %v1892 = vadd.f32 %v1849, %v1891
    %v1893 = vpop.f32.mrb[0].mxu0
    %v1894 = vadd.f32 %v1851, %v1893
    %1895 = vdwg.mxu0
    %1896 = vmatprep.subr.bf16.mxu0 %v1608
    %1897 = vmatpush1.bf16.msra.mxu0 %v1607
    %1898 = vmatprep.subr.bf16.mxu0 %v1610
    %1899 = vmatpush1.bf16.msra.mxu0 %v1609
    %1900 = vmatprep.subr.bf16.mxu0 %v1612
    %1901 = vmatpush1.bf16.msra.mxu0 %v1611
    %1902 = vmatprep.subr.bf16.mxu0 %v1614
    %1903 = vmatpush1.bf16.msra.mxu0 %v1613
    %1904 = vmatprep.subr.bf16.mxu0 %v1616
    %1905 = vmatpush1.bf16.msra.mxu0 %v1615
    %1906 = vmatprep.subr.bf16.mxu0 %v1618
    %1907 = vmatpush1.bf16.msra.mxu0 %v1617
    %1908 = vmatprep.subr.bf16.mxu0 %v1620
    %1909 = vmatpush1.bf16.msra.mxu0 %v1619
    %1910 = vmatprep.subr.bf16.mxu0 %v1622
    %1911 = vmatpush1.bf16.msra.mxu0 %v1621
    %1912 = vmatprep.subr.bf16.mxu0 %v1624
    %1913 = vmatpush1.bf16.msra.mxu0 %v1623
    %1914 = vmatprep.subr.bf16.mxu0 %v1626
    %1915 = vmatpush1.bf16.msra.mxu0 %v1625
    %1916 = vmatprep.subr.bf16.mxu0 %v1628
    %1917 = vmatpush1.bf16.msra.mxu0 %v1627
    %1918 = vmatprep.subr.bf16.mxu0 %v1630
    %1919 = vmatpush1.bf16.msra.mxu0 %v1629
    %1920 = vmatprep.subr.bf16.mxu0 %v1632
    %1921 = vmatpush1.bf16.msra.mxu0 %v1631
    %1922 = vmatprep.subr.bf16.mxu0 %v1634
    %1923 = vmatpush1.bf16.msra.mxu0 %v1633
    %1924 = vmatprep.subr.bf16.mxu0 %v1636
    %1925 = vmatpush1.bf16.msra.mxu0 %v1635
    %1926 = vmatprep.subr.bf16.mxu0 %v1638
    %1927 = vmatpush1.bf16.msra.mxu0 %v1637
    %1928 = vmatprep.mubr.bf16.mxu0 %v998
    %1929 = vmatmul.mubr.bf16.gmra.mrb[0].mxu0 %v997
    %v1930 = vpop.f32.mrb[0].mxu0
    %v1931 = vadd.f32 %v1888, %v1930
    %v1932 = vpop.f32.mrb[0].mxu0
    %v1933 = vadd.f32 %v1890, %v1932
    %v1934 = vpop.f32.mrb[0].mxu0
    %v1935 = vadd.f32 %v1892, %v1934
    %v1936 = vpop.f32.mrb[0].mxu0
    %v1937 = vadd.f32 %v1894, %v1936
    %1938 = vdwg.mxu0
    %v1939 = vpack.c.bf16 %v1935, %v1931
    %v1940 = vpack.c.bf16 %v1937, %v1933
    %v1941 = vld [vmem:[%s8] sm:$0xf]
    %v1942 = vld [vmem:[%s8 + $0x4] sm:$0xf]
    %v1943 = vld [vmem:[%s8 + $0x8] sm:$0xf]
    %v1944 = vld [vmem:[%s8 + $0xc] sm:$0xf]
    %v1949 = vunpack.c.l.b16 %v1941
    %v1950 = vunpack.c.l.b16 %v1942
    %v1951 = vunpack.c.l.b16 %v1943
    %v1952 = vunpack.c.l.b16 %v1944
    %v1953 = vpack.c.b16 %v1950, %v1949
    %v1954 = vpack.c.b16 %v1952, %v1951
    %v1956 = vsel %vm367, %v1953, 0
    %v1959 = vsel %vm367, %v1954, 0
    %1961 = vmatprep.subr.bf16.mxu0 %v1940
    %1962 = vmatpush1.bf16.msra.mxu0 %v1939
    %1963 = vmatprep.subr.bf16.mxu0 0
    %1964 = vmatpush1.bf16.msra.mxu0 0
    %1965 = vmatprep.subr.bf16.mxu0 0
    %1966 = vmatpush1.bf16.msra.mxu0 0
    %1967 = vmatprep.subr.bf16.mxu0 0
    %1968 = vmatpush1.bf16.msra.mxu0 0
    %1969 = vmatprep.subr.bf16.mxu0 0
    %1970 = vmatpush1.bf16.msra.mxu0 0
    %1971 = vmatprep.subr.bf16.mxu0 0
    %1972 = vmatpush1.bf16.msra.mxu0 0
    %1973 = vmatprep.subr.bf16.mxu0 0
    %1974 = vmatpush1.bf16.msra.mxu0 0
    %1975 = vmatprep.subr.bf16.mxu0 0
    %1976 = vmatpush1.bf16.msra.mxu0 0
    %1977 = vmatprep.subr.bf16.mxu0 0
    %1978 = vmatpush1.bf16.msra.mxu0 0
    %1979 = vmatprep.subr.bf16.mxu0 0
    %1980 = vmatpush1.bf16.msra.mxu0 0
    %1981 = vmatprep.subr.bf16.mxu0 0
    %1982 = vmatpush1.bf16.msra.mxu0 0
    %1983 = vmatprep.subr.bf16.mxu0 0
    %1984 = vmatpush1.bf16.msra.mxu0 0
    %1985 = vmatprep.subr.bf16.mxu0 0
    %1986 = vmatpush1.bf16.msra.mxu0 0
    %1987 = vmatprep.subr.bf16.mxu0 0
    %1988 = vmatpush1.bf16.msra.mxu0 0
    %1989 = vmatprep.subr.bf16.mxu0 0
    %1990 = vmatpush1.bf16.msra.mxu0 0
    %1991 = vmatprep.subr.bf16.mxu0 0
    %1992 = vmatpush1.bf16.msra.mxu0 0
    %1993 = vmatprep.mubr.bf16.mxu0 0
    %1994 = vmatmul.mubr.bf16.gmra.mrb[0].mxu0 %v1956
    %v1995 = vpop.f32.mrb[0].mxu0
    %v1996 = vadd.f32 0.0, %v1995
    %v1997 = vpop.f32.mrb[0].mxu0
    %v1998 = vadd.f32 0.0, %v1997
    %v1999 = vpop.f32.mrb[0].mxu0
    %v2000 = vadd.f32 0.0, %v1999
    %v2001 = vpop.f32.mrb[0].mxu0
    %v2002 = vadd.f32 0.0, %v2001
    %2003 = vmatprep.mubr.bf16.mxu0 0
    %2004 = vmatmul.mubr.bf16.gmra.mrb[0].mxu0 %v1959
    %v2005 = vpop.f32.mrb[0].mxu0
    %v2006 = vadd.f32 0.0, %v2005
    %v2007 = vpop.f32.mrb[0].mxu0
    %v2008 = vadd.f32 0.0, %v2007
    %v2009 = vpop.f32.mrb[0].mxu0
    %v2010 = vadd.f32 0.0, %v2009
    %v2011 = vpop.f32.mrb[0].mxu0
    %v2012 = vadd.f32 0.0, %v2011
    %2013 = vdwg.mxu0
    %v2014 = vmax.f32 %v1996, 0.0
    %v2015 = vmax.f32 %v1998, 0.0
    %v2016 = vmax.f32 %v2000, 0.0
    %v2017 = vmax.f32 %v2002, 0.0
    %v2018 = vmax.f32 %v2006, 0.0
    %v2019 = vmax.f32 %v2008, 0.0
    %v2020 = vmax.f32 %v2010, 0.0
    %v2021 = vmax.f32 %v2012, 0.0
    %v2022 = vpack.c.bf16 %v2016, %v2014
    %v2023 = vpack.c.bf16 %v2017, %v2015
    %v2024 = vpack.c.bf16 %v2020, %v2018
    %v2025 = vpack.c.bf16 %v2021, %v2019
    %v2026 = vld [vmem:[%s15] sm:$0xf]
    %v2027 = vld [vmem:[%s15 + $0x4] sm:$0xf]
    %v2028 = vld [vmem:[%s15 + $0x8] sm:$0xf]
    %v2029 = vld [vmem:[%s15 + $0xc] sm:$0xf]
    %v2030 = vld [vmem:[%s15 + $0x10] sm:$0xf]
    %v2031 = vld [vmem:[%s15 + $0x14] sm:$0xf]
    %v2032 = vld [vmem:[%s15 + $0x18] sm:$0xf]
    %v2033 = vld [vmem:[%s15 + $0x1c] sm:$0xf]
    %v2034 = vld [vmem:[%s15 + $0x20] sm:$0xf]
    %v2035 = vld [vmem:[%s15 + $0x24] sm:$0xf]
    %v2036 = vld [vmem:[%s15 + $0x28] sm:$0xf]
    %v2037 = vld [vmem:[%s15 + $0x2c] sm:$0xf]
    %v2038 = vld [vmem:[%s15 + $0x30] sm:$0xf]
    %v2039 = vld [vmem:[%s15 + $0x34] sm:$0xf]
    %v2040 = vld [vmem:[%s15 + $0x38] sm:$0xf]
    %v2041 = vld [vmem:[%s15 + $0x3c] sm:$0xf]
    %v2042 = vld [vmem:[%s15 + $0x40] sm:$0xf]
    %v2043 = vld [vmem:[%s15 + $0x44] sm:$0xf]
    %v2044 = vld [vmem:[%s15 + $0x48] sm:$0xf]
    %v2045 = vld [vmem:[%s15 + $0x4c] sm:$0xf]
    %v2046 = vld [vmem:[%s15 + $0x50] sm:$0xf]
    %v2047 = vld [vmem:[%s15 + $0x54] sm:$0xf]
    %v2048 = vld [vmem:[%s15 + $0x58] sm:$0xf]
    %v2049 = vld [vmem:[%s15 + $0x5c] sm:$0xf]
    %v2050 = vld [vmem:[%s15 + $0x60] sm:$0xf]
    %v2051 = vld [vmem:[%s15 + $0x64] sm:$0xf]
    %v2052 = vld [vmem:[%s15 + $0x68] sm:$0xf]
    %v2053 = vld [vmem:[%s15 + $0x6c] sm:$0xf]
    %v2054 = vld [vmem:[%s15 + $0x70] sm:$0xf]
    %v2055 = vld [vmem:[%s15 + $0x74] sm:$0xf]
    %v2056 = vld [vmem:[%s15 + $0x78] sm:$0xf]
    %v2057 = vld [vmem:[%s15 + $0x7c] sm:$0xf]
    %v2090 = vunpack.c.l.b16 %v2026
    %v2091 = vunpack.c.l.b16 %v2027
    %v2092 = vunpack.c.l.b16 %v2028
    %v2093 = vunpack.c.l.b16 %v2029
    %v2094 = vunpack.c.l.b16 %v2030
    %v2095 = vunpack.c.l.b16 %v2031
    %v2096 = vunpack.c.l.b16 %v2032
    %v2097 = vunpack.c.l.b16 %v2033
    %v2098 = vunpack.c.l.b16 %v2034
    %v2099 = vunpack.c.l.b16 %v2035
    %v2100 = vunpack.c.l.b16 %v2036
    %v2101 = vunpack.c.l.b16 %v2037
    %v2102 = vunpack.c.l.b16 %v2038
    %v2103 = vunpack.c.l.b16 %v2039
    %v2104 = vunpack.c.l.b16 %v2040
    %v2105 = vunpack.c.l.b16 %v2041
    %v2106 = vunpack.c.l.b16 %v2042
    %v2107 = vunpack.c.l.b16 %v2043
    %v2108 = vunpack.c.l.b16 %v2044
    %v2109 = vunpack.c.l.b16 %v2045
    %v2110 = vunpack.c.l.b16 %v2046
    %v2111 = vunpack.c.l.b16 %v2047
    %v2112 = vunpack.c.l.b16 %v2048
    %v2113 = vunpack.c.l.b16 %v2049
    %v2114 = vunpack.c.l.b16 %v2050
    %v2115 = vunpack.c.l.b16 %v2051
    %v2116 = vunpack.c.l.b16 %v2052
    %v2117 = vunpack.c.l.b16 %v2053
    %v2118 = vunpack.c.l.b16 %v2054
    %v2119 = vunpack.c.l.b16 %v2055
    %v2120 = vunpack.c.l.b16 %v2056
    %v2121 = vunpack.c.l.b16 %v2057
    %v2122 = vpack.c.b16 %v2091, %v2090
    %v2123 = vpack.c.b16 %v2093, %v2092
    %v2124 = vpack.c.b16 %v2095, %v2094
    %v2125 = vpack.c.b16 %v2097, %v2096
    %v2126 = vpack.c.b16 %v2099, %v2098
    %v2127 = vpack.c.b16 %v2101, %v2100
    %v2128 = vpack.c.b16 %v2103, %v2102
    %v2129 = vpack.c.b16 %v2105, %v2104
    %v2130 = vpack.c.b16 %v2107, %v2106
    %v2131 = vpack.c.b16 %v2109, %v2108
    %v2132 = vpack.c.b16 %v2111, %v2110
    %v2133 = vpack.c.b16 %v2113, %v2112
    %v2134 = vpack.c.b16 %v2115, %v2114
    %v2135 = vpack.c.b16 %v2117, %v2116
    %v2136 = vpack.c.b16 %v2119, %v2118
    %v2137 = vpack.c.b16 %v2121, %v2120
    %2154 = vmatprep.subr.bf16.mxu0 0
    %2155 = vmatpush1.bf16.msra.mxu0 %v2122
    %2156 = vmatprep.subr.bf16.mxu0 0
    %2157 = vmatpush1.bf16.msra.mxu0 %v2123
    %2158 = vmatprep.subr.bf16.mxu0 0
    %2159 = vmatpush1.bf16.msra.mxu0 %v2124
    %2160 = vmatprep.subr.bf16.mxu0 0
    %2161 = vmatpush1.bf16.msra.mxu0 %v2125
    %2162 = vmatprep.subr.bf16.mxu0 0
    %2163 = vmatpush1.bf16.msra.mxu0 %v2126
    %2164 = vmatprep.subr.bf16.mxu0 0
    %2165 = vmatpush1.bf16.msra.mxu0 %v2127
    %2166 = vmatprep.subr.bf16.mxu0 0
    %2167 = vmatpush1.bf16.msra.mxu0 %v2128
    %2168 = vmatprep.subr.bf16.mxu0 0
    %2169 = vmatpush1.bf16.msra.mxu0 %v2129
    %2170 = vmatprep.subr.bf16.mxu0 0
    %2171 = vmatpush1.bf16.msra.mxu0 %v2130
    %2172 = vmatprep.subr.bf16.mxu0 0
    %2173 = vmatpush1.bf16.msra.mxu0 %v2131
    %2174 = vmatprep.subr.bf16.mxu0 0
    %2175 = vmatpush1.bf16.msra.mxu0 %v2132
    %2176 = vmatprep.subr.bf16.mxu0 0
    %2177 = vmatpush1.bf16.msra.mxu0 %v2133
    %2178 = vmatprep.subr.bf16.mxu0 0
    %2179 = vmatpush1.bf16.msra.mxu0 %v2134
    %2180 = vmatprep.subr.bf16.mxu0 0
    %2181 = vmatpush1.bf16.msra.mxu0 %v2135
    %2182 = vmatprep.subr.bf16.mxu0 0
    %2183 = vmatpush1.bf16.msra.mxu0 %v2136
    %2184 = vmatprep.subr.bf16.mxu0 0
    %2185 = vmatpush1.bf16.msra.mxu0 %v2137
    %2186 = vmatprep.mubr.bf16.mxu0 %v2023
    %2187 = vmatmul.mubr.bf16.gmra.mrb[0].mxu0 %v2022
    %v2188 = vpop.f32.mrb[0].mxu0
    %v2189 = vadd.f32 0.0, %v2188
    %v2190 = vpop.f32.mrb[0].mxu0
    %v2191 = vpop.f32.mrb[0].mxu0
    %v2192 = vadd.f32 0.0, %v2191
    %v2193 = vpop.f32.mrb[0].mxu0
    %2194 = vmatprep.mubr.bf16.mxu0 %v2025
    %2195 = vmatmul.mubr.bf16.gmra.mrb[0].mxu0 %v2024
    %v2196 = vpop.f32.mrb[0].mxu0
    %v2197 = vadd.f32 0.0, %v2196
    %v2198 = vpop.f32.mrb[0].mxu0
    %v2199 = vpop.f32.mrb[0].mxu0
    %v2200 = vadd.f32 0.0, %v2199
    %v2201 = vpop.f32.mrb[0].mxu0
    %2202 = vdwg.mxu0
    %v2203 = vpack.c.bf16 %v2192, %v2189
    %v2204 = vpack.c.bf16 %v2200, %v2197
    %v2205 = vld [vmem:[%s9] sm:$0xf]
    %v2206 = vld [vmem:[%s9 + $0x4] sm:$0xf]
    %v2207 = vld [vmem:[%s9 + $0x8] sm:$0xf]
    %v2208 = vld [vmem:[%s9 + $0xc] sm:$0xf]
    %v2213 = vunpack.c.l.b16 %v2205
    %v2214 = vunpack.c.l.b16 %v2206
    %v2215 = vunpack.c.l.b16 %v2207
    %v2216 = vunpack.c.l.b16 %v2208
    %v2217 = vpack.c.b16 %v2214, %v2213
    %v2218 = vpack.c.b16 %v2216, %v2215
    %v2220 = vsel %vm533, %v2217, 0
    %v2223 = vsel %vm533, %v2218, 0
    %2225 = vmatprep.subr.bf16.mxu0 0
    %2226 = vmatpush1.bf16.msra.mxu0 %v2203
    %2227 = vmatprep.subr.bf16.mxu0 0
    %2228 = vmatpush1.bf16.msra.mxu0 %v2204
    %2229 = vmatprep.subr.bf16.mxu0 0
    %2230 = vmatpush1.bf16.msra.mxu0 0
    %2231 = vmatprep.subr.bf16.mxu0 0
    %2232 = vmatpush1.bf16.msra.mxu0 0
    %2233 = vmatprep.subr.bf16.mxu0 0
    %2234 = vmatpush1.bf16.msra.mxu0 0
    %2235 = vmatprep.subr.bf16.mxu0 0
    %2236 = vmatpush1.bf16.msra.mxu0 0
    %2237 = vmatprep.subr.bf16.mxu0 0
    %2238 = vmatpush1.bf16.msra.mxu0 0
    %2239 = vmatprep.subr.bf16.mxu0 0
    %2240 = vmatpush1.bf16.msra.mxu0 0
    %2241 = vmatprep.subr.bf16.mxu0 0
    %2242 = vmatpush1.bf16.msra.mxu0 0
    %2243 = vmatprep.subr.bf16.mxu0 0
    %2244 = vmatpush1.bf16.msra.mxu0 0
    %2245 = vmatprep.subr.bf16.mxu0 0
    %2246 = vmatpush1.bf16.msra.mxu0 0
    %2247 = vmatprep.subr.bf16.mxu0 0
    %2248 = vmatpush1.bf16.msra.mxu0 0
    %2249 = vmatprep.subr.bf16.mxu0 0
    %2250 = vmatpush1.bf16.msra.mxu0 0
    %2251 = vmatprep.subr.bf16.mxu0 0
    %2252 = vmatpush1.bf16.msra.mxu0 0
    %2253 = vmatprep.subr.bf16.mxu0 0
    %2254 = vmatpush1.bf16.msra.mxu0 0
    %2255 = vmatprep.subr.bf16.mxu0 0
    %2256 = vmatpush1.bf16.msra.mxu0 0
    %2257 = vmatprep.mubr.bf16.mxu0 0
    %2258 = vmatmul.mubr.bf16.gmra.mrb[0].mxu0 %v2220
    %v2259 = vpop.f32.mrb[0].mxu0
    %v2260 = vadd.f32 0.0, %v2259
    %v2261 = vpop.f32.mrb[0].mxu0
    %v2262 = vpop.f32.mrb[0].mxu0
    %v2263 = vadd.f32 0.0, %v2262
    %v2264 = vpop.f32.mrb[0].mxu0
    %2265 = vmatprep.mubr.bf16.mxu0 0
    %2266 = vmatmul.mubr.bf16.gmra.mrb[0].mxu0 %v2223
    %v2267 = vpop.f32.mrb[0].mxu0
    %v2268 = vadd.f32 0.0, %v2267
    %v2269 = vpop.f32.mrb[0].mxu0
    %v2270 = vpop.f32.mrb[0].mxu0
    %v2271 = vadd.f32 0.0, %v2270
    %v2272 = vpop.f32.mrb[0].mxu0
    %2273 = vdwg.mxu0
    %v2274 = vmax.f32 %v2260, 0.0
    %v2275 = vmax.f32 %v2263, 0.0
    %v2276 = vmax.f32 %v2268, 0.0
    %v2277 = vmax.f32 %v2271, 0.0
    %v2278 = vpack.c.bf16 %v2275, %v2274
    %v2279 = vpack.c.bf16 %v2277, %v2276
    %v2280 = vld [vmem:[%s10] sm:$0xf]
    %v2281 = vld [vmem:[%s10 + $0x4] sm:$0xf]
    %v2282 = vld [vmem:[%s10 + $0x8] sm:$0xf]
    %v2283 = vld [vmem:[%s10 + $0xc] sm:$0xf]
    %v2288 = vunpack.c.l.b16 %v2280
    %v2289 = vunpack.c.l.b16 %v2281
    %v2290 = vunpack.c.l.b16 %v2282
    %v2291 = vunpack.c.l.b16 %v2283
    %v2292 = vpack.c.b16 %v2289, %v2288
    %v2293 = vpack.c.b16 %v2291, %v2290
    %v2295 = vsel %vm533, %v2292, 0
    %v2298 = vsel %vm533, %v2293, 0
    %2300 = vmatprep.subr.bf16.mxu0 0
    %2301 = vmatpush1.bf16.msra.mxu0 %v2278
    %2302 = vmatprep.subr.bf16.mxu0 0
    %2303 = vmatpush1.bf16.msra.mxu0 %v2279
    %2304 = vmatprep.subr.bf16.mxu0 0
    %2305 = vmatpush1.bf16.msra.mxu0 0
    %2306 = vmatprep.subr.bf16.mxu0 0
    %2307 = vmatpush1.bf16.msra.mxu0 0
    %2308 = vmatprep.subr.bf16.mxu0 0
    %2309 = vmatpush1.bf16.msra.mxu0 0
    %2310 = vmatprep.subr.bf16.mxu0 0
    %2311 = vmatpush1.bf16.msra.mxu0 0
    %2312 = vmatprep.subr.bf16.mxu0 0
    %2313 = vmatpush1.bf16.msra.mxu0 0
    %2314 = vmatprep.subr.bf16.mxu0 0
    %2315 = vmatpush1.bf16.msra.mxu0 0
    %2316 = vmatprep.subr.bf16.mxu0 0
    %2317 = vmatpush1.bf16.msra.mxu0 0
    %2318 = vmatprep.subr.bf16.mxu0 0
    %2319 = vmatpush1.bf16.msra.mxu0 0
    %2320 = vmatprep.subr.bf16.mxu0 0
    %2321 = vmatpush1.bf16.msra.mxu0 0
    %2322 = vmatprep.subr.bf16.mxu0 0
    %2323 = vmatpush1.bf16.msra.mxu0 0
    %2324 = vmatprep.subr.bf16.mxu0 0
    %2325 = vmatpush1.bf16.msra.mxu0 0
    %2326 = vmatprep.subr.bf16.mxu0 0
    %2327 = vmatpush1.bf16.msra.mxu0 0
    %2328 = vmatprep.subr.bf16.mxu0 0
    %2329 = vmatpush1.bf16.msra.mxu0 0
    %2330 = vmatprep.subr.bf16.mxu0 0
    %2331 = vmatpush1.bf16.msra.mxu0 0
    %2332 = vmatprep.mubr.bf16.mxu0 0
    %2333 = vmatmul.mubr.bf16.gmra.mrb[0].mxu0 %v2295
    %v2334 = vpop.f32.mrb[0].mxu0
    %v2335 = vadd.f32 0.0, %v2334
    %v2336 = vpop.f32.mrb[0].mxu0
    %v2337 = vpop.f32.mrb[0].mxu0
    %v2338 = vadd.f32 0.0, %v2337
    %v2339 = vpop.f32.mrb[0].mxu0
    %2340 = vmatprep.mubr.bf16.mxu0 0
    %2341 = vmatmul.mubr.bf16.gmra.mrb[0].mxu0 %v2298
    %v2342 = vpop.f32.mrb[0].mxu0
    %v2343 = vadd.f32 0.0, %v2342
    %v2344 = vpop.f32.mrb[0].mxu0
    %v2345 = vpop.f32.mrb[0].mxu0
    %v2346 = vadd.f32 0.0, %v2345
    %v2347 = vpop.f32.mrb[0].mxu0
    %2348 = vdwg.mxu0
    %v2349 = vmax.f32 %v2335, 0.0
    %v2350 = vmax.f32 %v2338, 0.0
    %v2351 = vmax.f32 %v2343, 0.0
    %v2352 = vmax.f32 %v2346, 0.0
    %v2353 = vpack.c.bf16 %v2350, %v2349
    %v2354 = vpack.c.bf16 %v2352, %v2351
    %v2355 = vld [vmem:[%s11] sm:$0xf]
    %v2356 = vld [vmem:[%s11 + $0x4] sm:$0xf]
    %v2357 = vld [vmem:[%s11 + $0x8] sm:$0xf]
    %v2358 = vld [vmem:[%s11 + $0xc] sm:$0xf]
    %v2363 = vunpack.c.l.b16 %v2355
    %v2364 = vunpack.c.l.b16 %v2356
    %v2365 = vunpack.c.l.b16 %v2357
    %v2366 = vunpack.c.l.b16 %v2358
    %v2367 = vpack.c.b16 %v2364, %v2363
    %v2368 = vpack.c.b16 %v2366, %v2365
    %v2370 = vsel %vm533, %v2367, 0
    %v2373 = vsel %vm533, %v2368, 0
    %2375 = vmatprep.subr.bf16.mxu0 0
    %2376 = vmatpush1.bf16.msra.mxu0 %v2353
    %2377 = vmatprep.subr.bf16.mxu0 0
    %2378 = vmatpush1.bf16.msra.mxu0 %v2354
    %2379 = vmatprep.subr.bf16.mxu0 0
    %2380 = vmatpush1.bf16.msra.mxu0 0
    %2381 = vmatprep.subr.bf16.mxu0 0
    %2382 = vmatpush1.bf16.msra.mxu0 0
    %2383 = vmatprep.subr.bf16.mxu0 0
    %2384 = vmatpush1.bf16.msra.mxu0 0
    %2385 = vmatprep.subr.bf16.mxu0 0
    %2386 = vmatpush1.bf16.msra.mxu0 0
    %2387 = vmatprep.subr.bf16.mxu0 0
    %2388 = vmatpush1.bf16.msra.mxu0 0
    %2389 = vmatprep.subr.bf16.mxu0 0
    %2390 = vmatpush1.bf16.msra.mxu0 0
    %2391 = vmatprep.subr.bf16.mxu0 0
    %2392 = vmatpush1.bf16.msra.mxu0 0
    %2393 = vmatprep.subr.bf16.mxu0 0
    %2394 = vmatpush1.bf16.msra.mxu0 0
    %2395 = vmatprep.subr.bf16.mxu0 0
    %2396 = vmatpush1.bf16.msra.mxu0 0
    %2397 = vmatprep.subr.bf16.mxu0 0
    %2398 = vmatpush1.bf16.msra.mxu0 0
    %2399 = vmatprep.subr.bf16.mxu0 0
    %2400 = vmatpush1.bf16.msra.mxu0 0
    %2401 = vmatprep.subr.bf16.mxu0 0
    %2402 = vmatpush1.bf16.msra.mxu0 0
    %2403 = vmatprep.subr.bf16.mxu0 0
    %2404 = vmatpush1.bf16.msra.mxu0 0
    %2405 = vmatprep.subr.bf16.mxu0 0
    %2406 = vmatpush1.bf16.msra.mxu0 0
    %2407 = vmatprep.mubr.bf16.mxu0 0
    %2408 = vmatmul.mubr.bf16.gmra.mrb[0].mxu0 %v2370
    %v2409 = vpop.f32.mrb[0].mxu0
    %v2410 = vadd.f32 0.0, %v2409
    %v2411 = vpop.f32.mrb[0].mxu0
    %v2412 = vpop.f32.mrb[0].mxu0
    %v2413 = vadd.f32 0.0, %v2412
    %v2414 = vpop.f32.mrb[0].mxu0
    %2415 = vmatprep.mubr.bf16.mxu0 0
    %2416 = vmatmul.mubr.bf16.gmra.mrb[0].mxu0 %v2373
    %v2417 = vpop.f32.mrb[0].mxu0
    %v2418 = vadd.f32 0.0, %v2417
    %v2419 = vpop.f32.mrb[0].mxu0
    %v2420 = vpop.f32.mrb[0].mxu0
    %v2421 = vadd.f32 0.0, %v2420
    %v2422 = vpop.f32.mrb[0].mxu0
    %2423 = vdwg.mxu0
    %v2424 = vmax.f32 %v2410, 0.0
    %v2425 = vmax.f32 %v2413, 0.0
    %v2426 = vmax.f32 %v2418, 0.0
    %v2427 = vmax.f32 %v2421, 0.0
    %v2428 = vpack.c.bf16 %v2425, %v2424
    %v2429 = vpack.c.bf16 %v2427, %v2426
    %v2430 = vld [vmem:[#allocation5] sm:$0xff]
    %v2431 = vld [vmem:[#allocation5 + $0x8] sm:$0xff]
    %v2432 = vld [vmem:[#allocation5 + $0x10] sm:$0xff]
    %v2433 = vld [vmem:[#allocation5 + $0x18] sm:$0xff]
    %v2434 = vld [vmem:[#allocation5 + $0x20] sm:$0xff]
    %v2435 = vld [vmem:[#allocation5 + $0x28] sm:$0xff]
    %v2436 = vld [vmem:[#allocation5 + $0x30] sm:$0xff]
    %v2437 = vld [vmem:[#allocation5 + $0x38] sm:$0xff]
    %v2438 = vld [vmem:[#allocation5 + $0x40] sm:$0xff]
    %v2439 = vld [vmem:[#allocation5 + $0x48] sm:$0xff]
    %v2440 = vld [vmem:[#allocation5 + $0x50] sm:$0xff]
    %v2441 = vld [vmem:[#allocation5 + $0x58] sm:$0xff]
    %v2442 = vld [vmem:[#allocation5 + $0x60] sm:$0xff]
    %v2443 = vld [vmem:[#allocation5 + $0x68] sm:$0xff]
    %v2444 = vld [vmem:[#allocation5 + $0x70] sm:$0xff]
    %v2445 = vld [vmem:[#allocation5 + $0x78] sm:$0xff]
    %v2446 = vld [vmem:[#allocation5 + $0x80] sm:$0xff]
    %v2447 = vld [vmem:[#allocation5 + $0x88] sm:$0xff]
    %v2448 = vld [vmem:[#allocation5 + $0x90] sm:$0xff]
    %v2449 = vld [vmem:[#allocation5 + $0x98] sm:$0xff]
    %v2450 = vld [vmem:[#allocation5 + $0xa0] sm:$0xff]
    %v2451 = vld [vmem:[#allocation5 + $0xa8] sm:$0xff]
    %v2452 = vld [vmem:[#allocation5 + $0xb0] sm:$0xff]
    %v2453 = vld [vmem:[#allocation5 + $0xb8] sm:$0xff]
    %v2454 = vld [vmem:[#allocation5 + $0xc0] sm:$0xff]
    %v2455 = vld [vmem:[#allocation5 + $0xc8] sm:$0xff]
    %v2456 = vld [vmem:[#allocation5 + $0xd0] sm:$0xff]
    %v2457 = vld [vmem:[#allocation5 + $0xd8] sm:$0xff]
    %v2458 = vld [vmem:[#allocation5 + $0xe0] sm:$0xff]
    %v2459 = vld [vmem:[#allocation5 + $0xe8] sm:$0xff]
    %v2460 = vld [vmem:[#allocation5 + $0xf0] sm:$0xff]
    %v2461 = vld [vmem:[#allocation5 + $0xf8] sm:$0xff]
    %v2462 = vld [vmem:[#allocation5 + $0x100] sm:$0xff]
    %v2463 = vld [vmem:[#allocation5 + $0x108] sm:$0xff]
    %v2464 = vld [vmem:[#allocation5 + $0x110] sm:$0xff]
    %v2465 = vld [vmem:[#allocation5 + $0x118] sm:$0xff]
    %v2466 = vld [vmem:[#allocation5 + $0x120] sm:$0xff]
    %v2467 = vld [vmem:[#allocation5 + $0x128] sm:$0xff]
    %v2468 = vld [vmem:[#allocation5 + $0x130] sm:$0xff]
    %v2469 = vld [vmem:[#allocation5 + $0x138] sm:$0xff]
    %v2470 = vld [vmem:[#allocation5 + $0x140] sm:$0xff]
    %v2471 = vld [vmem:[#allocation5 + $0x148] sm:$0xff]
    %v2472 = vld [vmem:[#allocation5 + $0x150] sm:$0xff]
    %v2473 = vld [vmem:[#allocation5 + $0x158] sm:$0xff]
    %v2474 = vld [vmem:[#allocation5 + $0x160] sm:$0xff]
    %v2475 = vld [vmem:[#allocation5 + $0x168] sm:$0xff]
    %v2476 = vld [vmem:[#allocation5 + $0x170] sm:$0xff]
    %v2477 = vld [vmem:[#allocation5 + $0x178] sm:$0xff]
    %v2478 = vld [vmem:[#allocation5 + $0x180] sm:$0xff]
    %v2479 = vld [vmem:[#allocation5 + $0x188] sm:$0xff]
    %v2480 = vld [vmem:[#allocation5 + $0x190] sm:$0xff]
    %v2481 = vld [vmem:[#allocation5 + $0x198] sm:$0xff]
    %v2482 = vld [vmem:[#allocation5 + $0x1a0] sm:$0xff]
    %v2483 = vld [vmem:[#allocation5 + $0x1a8] sm:$0xff]
    %v2484 = vld [vmem:[#allocation5 + $0x1b0] sm:$0xff]
    %v2485 = vld [vmem:[#allocation5 + $0x1b8] sm:$0xff]
    %v2486 = vld [vmem:[#allocation5 + $0x1c0] sm:$0xff]
    %v2487 = vld [vmem:[#allocation5 + $0x1c8] sm:$0xff]
    %v2488 = vld [vmem:[#allocation5 + $0x1d0] sm:$0xff]
    %v2489 = vld [vmem:[#allocation5 + $0x1d8] sm:$0xff]
    %v2490 = vld [vmem:[#allocation5 + $0x1e0] sm:$0xff]
    %v2491 = vld [vmem:[#allocation5 + $0x1e8] sm:$0xff]
    %v2492 = vld [vmem:[#allocation5 + $0x1f0] sm:$0xff]
    %v2493 = vld [vmem:[#allocation5 + $0x1f8] sm:$0xff]
    %v2494 = vld [vmem:[#allocation5 + $0x200] sm:$0xff]
    %v2495 = vld [vmem:[#allocation5 + $0x208] sm:$0xff]
    %v2496 = vld [vmem:[#allocation5 + $0x210] sm:$0xff]
    %v2497 = vld [vmem:[#allocation5 + $0x218] sm:$0xff]
    %v2498 = vld [vmem:[#allocation5 + $0x220] sm:$0xff]
    %v2499 = vld [vmem:[#allocation5 + $0x228] sm:$0xff]
    %v2500 = vld [vmem:[#allocation5 + $0x230] sm:$0xff]
    %v2501 = vld [vmem:[#allocation5 + $0x238] sm:$0xff]
    %v2502 = vld [vmem:[#allocation5 + $0x240] sm:$0xff]
    %v2503 = vld [vmem:[#allocation5 + $0x248] sm:$0xff]
    %v2504 = vld [vmem:[#allocation5 + $0x250] sm:$0xff]
    %v2505 = vld [vmem:[#allocation5 + $0x258] sm:$0xff]
    %v2506 = vld [vmem:[#allocation5 + $0x260] sm:$0xff]
    %v2507 = vld [vmem:[#allocation5 + $0x268] sm:$0xff]
    %v2508 = vld [vmem:[#allocation5 + $0x270] sm:$0xff]
    %v2509 = vld [vmem:[#allocation5 + $0x278] sm:$0xff]
    %v2510 = vld [vmem:[#allocation5 + $0x280] sm:$0xff]
    %v2511 = vld [vmem:[#allocation5 + $0x288] sm:$0xff]
    %v2512 = vld [vmem:[#allocation5 + $0x290] sm:$0xff]
    %v2513 = vld [vmem:[#allocation5 + $0x298] sm:$0xff]
    %v2514 = vld [vmem:[#allocation5 + $0x2a0] sm:$0xff]
    %v2515 = vld [vmem:[#allocation5 + $0x2a8] sm:$0xff]
    %v2516 = vld [vmem:[#allocation5 + $0x2b0] sm:$0xff]
    %v2517 = vld [vmem:[#allocation5 + $0x2b8] sm:$0xff]
    %v2518 = vld [vmem:[#allocation5 + $0x2c0] sm:$0xff]
    %v2519 = vld [vmem:[#allocation5 + $0x2c8] sm:$0xff]
    %v2520 = vld [vmem:[#allocation5 + $0x2d0] sm:$0xff]
    %v2521 = vld [vmem:[#allocation5 + $0x2d8] sm:$0xff]
    %v2522 = vld [vmem:[#allocation5 + $0x2e0] sm:$0xff]
    %v2523 = vld [vmem:[#allocation5 + $0x2e8] sm:$0xff]
    %v2524 = vld [vmem:[#allocation5 + $0x2f0] sm:$0xff]
    %v2525 = vld [vmem:[#allocation5 + $0x2f8] sm:$0xff]
    %v2526 = vld [vmem:[#allocation5 + $0x300] sm:$0xff]
    %v2527 = vld [vmem:[#allocation5 + $0x308] sm:$0xff]
    %v2528 = vld [vmem:[#allocation5 + $0x310] sm:$0xff]
    %v2529 = vld [vmem:[#allocation5 + $0x318] sm:$0xff]
    %v2530 = vld [vmem:[#allocation5 + $0x320] sm:$0xff]
    %v2531 = vld [vmem:[#allocation5 + $0x328] sm:$0xff]
    %v2532 = vld [vmem:[#allocation5 + $0x330] sm:$0xff]
    %v2533 = vld [vmem:[#allocation5 + $0x338] sm:$0xff]
    %v2534 = vld [vmem:[#allocation5 + $0x340] sm:$0xff]
    %v2535 = vld [vmem:[#allocation5 + $0x348] sm:$0xff]
    %v2536 = vld [vmem:[#allocation5 + $0x350] sm:$0xff]
    %v2537 = vld [vmem:[#allocation5 + $0x358] sm:$0xff]
    %v2538 = vld [vmem:[#allocation5 + $0x360] sm:$0xff]
    %v2539 = vld [vmem:[#allocation5 + $0x368] sm:$0xff]
    %v2540 = vld [vmem:[#allocation5 + $0x370] sm:$0xff]
    %v2541 = vld [vmem:[#allocation5 + $0x378] sm:$0xff]
    %v2542 = vld [vmem:[#allocation5 + $0x380] sm:$0xff]
    %v2543 = vld [vmem:[#allocation5 + $0x388] sm:$0xff]
    %v2544 = vld [vmem:[#allocation5 + $0x390] sm:$0xff]
    %v2545 = vld [vmem:[#allocation5 + $0x398] sm:$0xff]
    %v2546 = vld [vmem:[#allocation5 + $0x3a0] sm:$0xff]
    %v2547 = vld [vmem:[#allocation5 + $0x3a8] sm:$0xff]
    %v2548 = vld [vmem:[#allocation5 + $0x3b0] sm:$0xff]
    %v2549 = vld [vmem:[#allocation5 + $0x3b8] sm:$0xff]
    %v2550 = vld [vmem:[#allocation5 + $0x3c0] sm:$0xff]
    %v2551 = vld [vmem:[#allocation5 + $0x3c8] sm:$0xff]
    %v2552 = vld [vmem:[#allocation5 + $0x3d0] sm:$0xff]
    %v2553 = vld [vmem:[#allocation5 + $0x3d8] sm:$0xff]
    %v2554 = vld [vmem:[#allocation5 + $0x3e0] sm:$0xff]
    %v2555 = vld [vmem:[#allocation5 + $0x3e8] sm:$0xff]
    %v2556 = vld [vmem:[#allocation5 + $0x3f0] sm:$0xff]
    %v2557 = vld [vmem:[#allocation5 + $0x3f8] sm:$0xff]
    %v2686 = vunpack.c.l.b16 %v2430
    %v2687 = vunpack.c.h.b16 %v2430
    %v2688 = vunpack.c.l.b16 %v2431
    %v2689 = vunpack.c.h.b16 %v2431
    %v2690 = vunpack.c.l.b16 %v2432
    %v2691 = vunpack.c.h.b16 %v2432
    %v2692 = vunpack.c.l.b16 %v2433
    %v2693 = vunpack.c.h.b16 %v2433
    %v2694 = vunpack.c.l.b16 %v2434
    %v2695 = vunpack.c.h.b16 %v2434
    %v2696 = vunpack.c.l.b16 %v2435
    %v2697 = vunpack.c.h.b16 %v2435
    %v2698 = vunpack.c.l.b16 %v2436
    %v2699 = vunpack.c.h.b16 %v2436
    %v2700 = vunpack.c.l.b16 %v2437
    %v2701 = vunpack.c.h.b16 %v2437
    %v2702 = vunpack.c.l.b16 %v2438
    %v2703 = vunpack.c.h.b16 %v2438
    %v2704 = vunpack.c.l.b16 %v2439
    %v2705 = vunpack.c.h.b16 %v2439
    %v2706 = vunpack.c.l.b16 %v2440
    %v2707 = vunpack.c.h.b16 %v2440
    %v2708 = vunpack.c.l.b16 %v2441
    %v2709 = vunpack.c.h.b16 %v2441
    %v2710 = vunpack.c.l.b16 %v2442
    %v2711 = vunpack.c.h.b16 %v2442
    %v2712 = vunpack.c.l.b16 %v2443
    %v2713 = vunpack.c.h.b16 %v2443
    %v2714 = vunpack.c.l.b16 %v2444
    %v2715 = vunpack.c.h.b16 %v2444
    %v2716 = vunpack.c.l.b16 %v2445
    %v2717 = vunpack.c.h.b16 %v2445
    %v2718 = vunpack.c.l.b16 %v2446
    %v2719 = vunpack.c.h.b16 %v2446
    %v2720 = vunpack.c.l.b16 %v2447
    %v2721 = vunpack.c.h.b16 %v2447
    %v2722 = vunpack.c.l.b16 %v2448
    %v2723 = vunpack.c.h.b16 %v2448
    %v2724 = vunpack.c.l.b16 %v2449
    %v2725 = vunpack.c.h.b16 %v2449
    %v2726 = vunpack.c.l.b16 %v2450
    %v2727 = vunpack.c.h.b16 %v2450
    %v2728 = vunpack.c.l.b16 %v2451
    %v2729 = vunpack.c.h.b16 %v2451
    %v2730 = vunpack.c.l.b16 %v2452
    %v2731 = vunpack.c.h.b16 %v2452
    %v2732 = vunpack.c.l.b16 %v2453
    %v2733 = vunpack.c.h.b16 %v2453
    %v2734 = vunpack.c.l.b16 %v2454
    %v2735 = vunpack.c.h.b16 %v2454
    %v2736 = vunpack.c.l.b16 %v2455
    %v2737 = vunpack.c.h.b16 %v2455
    %v2738 = vunpack.c.l.b16 %v2456
    %v2739 = vunpack.c.h.b16 %v2456
    %v2740 = vunpack.c.l.b16 %v2457
    %v2741 = vunpack.c.h.b16 %v2457
    %v2742 = vunpack.c.l.b16 %v2458
    %v2743 = vunpack.c.h.b16 %v2458
    %v2744 = vunpack.c.l.b16 %v2459
    %v2745 = vunpack.c.h.b16 %v2459
    %v2746 = vunpack.c.l.b16 %v2460
    %v2747 = vunpack.c.h.b16 %v2460
    %v2748 = vunpack.c.l.b16 %v2461
    %v2749 = vunpack.c.h.b16 %v2461
    %v2750 = vunpack.c.l.b16 %v2462
    %v2751 = vunpack.c.h.b16 %v2462
    %v2752 = vunpack.c.l.b16 %v2463
    %v2753 = vunpack.c.h.b16 %v2463
    %v2754 = vunpack.c.l.b16 %v2464
    %v2755 = vunpack.c.h.b16 %v2464
    %v2756 = vunpack.c.l.b16 %v2465
    %v2757 = vunpack.c.h.b16 %v2465
    %v2758 = vunpack.c.l.b16 %v2466
    %v2759 = vunpack.c.h.b16 %v2466
    %v2760 = vunpack.c.l.b16 %v2467
    %v2761 = vunpack.c.h.b16 %v2467
    %v2762 = vunpack.c.l.b16 %v2468
    %v2763 = vunpack.c.h.b16 %v2468
    %v2764 = vunpack.c.l.b16 %v2469
    %v2765 = vunpack.c.h.b16 %v2469
    %v2766 = vunpack.c.l.b16 %v2470
    %v2767 = vunpack.c.h.b16 %v2470
    %v2768 = vunpack.c.l.b16 %v2471
    %v2769 = vunpack.c.h.b16 %v2471
    %v2770 = vunpack.c.l.b16 %v2472
    %v2771 = vunpack.c.h.b16 %v2472
    %v2772 = vunpack.c.l.b16 %v2473
    %v2773 = vunpack.c.h.b16 %v2473
    %v2774 = vunpack.c.l.b16 %v2474
    %v2775 = vunpack.c.h.b16 %v2474
    %v2776 = vunpack.c.l.b16 %v2475
    %v2777 = vunpack.c.h.b16 %v2475
    %v2778 = vunpack.c.l.b16 %v2476
    %v2779 = vunpack.c.h.b16 %v2476
    %v2780 = vunpack.c.l.b16 %v2477
    %v2781 = vunpack.c.h.b16 %v2477
    %v2782 = vunpack.c.l.b16 %v2478
    %v2783 = vunpack.c.h.b16 %v2478
    %v2784 = vunpack.c.l.b16 %v2479
    %v2785 = vunpack.c.h.b16 %v2479
    %v2786 = vunpack.c.l.b16 %v2480
    %v2787 = vunpack.c.h.b16 %v2480
    %v2788 = vunpack.c.l.b16 %v2481
    %v2789 = vunpack.c.h.b16 %v2481
    %v2790 = vunpack.c.l.b16 %v2482
    %v2791 = vunpack.c.h.b16 %v2482
    %v2792 = vunpack.c.l.b16 %v2483
    %v2793 = vunpack.c.h.b16 %v2483
    %v2794 = vunpack.c.l.b16 %v2484
    %v2795 = vunpack.c.h.b16 %v2484
    %v2796 = vunpack.c.l.b16 %v2485
    %v2797 = vunpack.c.h.b16 %v2485
    %v2798 = vunpack.c.l.b16 %v2486
    %v2799 = vunpack.c.h.b16 %v2486
    %v2800 = vunpack.c.l.b16 %v2487
    %v2801 = vunpack.c.h.b16 %v2487
    %v2802 = vunpack.c.l.b16 %v2488
    %v2803 = vunpack.c.h.b16 %v2488
    %v2804 = vunpack.c.l.b16 %v2489
    %v2805 = vunpack.c.h.b16 %v2489
    %v2806 = vunpack.c.l.b16 %v2490
    %v2807 = vunpack.c.h.b16 %v2490
    %v2808 = vunpack.c.l.b16 %v2491
    %v2809 = vunpack.c.h.b16 %v2491
    %v2810 = vunpack.c.l.b16 %v2492
    %v2811 = vunpack.c.h.b16 %v2492
    %v2812 = vunpack.c.l.b16 %v2493
    %v2813 = vunpack.c.h.b16 %v2493
    %v2814 = vunpack.c.l.b16 %v2494
    %v2815 = vunpack.c.h.b16 %v2494
    %v2816 = vunpack.c.l.b16 %v2495
    %v2817 = vunpack.c.h.b16 %v2495
    %v2818 = vunpack.c.l.b16 %v2496
    %v2819 = vunpack.c.h.b16 %v2496
    %v2820 = vunpack.c.l.b16 %v2497
    %v2821 = vunpack.c.h.b16 %v2497
    %v2822 = vunpack.c.l.b16 %v2498
    %v2823 = vunpack.c.h.b16 %v2498
    %v2824 = vunpack.c.l.b16 %v2499
    %v2825 = vunpack.c.h.b16 %v2499
    %v2826 = vunpack.c.l.b16 %v2500
    %v2827 = vunpack.c.h.b16 %v2500
    %v2828 = vunpack.c.l.b16 %v2501
    %v2829 = vunpack.c.h.b16 %v2501
    %v2830 = vunpack.c.l.b16 %v2502
    %v2831 = vunpack.c.h.b16 %v2502
    %v2832 = vunpack.c.l.b16 %v2503
    %v2833 = vunpack.c.h.b16 %v2503
    %v2834 = vunpack.c.l.b16 %v2504
    %v2835 = vunpack.c.h.b16 %v2504
    %v2836 = vunpack.c.l.b16 %v2505
    %v2837 = vunpack.c.h.b16 %v2505
    %v2838 = vunpack.c.l.b16 %v2506
    %v2839 = vunpack.c.h.b16 %v2506
    %v2840 = vunpack.c.l.b16 %v2507
    %v2841 = vunpack.c.h.b16 %v2507
    %v2842 = vunpack.c.l.b16 %v2508
    %v2843 = vunpack.c.h.b16 %v2508
    %v2844 = vunpack.c.l.b16 %v2509
    %v2845 = vunpack.c.h.b16 %v2509
    %v2846 = vunpack.c.l.b16 %v2510
    %v2847 = vunpack.c.h.b16 %v2510
    %v2848 = vunpack.c.l.b16 %v2511
    %v2849 = vunpack.c.h.b16 %v2511
    %v2850 = vunpack.c.l.b16 %v2512
    %v2851 = vunpack.c.h.b16 %v2512
    %v2852 = vunpack.c.l.b16 %v2513
    %v2853 = vunpack.c.h.b16 %v2513
    %v2854 = vunpack.c.l.b16 %v2514
    %v2855 = vunpack.c.h.b16 %v2514
    %v2856 = vunpack.c.l.b16 %v2515
    %v2857 = vunpack.c.h.b16 %v2515
    %v2858 = vunpack.c.l.b16 %v2516
    %v2859 = vunpack.c.h.b16 %v2516
    %v2860 = vunpack.c.l.b16 %v2517
    %v2861 = vunpack.c.h.b16 %v2517
    %v2862 = vunpack.c.l.b16 %v2518
    %v2863 = vunpack.c.h.b16 %v2518
    %v2864 = vunpack.c.l.b16 %v2519
    %v2865 = vunpack.c.h.b16 %v2519
    %v2866 = vunpack.c.l.b16 %v2520
    %v2867 = vunpack.c.h.b16 %v2520
    %v2868 = vunpack.c.l.b16 %v2521
    %v2869 = vunpack.c.h.b16 %v2521
    %v2870 = vunpack.c.l.b16 %v2522
    %v2871 = vunpack.c.h.b16 %v2522
    %v2872 = vunpack.c.l.b16 %v2523
    %v2873 = vunpack.c.h.b16 %v2523
    %v2874 = vunpack.c.l.b16 %v2524
    %v2875 = vunpack.c.h.b16 %v2524
    %v2876 = vunpack.c.l.b16 %v2525
    %v2877 = vunpack.c.h.b16 %v2525
    %v2878 = vunpack.c.l.b16 %v2526
    %v2879 = vunpack.c.h.b16 %v2526
    %v2880 = vunpack.c.l.b16 %v2527
    %v2881 = vunpack.c.h.b16 %v2527
    %v2882 = vunpack.c.l.b16 %v2528
    %v2883 = vunpack.c.h.b16 %v2528
    %v2884 = vunpack.c.l.b16 %v2529
    %v2885 = vunpack.c.h.b16 %v2529
    %v2886 = vunpack.c.l.b16 %v2530
    %v2887 = vunpack.c.h.b16 %v2530
    %v2888 = vunpack.c.l.b16 %v2531
    %v2889 = vunpack.c.h.b16 %v2531
    %v2890 = vunpack.c.l.b16 %v2532
    %v2891 = vunpack.c.h.b16 %v2532
    %v2892 = vunpack.c.l.b16 %v2533
    %v2893 = vunpack.c.h.b16 %v2533
    %v2894 = vunpack.c.l.b16 %v2534
    %v2895 = vunpack.c.h.b16 %v2534
    %v2896 = vunpack.c.l.b16 %v2535
    %v2897 = vunpack.c.h.b16 %v2535
    %v2898 = vunpack.c.l.b16 %v2536
    %v2899 = vunpack.c.h.b16 %v2536
    %v2900 = vunpack.c.l.b16 %v2537
    %v2901 = vunpack.c.h.b16 %v2537
    %v2902 = vunpack.c.l.b16 %v2538
    %v2903 = vunpack.c.h.b16 %v2538
    %v2904 = vunpack.c.l.b16 %v2539
    %v2905 = vunpack.c.h.b16 %v2539
    %v2906 = vunpack.c.l.b16 %v2540
    %v2907 = vunpack.c.h.b16 %v2540
    %v2908 = vunpack.c.l.b16 %v2541
    %v2909 = vunpack.c.h.b16 %v2541
    %v2910 = vunpack.c.l.b16 %v2542
    %v2911 = vunpack.c.h.b16 %v2542
    %v2912 = vunpack.c.l.b16 %v2543
    %v2913 = vunpack.c.h.b16 %v2543
    %v2914 = vunpack.c.l.b16 %v2544
    %v2915 = vunpack.c.h.b16 %v2544
    %v2916 = vunpack.c.l.b16 %v2545
    %v2917 = vunpack.c.h.b16 %v2545
    %v2918 = vunpack.c.l.b16 %v2546
    %v2919 = vunpack.c.h.b16 %v2546
    %v2920 = vunpack.c.l.b16 %v2547
    %v2921 = vunpack.c.h.b16 %v2547
    %v2922 = vunpack.c.l.b16 %v2548
    %v2923 = vunpack.c.h.b16 %v2548
    %v2924 = vunpack.c.l.b16 %v2549
    %v2925 = vunpack.c.h.b16 %v2549
    %v2926 = vunpack.c.l.b16 %v2550
    %v2927 = vunpack.c.h.b16 %v2550
    %v2928 = vunpack.c.l.b16 %v2551
    %v2929 = vunpack.c.h.b16 %v2551
    %v2930 = vunpack.c.l.b16 %v2552
    %v2931 = vunpack.c.h.b16 %v2552
    %v2932 = vunpack.c.l.b16 %v2553
    %v2933 = vunpack.c.h.b16 %v2553
    %v2934 = vunpack.c.l.b16 %v2554
    %v2935 = vunpack.c.h.b16 %v2554
    %v2936 = vunpack.c.l.b16 %v2555
    %v2937 = vunpack.c.h.b16 %v2555
    %v2938 = vunpack.c.l.b16 %v2556
    %v2939 = vunpack.c.h.b16 %v2556
    %v2940 = vunpack.c.l.b16 %v2557
    %v2941 = vunpack.c.h.b16 %v2557
    %v2942 = vpack.c.b16 %v2694, %v2686
    %v2943 = vpack.c.b16 %v2695, %v2687
    %v2944 = vpack.c.b16 %v2696, %v2688
    %v2945 = vpack.c.b16 %v2697, %v2689
    %v2946 = vpack.c.b16 %v2698, %v2690
    %v2947 = vpack.c.b16 %v2699, %v2691
    %v2948 = vpack.c.b16 %v2700, %v2692
    %v2949 = vpack.c.b16 %v2701, %v2693
    %v2950 = vpack.c.b16 %v2710, %v2702
    %v2951 = vpack.c.b16 %v2711, %v2703
    %v2952 = vpack.c.b16 %v2712, %v2704
    %v2953 = vpack.c.b16 %v2713, %v2705
    %v2954 = vpack.c.b16 %v2714, %v2706
    %v2955 = vpack.c.b16 %v2715, %v2707
    %v2956 = vpack.c.b16 %v2716, %v2708
    %v2957 = vpack.c.b16 %v2717, %v2709
    %v2958 = vpack.c.b16 %v2726, %v2718
    %v2959 = vpack.c.b16 %v2727, %v2719
    %v2960 = vpack.c.b16 %v2728, %v2720
    %v2961 = vpack.c.b16 %v2729, %v2721
    %v2962 = vpack.c.b16 %v2730, %v2722
    %v2963 = vpack.c.b16 %v2731, %v2723
    %v2964 = vpack.c.b16 %v2732, %v2724
    %v2965 = vpack.c.b16 %v2733, %v2725
    %v2966 = vpack.c.b16 %v2742, %v2734
    %v2967 = vpack.c.b16 %v2743, %v2735
    %v2968 = vpack.c.b16 %v2744, %v2736
    %v2969 = vpack.c.b16 %v2745, %v2737
    %v2970 = vpack.c.b16 %v2746, %v2738
    %v2971 = vpack.c.b16 %v2747, %v2739
    %v2972 = vpack.c.b16 %v2748, %v2740
    %v2973 = vpack.c.b16 %v2749, %v2741
    %v2974 = vpack.c.b16 %v2758, %v2750
    %v2975 = vpack.c.b16 %v2759, %v2751
    %v2976 = vpack.c.b16 %v2760, %v2752
    %v2977 = vpack.c.b16 %v2761, %v2753
    %v2978 = vpack.c.b16 %v2762, %v2754
    %v2979 = vpack.c.b16 %v2763, %v2755
    %v2980 = vpack.c.b16 %v2764, %v2756
    %v2981 = vpack.c.b16 %v2765, %v2757
    %v2982 = vpack.c.b16 %v2774, %v2766
    %v2983 = vpack.c.b16 %v2775, %v2767
    %v2984 = vpack.c.b16 %v2776, %v2768
    %v2985 = vpack.c.b16 %v2777, %v2769
    %v2986 = vpack.c.b16 %v2778, %v2770
    %v2987 = vpack.c.b16 %v2779, %v2771
    %v2988 = vpack.c.b16 %v2780, %v2772
    %v2989 = vpack.c.b16 %v2781, %v2773
    %v2990 = vpack.c.b16 %v2790, %v2782
    %v2991 = vpack.c.b16 %v2791, %v2783
    %v2992 = vpack.c.b16 %v2792, %v2784
    %v2993 = vpack.c.b16 %v2793, %v2785
    %v2994 = vpack.c.b16 %v2794, %v2786
    %v2995 = vpack.c.b16 %v2795, %v2787
    %v2996 = vpack.c.b16 %v2796, %v2788
    %v2997 = vpack.c.b16 %v2797, %v2789
    %v2998 = vpack.c.b16 %v2806, %v2798
    %v2999 = vpack.c.b16 %v2807, %v2799
    %v3000 = vpack.c.b16 %v2808, %v2800
    %v3001 = vpack.c.b16 %v2809, %v2801
    %v3002 = vpack.c.b16 %v2810, %v2802
    %v3003 = vpack.c.b16 %v2811, %v2803
    %v3004 = vpack.c.b16 %v2812, %v2804
    %v3005 = vpack.c.b16 %v2813, %v2805
    %v3006 = vpack.c.b16 %v2822, %v2814
    %v3007 = vpack.c.b16 %v2823, %v2815
    %v3008 = vpack.c.b16 %v2824, %v2816
    %v3009 = vpack.c.b16 %v2825, %v2817
    %v3010 = vpack.c.b16 %v2826, %v2818
    %v3011 = vpack.c.b16 %v2827, %v2819
    %v3012 = vpack.c.b16 %v2828, %v2820
    %v3013 = vpack.c.b16 %v2829, %v2821
    %v3014 = vpack.c.b16 %v2838, %v2830
    %v3015 = vpack.c.b16 %v2839, %v2831
    %v3016 = vpack.c.b16 %v2840, %v2832
    %v3017 = vpack.c.b16 %v2841, %v2833
    %v3018 = vpack.c.b16 %v2842, %v2834
    %v3019 = vpack.c.b16 %v2843, %v2835
    %v3020 = vpack.c.b16 %v2844, %v2836
    %v3021 = vpack.c.b16 %v2845, %v2837
    %v3022 = vpack.c.b16 %v2854, %v2846
    %v3023 = vpack.c.b16 %v2855, %v2847
    %v3024 = vpack.c.b16 %v2856, %v2848
    %v3025 = vpack.c.b16 %v2857, %v2849
    %v3026 = vpack.c.b16 %v2858, %v2850
    %v3027 = vpack.c.b16 %v2859, %v2851
    %v3028 = vpack.c.b16 %v2860, %v2852
    %v3029 = vpack.c.b16 %v2861, %v2853
    %v3030 = vpack.c.b16 %v2870, %v2862
    %v3031 = vpack.c.b16 %v2871, %v2863
    %v3032 = vpack.c.b16 %v2872, %v2864
    %v3033 = vpack.c.b16 %v2873, %v2865
    %v3034 = vpack.c.b16 %v2874, %v2866
    %v3035 = vpack.c.b16 %v2875, %v2867
    %v3036 = vpack.c.b16 %v2876, %v2868
    %v3037 = vpack.c.b16 %v2877, %v2869
    %v3038 = vpack.c.b16 %v2886, %v2878
    %v3039 = vpack.c.b16 %v2887, %v2879
    %v3040 = vpack.c.b16 %v2888, %v2880
    %v3041 = vpack.c.b16 %v2889, %v2881
    %v3042 = vpack.c.b16 %v2890, %v2882
    %v3043 = vpack.c.b16 %v2891, %v2883
    %v3044 = vpack.c.b16 %v2892, %v2884
    %v3045 = vpack.c.b16 %v2893, %v2885
    %v3046 = vpack.c.b16 %v2902, %v2894
    %v3047 = vpack.c.b16 %v2903, %v2895
    %v3048 = vpack.c.b16 %v2904, %v2896
    %v3049 = vpack.c.b16 %v2905, %v2897
    %v3050 = vpack.c.b16 %v2906, %v2898
    %v3051 = vpack.c.b16 %v2907, %v2899
    %v3052 = vpack.c.b16 %v2908, %v2900
    %v3053 = vpack.c.b16 %v2909, %v2901
    %v3054 = vpack.c.b16 %v2918, %v2910
    %v3055 = vpack.c.b16 %v2919, %v2911
    %v3056 = vpack.c.b16 %v2920, %v2912
    %v3057 = vpack.c.b16 %v2921, %v2913
    %v3058 = vpack.c.b16 %v2922, %v2914
    %v3059 = vpack.c.b16 %v2923, %v2915
    %v3060 = vpack.c.b16 %v2924, %v2916
    %v3061 = vpack.c.b16 %v2925, %v2917
    %v3062 = vpack.c.b16 %v2934, %v2926
    %v3063 = vpack.c.b16 %v2935, %v2927
    %v3064 = vpack.c.b16 %v2936, %v2928
    %v3065 = vpack.c.b16 %v2937, %v2929
    %v3066 = vpack.c.b16 %v2938, %v2930
    %v3067 = vpack.c.b16 %v2939, %v2931
    %v3068 = vpack.c.b16 %v2940, %v2932
    %v3069 = vpack.c.b16 %v2941, %v2933
    %3198 = vmatprep.subr.bf16.mxu0 %v2943
    %3199 = vmatpush1.bf16.msra.mxu0 %v2942
    %3200 = vmatprep.subr.bf16.mxu0 %v2951
    %3201 = vmatpush1.bf16.msra.mxu0 %v2950
    %3202 = vmatprep.subr.bf16.mxu0 %v2959
    %3203 = vmatpush1.bf16.msra.mxu0 %v2958
    %3204 = vmatprep.subr.bf16.mxu0 %v2967
    %3205 = vmatpush1.bf16.msra.mxu0 %v2966
    %3206 = vmatprep.subr.bf16.mxu0 %v2975
    %3207 = vmatpush1.bf16.msra.mxu0 %v2974
    %3208 = vmatprep.subr.bf16.mxu0 %v2983
    %3209 = vmatpush1.bf16.msra.mxu0 %v2982
    %3210 = vmatprep.subr.bf16.mxu0 %v2991
    %3211 = vmatpush1.bf16.msra.mxu0 %v2990
    %3212 = vmatprep.subr.bf16.mxu0 %v2999
    %3213 = vmatpush1.bf16.msra.mxu0 %v2998
    %3214 = vmatprep.subr.bf16.mxu0 %v3007
    %3215 = vmatpush1.bf16.msra.mxu0 %v3006
    %3216 = vmatprep.subr.bf16.mxu0 %v3015
    %3217 = vmatpush1.bf16.msra.mxu0 %v3014
    %3218 = vmatprep.subr.bf16.mxu0 %v3023
    %3219 = vmatpush1.bf16.msra.mxu0 %v3022
    %3220 = vmatprep.subr.bf16.mxu0 %v3031
    %3221 = vmatpush1.bf16.msra.mxu0 %v3030
    %3222 = vmatprep.subr.bf16.mxu0 %v3039
    %3223 = vmatpush1.bf16.msra.mxu0 %v3038
    %3224 = vmatprep.subr.bf16.mxu0 %v3047
    %3225 = vmatpush1.bf16.msra.mxu0 %v3046
    %3226 = vmatprep.subr.bf16.mxu0 %v3055
    %3227 = vmatpush1.bf16.msra.mxu0 %v3054
    %3228 = vmatprep.subr.bf16.mxu0 %v3063
    %3229 = vmatpush1.bf16.msra.mxu0 %v3062
    %3230 = vmatprep.mubr.bf16.mxu0 %v182
    %3231 = vmatmul.mubr.bf16.gmra.mrb[0].mxu0 %v181
    %v3232 = vpop.f32.mrb[0].mxu0
    %v3233 = vadd.f32 0.0, %v3232
    %v3234 = vpop.f32.mrb[0].mxu0
    %v3235 = vadd.f32 0.0, %v3234
    %v3236 = vpop.f32.mrb[0].mxu0
    %v3237 = vadd.f32 0.0, %v3236
    %v3238 = vpop.f32.mrb[0].mxu0
    %v3239 = vadd.f32 0.0, %v3238
    %3240 = vdwg.mxu0
    %3241 = vmatprep.subr.bf16.mxu0 %v2945
    %3242 = vmatpush1.bf16.msra.mxu0 %v2944
    %3243 = vmatprep.subr.bf16.mxu0 %v2953
    %3244 = vmatpush1.bf16.msra.mxu0 %v2952
    %3245 = vmatprep.subr.bf16.mxu0 %v2961
    %3246 = vmatpush1.bf16.msra.mxu0 %v2960
    %3247 = vmatprep.subr.bf16.mxu0 %v2969
    %3248 = vmatpush1.bf16.msra.mxu0 %v2968
    %3249 = vmatprep.subr.bf16.mxu0 %v2977
    %3250 = vmatpush1.bf16.msra.mxu0 %v2976
    %3251 = vmatprep.subr.bf16.mxu0 %v2985
    %3252 = vmatpush1.bf16.msra.mxu0 %v2984
    %3253 = vmatprep.subr.bf16.mxu0 %v2993
    %3254 = vmatpush1.bf16.msra.mxu0 %v2992
    %3255 = vmatprep.subr.bf16.mxu0 %v3001
    %3256 = vmatpush1.bf16.msra.mxu0 %v3000
    %3257 = vmatprep.subr.bf16.mxu0 %v3009
    %3258 = vmatpush1.bf16.msra.mxu0 %v3008
    %3259 = vmatprep.subr.bf16.mxu0 %v3017
    %3260 = vmatpush1.bf16.msra.mxu0 %v3016
    %3261 = vmatprep.subr.bf16.mxu0 %v3025
    %3262 = vmatpush1.bf16.msra.mxu0 %v3024
    %3263 = vmatprep.subr.bf16.mxu0 %v3033
    %3264 = vmatpush1.bf16.msra.mxu0 %v3032
    %3265 = vmatprep.subr.bf16.mxu0 %v3041
    %3266 = vmatpush1.bf16.msra.mxu0 %v3040
    %3267 = vmatprep.subr.bf16.mxu0 %v3049
    %3268 = vmatpush1.bf16.msra.mxu0 %v3048
    %3269 = vmatprep.subr.bf16.mxu0 %v3057
    %3270 = vmatpush1.bf16.msra.mxu0 %v3056
    %3271 = vmatprep.subr.bf16.mxu0 %v3065
    %3272 = vmatpush1.bf16.msra.mxu0 %v3064
    %3273 = vmatprep.mubr.bf16.mxu0 %v182
    %3274 = vmatmul.mubr.bf16.gmra.mrb[0].mxu0 %v181
    %v3275 = vpop.f32.mrb[0].mxu0
    %v3276 = vadd.f32 0.0, %v3275
    %v3277 = vpop.f32.mrb[0].mxu0
    %v3278 = vadd.f32 0.0, %v3277
    %v3279 = vpop.f32.mrb[0].mxu0
    %v3280 = vadd.f32 0.0, %v3279
    %v3281 = vpop.f32.mrb[0].mxu0
    %v3282 = vadd.f32 0.0, %v3281
    %3283 = vdwg.mxu0
    %3284 = vmatprep.subr.bf16.mxu0 %v2947
    %3285 = vmatpush1.bf16.msra.mxu0 %v2946
    %3286 = vmatprep.subr.bf16.mxu0 %v2955
    %3287 = vmatpush1.bf16.msra.mxu0 %v2954
    %3288 = vmatprep.subr.bf16.mxu0 %v2963
    %3289 = vmatpush1.bf16.msra.mxu0 %v2962
    %3290 = vmatprep.subr.bf16.mxu0 %v2971
    %3291 = vmatpush1.bf16.msra.mxu0 %v2970
    %3292 = vmatprep.subr.bf16.mxu0 %v2979
    %3293 = vmatpush1.bf16.msra.mxu0 %v2978
    %3294 = vmatprep.subr.bf16.mxu0 %v2987
    %3295 = vmatpush1.bf16.msra.mxu0 %v2986
    %3296 = vmatprep.subr.bf16.mxu0 %v2995
    %3297 = vmatpush1.bf16.msra.mxu0 %v2994
    %3298 = vmatprep.subr.bf16.mxu0 %v3003
    %3299 = vmatpush1.bf16.msra.mxu0 %v3002
    %3300 = vmatprep.subr.bf16.mxu0 %v3011
    %3301 = vmatpush1.bf16.msra.mxu0 %v3010
    %3302 = vmatprep.subr.bf16.mxu0 %v3019
    %3303 = vmatpush1.bf16.msra.mxu0 %v3018
    %3304 = vmatprep.subr.bf16.mxu0 %v3027
    %3305 = vmatpush1.bf16.msra.mxu0 %v3026
    %3306 = vmatprep.subr.bf16.mxu0 %v3035
    %3307 = vmatpush1.bf16.msra.mxu0 %v3034
    %3308 = vmatprep.subr.bf16.mxu0 %v3043
    %3309 = vmatpush1.bf16.msra.mxu0 %v3042
    %3310 = vmatprep.subr.bf16.mxu0 %v3051
    %3311 = vmatpush1.bf16.msra.mxu0 %v3050
    %3312 = vmatprep.subr.bf16.mxu0 %v3059
    %3313 = vmatpush1.bf16.msra.mxu0 %v3058
    %3314 = vmatprep.subr.bf16.mxu0 %v3067
    %3315 = vmatpush1.bf16.msra.mxu0 %v3066
    %3316 = vmatprep.mubr.bf16.mxu0 %v182
    %3317 = vmatmul.mubr.bf16.gmra.mrb[0].mxu0 %v181
    %v3318 = vpop.f32.mrb[0].mxu0
    %v3319 = vadd.f32 0.0, %v3318
    %v3320 = vpop.f32.mrb[0].mxu0
    %v3321 = vadd.f32 0.0, %v3320
    %v3322 = vpop.f32.mrb[0].mxu0
    %v3323 = vadd.f32 0.0, %v3322
    %v3324 = vpop.f32.mrb[0].mxu0
    %v3325 = vadd.f32 0.0, %v3324
    %3326 = vdwg.mxu0
    %3327 = vmatprep.subr.bf16.mxu0 %v2949
    %3328 = vmatpush1.bf16.msra.mxu0 %v2948
    %3329 = vmatprep.subr.bf16.mxu0 %v2957
    %3330 = vmatpush1.bf16.msra.mxu0 %v2956
    %3331 = vmatprep.subr.bf16.mxu0 %v2965
    %3332 = vmatpush1.bf16.msra.mxu0 %v2964
    %3333 = vmatprep.subr.bf16.mxu0 %v2973
    %3334 = vmatpush1.bf16.msra.mxu0 %v2972
    %3335 = vmatprep.subr.bf16.mxu0 %v2981
    %3336 = vmatpush1.bf16.msra.mxu0 %v2980
    %3337 = vmatprep.subr.bf16.mxu0 %v2989
    %3338 = vmatpush1.bf16.msra.mxu0 %v2988
    %3339 = vmatprep.subr.bf16.mxu0 %v2997
    %3340 = vmatpush1.bf16.msra.mxu0 %v2996
    %3341 = vmatprep.subr.bf16.mxu0 %v3005
    %3342 = vmatpush1.bf16.msra.mxu0 %v3004
    %3343 = vmatprep.subr.bf16.mxu0 %v3013
    %3344 = vmatpush1.bf16.msra.mxu0 %v3012
    %3345 = vmatprep.subr.bf16.mxu0 %v3021
    %3346 = vmatpush1.bf16.msra.mxu0 %v3020
    %3347 = vmatprep.subr.bf16.mxu0 %v3029
    %3348 = vmatpush1.bf16.msra.mxu0 %v3028
    %3349 = vmatprep.subr.bf16.mxu0 %v3037
    %3350 = vmatpush1.bf16.msra.mxu0 %v3036
    %3351 = vmatprep.subr.bf16.mxu0 %v3045
    %3352 = vmatpush1.bf16.msra.mxu0 %v3044
    %3353 = vmatprep.subr.bf16.mxu0 %v3053
    %3354 = vmatpush1.bf16.msra.mxu0 %v3052
    %3355 = vmatprep.subr.bf16.mxu0 %v3061
    %3356 = vmatpush1.bf16.msra.mxu0 %v3060
    %3357 = vmatprep.subr.bf16.mxu0 %v3069
    %3358 = vmatpush1.bf16.msra.mxu0 %v3068
    %3359 = vmatprep.mubr.bf16.mxu0 %v182
    %3360 = vmatmul.mubr.bf16.gmra.mrb[0].mxu0 %v181
    %v3361 = vpop.f32.mrb[0].mxu0
    %v3362 = vadd.f32 0.0, %v3361
    %v3363 = vpop.f32.mrb[0].mxu0
    %v3364 = vadd.f32 0.0, %v3363
    %v3365 = vpop.f32.mrb[0].mxu0
    %v3366 = vadd.f32 0.0, %v3365
    %v3367 = vpop.f32.mrb[0].mxu0
    %v3368 = vadd.f32 0.0, %v3367
    %3369 = vdwg.mxu0
    %v3370 = vunpack.c.l.bf16 %v991
    %v3371 = vunpack.c.l.bf16 %v992
    %v3372 = vunpack.c.l.bf16 %v993
    %v3373 = vunpack.c.l.bf16 %v994
    %v3374 = vunpack.c.l.bf16 %v995
    %v3375 = vunpack.c.l.bf16 %v996
    %v3376 = vunpack.c.l.bf16 %v997
    %v3377 = vunpack.c.l.bf16 %v998
    %v3378 = vunpack.c.h.bf16 %v991
    %v3379 = vunpack.c.h.bf16 %v992
    %v3380 = vunpack.c.h.bf16 %v993
    %v3381 = vunpack.c.h.bf16 %v994
    %v3382 = vunpack.c.h.bf16 %v995
    %v3383 = vunpack.c.h.bf16 %v996
    %v3384 = vunpack.c.h.bf16 %v997
    %v3385 = vunpack.c.h.bf16 %v998
    %v3386 = vsub.f32 %v3233, %v3370
    %v3387 = vsub.f32 %v3235, %v3371
    %v3388 = vsub.f32 %v3276, %v3372
    %v3389 = vsub.f32 %v3278, %v3373
    %v3390 = vsub.f32 %v3319, %v3374
    %v3391 = vsub.f32 %v3321, %v3375
    %v3392 = vsub.f32 %v3362, %v3376
    %v3393 = vsub.f32 %v3364, %v3377
    %v3394 = vsub.f32 %v3237, %v3378
    %v3395 = vsub.f32 %v3239, %v3379
    %v3396 = vsub.f32 %v3280, %v3380
    %v3397 = vsub.f32 %v3282, %v3381
    %v3398 = vsub.f32 %v3323, %v3382
    %v3399 = vsub.f32 %v3325, %v3383
    %v3400 = vsub.f32 %v3366, %v3384
    %v3401 = vsub.f32 %v3368, %v3385
    %v3402 = vmul.f32 %v3386, %v3386
    %v3403 = vmul.f32 %v3387, %v3387
    %v3404 = vmul.f32 %v3388, %v3388
    %v3405 = vmul.f32 %v3389, %v3389
    %v3406 = vmul.f32 %v3390, %v3390
    %v3407 = vmul.f32 %v3391, %v3391
    %v3408 = vmul.f32 %v3392, %v3392
    %v3409 = vmul.f32 %v3393, %v3393
    %v3410 = vmul.f32 %v3394, %v3394
    %v3411 = vmul.f32 %v3395, %v3395
    %v3412 = vmul.f32 %v3396, %v3396
    %v3413 = vmul.f32 %v3397, %v3397
    %v3414 = vmul.f32 %v3398, %v3398
    %v3415 = vmul.f32 %v3399, %v3399
    %v3416 = vmul.f32 %v3400, %v3400
    %v3417 = vmul.f32 %v3401, %v3401
    %v3418 = vadd.f32 %v3402, %v3403
    %v3419 = vadd.f32 %v3418, %v3404
    %v3420 = vadd.f32 %v3419, %v3405
    %v3421 = vadd.f32 %v3420, %v3406
    %v3422 = vadd.f32 %v3421, %v3407
    %v3423 = vadd.f32 %v3422, %v3408
    %v3424 = vadd.f32 %v3423, %v3409
    %v3425 = vadd.f32 %v3424, %v3410
    %v3426 = vadd.f32 %v3425, %v3411
    %v3427 = vadd.f32 %v3426, %v3412
    %v3428 = vadd.f32 %v3427, %v3413
    %v3429 = vadd.f32 %v3428, %v3414
    %v3430 = vadd.f32 %v3429, %v3415
    %v3431 = vadd.f32 %v3430, %v3416
    %v3432 = vadd.f32 %v3431, %v3417
    %3433 = vadd.xlane.f32.xlu0 %v3432
    %v3434 = vpop.xlane.xlu0 %3433
    %v3435 = vrot.slane %v3434, 4
    %v3436 = vadd.f32 %v3434, %v3435
    %v3437 = vrot.slane %v3436, 2
    %v3438 = vadd.f32 %v3436, %v3437
    %v3439 = vrot.slane %v3438, 1
    %v3440 = vadd.f32 %v3438, %v3439
    %s3441 = vtos %v3440
    %s3442 = smul.f32 %s3441, 6.1035156e-05
    %s3443 = sadd.f32 %s3442, 0.0
    %v3444 = vld [vmem:[%s17] sm:$0xff]
    %v3445 = vld [vmem:[%s17 + $0x8] sm:$0xff]
    %v3446 = vld [vmem:[%s17 + $0x10] sm:$0xff]
    %v3447 = vld [vmem:[%s17 + $0x18] sm:$0xff]
    %v3448 = vld [vmem:[%s17 + $0x20] sm:$0xff]
    %v3449 = vld [vmem:[%s17 + $0x28] sm:$0xff]
    %v3450 = vld [vmem:[%s17 + $0x30] sm:$0xff]
    %v3451 = vld [vmem:[%s17 + $0x38] sm:$0xff]
    %v3460 = vunpack.c.l.b16 %v3444
    %v3461 = vunpack.c.h.b16 %v3444
    %v3462 = vunpack.c.l.b16 %v3445
    %v3463 = vunpack.c.h.b16 %v3445
    %v3464 = vunpack.c.l.b16 %v3446
    %v3465 = vunpack.c.h.b16 %v3446
    %v3466 = vunpack.c.l.b16 %v3447
    %v3467 = vunpack.c.h.b16 %v3447
    %v3468 = vunpack.c.l.b16 %v3448
    %v3469 = vunpack.c.h.b16 %v3448
    %v3470 = vunpack.c.l.b16 %v3449
    %v3471 = vunpack.c.h.b16 %v3449
    %v3472 = vunpack.c.l.b16 %v3450
    %v3473 = vunpack.c.h.b16 %v3450
    %v3474 = vunpack.c.l.b16 %v3451
    %v3475 = vunpack.c.h.b16 %v3451
    %v3476 = vpack.c.b16 %v3462, %v3460
    %v3477 = vpack.c.b16 %v3463, %v3461
    %v3478 = vpack.c.b16 %v3466, %v3464
    %v3479 = vpack.c.b16 %v3467, %v3465
    %v3480 = vpack.c.b16 %v3470, %v3468
    %v3481 = vpack.c.b16 %v3471, %v3469
    %v3482 = vpack.c.b16 %v3474, %v3472
    %v3483 = vpack.c.b16 %v3475, %v3473
    %3492 = vmatprep.subr.bf16.mxu0 %v3477
    %3493 = vmatpush1.bf16.msra.mxu0 %v3476
    %3494 = vmatprep.subr.bf16.mxu0 %v3479
    %3495 = vmatpush1.bf16.msra.mxu0 %v3478
    %3496 = vmatprep.subr.bf16.mxu0 %v3481
    %3497 = vmatpush1.bf16.msra.mxu0 %v3480
    %3498 = vmatprep.subr.bf16.mxu0 %v3483
    %3499 = vmatpush1.bf16.msra.mxu0 %v3482
    %3500 = vmatprep.subr.bf16.mxu0 0
    %3501 = vmatpush1.bf16.msra.mxu0 0
    %3502 = vmatprep.subr.bf16.mxu0 0
    %3503 = vmatpush1.bf16.msra.mxu0 0
    %3504 = vmatprep.subr.bf16.mxu0 0
    %3505 = vmatpush1.bf16.msra.mxu0 0
    %3506 = vmatprep.subr.bf16.mxu0 0
    %3507 = vmatpush1.bf16.msra.mxu0 0
    %3508 = vmatprep.subr.bf16.mxu0 0
    %3509 = vmatpush1.bf16.msra.mxu0 0
    %3510 = vmatprep.subr.bf16.mxu0 0
    %3511 = vmatpush1.bf16.msra.mxu0 0
    %3512 = vmatprep.subr.bf16.mxu0 0
    %3513 = vmatpush1.bf16.msra.mxu0 0
    %3514 = vmatprep.subr.bf16.mxu0 0
    %3515 = vmatpush1.bf16.msra.mxu0 0
    %3516 = vmatprep.subr.bf16.mxu0 0
    %3517 = vmatpush1.bf16.msra.mxu0 0
    %3518 = vmatprep.subr.bf16.mxu0 0
    %3519 = vmatpush1.bf16.msra.mxu0 0
    %3520 = vmatprep.subr.bf16.mxu0 0
    %3521 = vmatpush1.bf16.msra.mxu0 0
    %3522 = vmatprep.subr.bf16.mxu0 0
    %3523 = vmatpush1.bf16.msra.mxu0 0
    %3524 = vmatprep.mubr.bf16.mxu0 0
    %3525 = vmatmul.mubr.bf16.gmra.mrb[0].mxu0 %v463
    %v3526 = vpop.f32.mrb[0].mxu0
    %v3527 = vadd.f32 0.0, %v3526
    %v3528 = vpop.f32.mrb[0].mxu0
    %v3529 = vadd.f32 0.0, %v3528
    %v3530 = vpop.f32.mrb[0].mxu0
    %v3531 = vadd.f32 0.0, %v3530
    %v3532 = vpop.f32.mrb[0].mxu0
    %v3533 = vadd.f32 0.0, %v3532
    %3534 = vmatprep.mubr.bf16.mxu0 0
    %3535 = vmatmul.mubr.bf16.gmra.mrb[0].mxu0 %v466
    %v3536 = vpop.f32.mrb[0].mxu0
    %v3537 = vadd.f32 0.0, %v3536
    %v3538 = vpop.f32.mrb[0].mxu0
    %v3539 = vadd.f32 0.0, %v3538
    %v3540 = vpop.f32.mrb[0].mxu0
    %v3541 = vadd.f32 0.0, %v3540
    %v3542 = vpop.f32.mrb[0].mxu0
    %v3543 = vadd.f32 0.0, %v3542
    %3544 = vdwg.mxu0
    %v3545 = vunpack.c.l.bf16 %v2022
    %v3546 = vunpack.c.l.bf16 %v2023
    %v3547 = vunpack.c.h.bf16 %v2022
    %v3548 = vunpack.c.h.bf16 %v2023
    %v3549 = vunpack.c.l.bf16 %v2024
    %v3550 = vunpack.c.l.bf16 %v2025
    %v3551 = vunpack.c.h.bf16 %v2024
    %v3552 = vunpack.c.h.bf16 %v2025
    %v3553 = vsub.f32 %v3527, %v3545
    %v3554 = vsub.f32 %v3529, %v3546
    %v3555 = vsub.f32 %v3531, %v3547
    %v3556 = vsub.f32 %v3533, %v3548
    %v3557 = vsub.f32 %v3537, %v3549
    %v3558 = vsub.f32 %v3539, %v3550
    %v3559 = vsub.f32 %v3541, %v3551
    %v3560 = vsub.f32 %v3543, %v3552
    %v3561 = vmul.f32 %v3553, %v3553
    %v3562 = vmul.f32 %v3554, %v3554
    %v3563 = vmul.f32 %v3555, %v3555
    %v3564 = vmul.f32 %v3556, %v3556
    %v3565 = vmul.f32 %v3557, %v3557
    %v3566 = vmul.f32 %v3558, %v3558
    %v3567 = vmul.f32 %v3559, %v3559
    %v3568 = vmul.f32 %v3560, %v3560
    %v3569 = vadd.f32 %v3561, %v3562
    %v3570 = vadd.f32 %v3569, %v3563
    %v3571 = vadd.f32 %v3570, %v3564
    %v3572 = vadd.f32 %v3571, %v3565
    %v3573 = vadd.f32 %v3572, %v3566
    %v3574 = vadd.f32 %v3573, %v3567
    %v3575 = vadd.f32 %v3574, %v3568
    %3576 = vadd.xlane.f32.xlu0 %v3575
    %v3577 = vpop.xlane.xlu0 %3576
    %v3578 = vrot.slane %v3577, 4
    %v3579 = vadd.f32 %v3577, %v3578
    %v3580 = vrot.slane %v3579, 2
    %v3581 = vadd.f32 %v3579, %v3580
    %v3582 = vrot.slane %v3581, 1
    %v3583 = vadd.f32 %v3581, %v3582
    %s3584 = vtos %v3583
    %s3585 = smul.f32 %s3584, 0.00012207031
    %s3586 = sadd.f32 %s3443, %s3585
    %v3587 = vld [vmem:[%s18] sm:$0xf]
    %v3588 = vld [vmem:[%s18 + $0x4] sm:$0xf]
    %v3591 = vunpack.c.l.b16 %v3587
    %v3592 = vunpack.c.l.b16 %v3588
    %v3593 = vpack.c.b16 %v3592, %v3591
    %v3596 = vsel %vm367, %v593, 0
    %v3599 = vsel %vm367, %v594, 0
    %3601 = vmatprep.subr.bf16.mxu0 0
    %3602 = vmatpush1.bf16.msra.mxu0 %v3593
    %3603 = vmatprep.subr.bf16.mxu0 0
    %3604 = vmatpush1.bf16.msra.mxu0 0
    %3605 = vmatprep.subr.bf16.mxu0 0
    %3606 = vmatpush1.bf16.msra.mxu0 0
    %3607 = vmatprep.subr.bf16.mxu0 0
    %3608 = vmatpush1.bf16.msra.mxu0 0
    %3609 = vmatprep.subr.bf16.mxu0 0
    %3610 = vmatpush1.bf16.msra.mxu0 0
    %3611 = vmatprep.subr.bf16.mxu0 0
    %3612 = vmatpush1.bf16.msra.mxu0 0
    %3613 = vmatprep.subr.bf16.mxu0 0
    %3614 = vmatpush1.bf16.msra.mxu0 0
    %3615 = vmatprep.subr.bf16.mxu0 0
    %3616 = vmatpush1.bf16.msra.mxu0 0
    %3617 = vmatprep.subr.bf16.mxu0 0
    %3618 = vmatpush1.bf16.msra.mxu0 0
    %3619 = vmatprep.subr.bf16.mxu0 0
    %3620 = vmatpush1.bf16.msra.mxu0 0
    %3621 = vmatprep.subr.bf16.mxu0 0
    %3622 = vmatpush1.bf16.msra.mxu0 0
    %3623 = vmatprep.subr.bf16.mxu0 0
    %3624 = vmatpush1.bf16.msra.mxu0 0
    %3625 = vmatprep.subr.bf16.mxu0 0
    %3626 = vmatpush1.bf16.msra.mxu0 0
    %3627 = vmatprep.subr.bf16.mxu0 0
    %3628 = vmatpush1.bf16.msra.mxu0 0
    %3629 = vmatprep.subr.bf16.mxu0 0
    %3630 = vmatpush1.bf16.msra.mxu0 0
    %3631 = vmatprep.subr.bf16.mxu0 0
    %3632 = vmatpush1.bf16.msra.mxu0 0
    %3633 = vmatprep.mubr.bf16.mxu0 0
    %3634 = vmatmul.mubr.bf16.gmra.mrb[0].mxu0 %v3596
    %v3635 = vpop.f32.mrb[0].mxu0
    %v3636 = vadd.f32 0.0, %v3635
    %v3637 = vpop.f32.mrb[0].mxu0
    %v3638 = vpop.f32.mrb[0].mxu0
    %v3639 = vadd.f32 0.0, %v3638
    %v3640 = vpop.f32.mrb[0].mxu0
    %3641 = vmatprep.mubr.bf16.mxu0 0
    %3642 = vmatmul.mubr.bf16.gmra.mrb[0].mxu0 %v3599
    %v3643 = vpop.f32.mrb[0].mxu0
    %v3644 = vadd.f32 0.0, %v3643
    %v3645 = vpop.f32.mrb[0].mxu0
    %v3646 = vpop.f32.mrb[0].mxu0
    %v3647 = vadd.f32 0.0, %v3646
    %v3648 = vpop.f32.mrb[0].mxu0
    %3649 = vdwg.mxu0
    %v3650 = vunpack.c.l.bf16 %v2278
    %v3651 = vunpack.c.h.bf16 %v2278
    %v3652 = vunpack.c.l.bf16 %v2279
    %v3653 = vunpack.c.h.bf16 %v2279
    %v3654 = vsub.f32 %v3636, %v3650
    %v3655 = vsub.f32 %v3639, %v3651
    %v3656 = vsub.f32 %v3644, %v3652
    %v3657 = vsub.f32 %v3647, %v3653
    %v3658 = vmul.f32 %v3654, %v3654
    %v3659 = vmul.f32 %v3655, %v3655
    %v3660 = vmul.f32 %v3656, %v3656
    %v3661 = vmul.f32 %v3657, %v3657
    %v3662 = vsel %vm461, %v3658, 0.0
    %v3663 = vsel %vm461, %v3659, 0.0
    %v3664 = vadd.f32 %v3662, %v3663
    %v3665 = vsel %vm461, %v3660, 0.0
    %v3666 = vadd.f32 %v3664, %v3665
    %v3667 = vsel %vm461, %v3661, 0.0
    %v3668 = vadd.f32 %v3666, %v3667
    %3669 = vadd.xlane.f32.xlu0 %v3668
    %v3670 = vpop.xlane.xlu0 %3669
    %v3671 = vrot.slane %v3670, 4
    %v3672 = vadd.f32 %v3670, %v3671
    %v3673 = vrot.slane %v3672, 2
    %v3674 = vadd.f32 %v3672, %v3673
    %v3675 = vrot.slane %v3674, 1
    %v3676 = vadd.f32 %v3674, %v3675
    %s3677 = vtos %v3676
    %s3678 = smul.f32 %s3677, 0.00048828125
    %s3679 = sadd.f32 %s3586, %s3678
    %v3680 = vld [vmem:[%s19] sm:$0xf]
    %v3681 = vld [vmem:[%s19 + $0x4] sm:$0xf]
    %v3684 = vunpack.c.l.b16 %v3680
    %v3685 = vunpack.c.l.b16 %v3681
    %v3686 = vpack.c.b16 %v3685, %v3684
    %v3689 = vsel %vm367, %v668, 0
    %v3692 = vsel %vm367, %v669, 0
    %3694 = vmatprep.subr.bf16.mxu0 0
    %3695 = vmatpush1.bf16.msra.mxu0 %v3686
    %3696 = vmatprep.subr.bf16.mxu0 0
    %3697 = vmatpush1.bf16.msra.mxu0 0
    %3698 = vmatprep.subr.bf16.mxu0 0
    %3699 = vmatpush1.bf16.msra.mxu0 0
    %3700 = vmatprep.subr.bf16.mxu0 0
    %3701 = vmatpush1.bf16.msra.mxu0 0
    %3702 = vmatprep.subr.bf16.mxu0 0
    %3703 = vmatpush1.bf16.msra.mxu0 0
    %3704 = vmatprep.subr.bf16.mxu0 0
    %3705 = vmatpush1.bf16.msra.mxu0 0
    %3706 = vmatprep.subr.bf16.mxu0 0
    %3707 = vmatpush1.bf16.msra.mxu0 0
    %3708 = vmatprep.subr.bf16.mxu0 0
    %3709 = vmatpush1.bf16.msra.mxu0 0
    %3710 = vmatprep.subr.bf16.mxu0 0
    %3711 = vmatpush1.bf16.msra.mxu0 0
    %3712 = vmatprep.subr.bf16.mxu0 0
    %3713 = vmatpush1.bf16.msra.mxu0 0
    %3714 = vmatprep.subr.bf16.mxu0 0
    %3715 = vmatpush1.bf16.msra.mxu0 0
    %3716 = vmatprep.subr.bf16.mxu0 0
    %3717 = vmatpush1.bf16.msra.mxu0 0
    %3718 = vmatprep.subr.bf16.mxu0 0
    %3719 = vmatpush1.bf16.msra.mxu0 0
    %3720 = vmatprep.subr.bf16.mxu0 0
    %3721 = vmatpush1.bf16.msra.mxu0 0
    %3722 = vmatprep.subr.bf16.mxu0 0
    %3723 = vmatpush1.bf16.msra.mxu0 0
    %3724 = vmatprep.subr.bf16.mxu0 0
    %3725 = vmatpush1.bf16.msra.mxu0 0
    %3726 = vmatprep.mubr.bf16.mxu0 0
    %3727 = vmatmul.mubr.bf16.gmra.mrb[0].mxu0 %v3689
    %v3728 = vpop.f32.mrb[0].mxu0
    %v3729 = vadd.f32 0.0, %v3728
    %v3730 = vpop.f32.mrb[0].mxu0
    %v3731 = vpop.f32.mrb[0].mxu0
    %v3732 = vadd.f32 0.0, %v3731
    %v3733 = vpop.f32.mrb[0].mxu0
    %3734 = vmatprep.mubr.bf16.mxu0 0
    %3735 = vmatmul.mubr.bf16.gmra.mrb[0].mxu0 %v3692
    %v3736 = vpop.f32.mrb[0].mxu0
    %v3737 = vadd.f32 0.0, %v3736
    %v3738 = vpop.f32.mrb[0].mxu0
    %v3739 = vpop.f32.mrb[0].mxu0
    %v3740 = vadd.f32 0.0, %v3739
    %v3741 = vpop.f32.mrb[0].mxu0
    %3742 = vdwg.mxu0
    %v3743 = vunpack.c.l.bf16 %v2353
    %v3744 = vunpack.c.h.bf16 %v2353
    %v3745 = vunpack.c.l.bf16 %v2354
    %v3746 = vunpack.c.h.bf16 %v2354
    %v3747 = vsub.f32 %v3729, %v3743
    %v3748 = vsub.f32 %v3732, %v3744
    %v3749 = vsub.f32 %v3737, %v3745
    %v3750 = vsub.f32 %v3740, %v3746
    %v3751 = vmul.f32 %v3747, %v3747
    %v3752 = vmul.f32 %v3748, %v3748
    %v3753 = vmul.f32 %v3749, %v3749
    %v3754 = vmul.f32 %v3750, %v3750
    %v3755 = vsel %vm461, %v3751, 0.0
    %v3756 = vsel %vm461, %v3752, 0.0
    %v3757 = vadd.f32 %v3755, %v3756
    %v3758 = vsel %vm461, %v3753, 0.0
    %v3759 = vadd.f32 %v3757, %v3758
    %v3760 = vsel %vm461, %v3754, 0.0
    %v3761 = vadd.f32 %v3759, %v3760
    %3762 = vadd.xlane.f32.xlu0 %v3761
    %v3763 = vpop.xlane.xlu0 %3762
    %v3764 = vrot.slane %v3763, 4
    %v3765 = vadd.f32 %v3763, %v3764
    %v3766 = vrot.slane %v3765, 2
    %v3767 = vadd.f32 %v3765, %v3766
    %v3768 = vrot.slane %v3767, 1
    %v3769 = vadd.f32 %v3767, %v3768
    %s3770 = vtos %v3769
    %s3771 = smul.f32 %s3770, 0.00048828125
    %s3772 = sadd.f32 %s3679, %s3771
    %v3773 = vld [vmem:[%s20] sm:$0xf]
    %v3774 = vld [vmem:[%s20 + $0x4] sm:$0xf]
    %v3777 = vunpack.c.l.b16 %v3773
    %v3778 = vunpack.c.l.b16 %v3774
    %v3779 = vpack.c.b16 %v3778, %v3777
    %v3782 = vsel %vm367, %v743, 0
    %v3785 = vsel %vm367, %v744, 0
    %3787 = vmatprep.subr.bf16.mxu0 0
    %3788 = vmatpush1.bf16.msra.mxu0 %v3779
    %3789 = vmatprep.subr.bf16.mxu0 0
    %3790 = vmatpush1.bf16.msra.mxu0 0
    %3791 = vmatprep.subr.bf16.mxu0 0
    %3792 = vmatpush1.bf16.msra.mxu0 0
    %3793 = vmatprep.subr.bf16.mxu0 0
    %3794 = vmatpush1.bf16.msra.mxu0 0
    %3795 = vmatprep.subr.bf16.mxu0 0
    %3796 = vmatpush1.bf16.msra.mxu0 0
    %3797 = vmatprep.subr.bf16.mxu0 0
    %3798 = vmatpush1.bf16.msra.mxu0 0
    %3799 = vmatprep.subr.bf16.mxu0 0
    %3800 = vmatpush1.bf16.msra.mxu0 0
    %3801 = vmatprep.subr.bf16.mxu0 0
    %3802 = vmatpush1.bf16.msra.mxu0 0
    %3803 = vmatprep.subr.bf16.mxu0 0
    %3804 = vmatpush1.bf16.msra.mxu0 0
    %3805 = vmatprep.subr.bf16.mxu0 0
    %3806 = vmatpush1.bf16.msra.mxu0 0
    %3807 = vmatprep.subr.bf16.mxu0 0
    %3808 = vmatpush1.bf16.msra.mxu0 0
    %3809 = vmatprep.subr.bf16.mxu0 0
    %3810 = vmatpush1.bf16.msra.mxu0 0
    %3811 = vmatprep.subr.bf16.mxu0 0
    %3812 = vmatpush1.bf16.msra.mxu0 0
    %3813 = vmatprep.subr.bf16.mxu0 0
    %3814 = vmatpush1.bf16.msra.mxu0 0
    %3815 = vmatprep.subr.bf16.mxu0 0
    %3816 = vmatpush1.bf16.msra.mxu0 0
    %3817 = vmatprep.subr.bf16.mxu0 0
    %3818 = vmatpush1.bf16.msra.mxu0 0
    %3819 = vmatprep.mubr.bf16.mxu0 0
    %3820 = vmatmul.mubr.bf16.gmra.mrb[0].mxu0 %v3782
    %v3821 = vpop.f32.mrb[0].mxu0
    %v3822 = vadd.f32 0.0, %v3821
    %v3823 = vpop.f32.mrb[0].mxu0
    %v3824 = vpop.f32.mrb[0].mxu0
    %v3825 = vadd.f32 0.0, %v3824
    %v3826 = vpop.f32.mrb[0].mxu0
    %3827 = vmatprep.mubr.bf16.mxu0 0
    %3828 = vmatmul.mubr.bf16.gmra.mrb[0].mxu0 %v3785
    %v3829 = vpop.f32.mrb[0].mxu0
    %v3830 = vadd.f32 0.0, %v3829
    %v3831 = vpop.f32.mrb[0].mxu0
    %v3832 = vpop.f32.mrb[0].mxu0
    %v3833 = vadd.f32 0.0, %v3832
    %v3834 = vpop.f32.mrb[0].mxu0
    %3835 = vdwg.mxu0
    %v3836 = vunpack.c.l.bf16 %v2428
    %v3837 = vunpack.c.h.bf16 %v2428
    %v3838 = vunpack.c.l.bf16 %v2429
    %v3839 = vunpack.c.h.bf16 %v2429
    %v3840 = vsub.f32 %v3822, %v3836
    %v3841 = vsub.f32 %v3825, %v3837
    %v3842 = vsub.f32 %v3830, %v3838
    %v3843 = vsub.f32 %v3833, %v3839
    %v3844 = vmul.f32 %v3840, %v3840
    %v3845 = vmul.f32 %v3841, %v3841
    %v3846 = vmul.f32 %v3842, %v3842
    %v3847 = vmul.f32 %v3843, %v3843
    %v3848 = vsel %vm461, %v3844, 0.0
    %v3849 = vsel %vm461, %v3845, 0.0
    %v3850 = vadd.f32 %v3848, %v3849
    %v3851 = vsel %vm461, %v3846, 0.0
    %v3852 = vadd.f32 %v3850, %v3851
    %v3853 = vsel %vm461, %v3847, 0.0
    %v3854 = vadd.f32 %v3852, %v3853
    %3855 = vadd.xlane.f32.xlu0 %v3854
    %v3856 = vpop.xlane.xlu0 %3855
    %v3857 = vrot.slane %v3856, 4
    %v3858 = vadd.f32 %v3856, %v3857
    %v3859 = vrot.slane %v3858, 2
    %v3860 = vadd.f32 %v3858, %v3859
    %v3861 = vrot.slane %v3860, 1
    %v3862 = vadd.f32 %v3860, %v3861
    %s3863 = vtos %v3862
    %s3864 = smul.f32 %s3863, 0.00048828125
    %s3865 = sadd.f32 %s3772, %s3864
    %s3866 = scalar_lea.smem [#allocation8], 0
    %3867 = sst [smem:[%s3866]] %s3865
    %v3868 = vld [vmem:[%s21] sm:$0xf]
    %v3869 = vld [vmem:[%s21 + $0x4] sm:$0x1]
    %v3872 = vunpack.c.l.b16 %v3868
    %v3873 = vunpack.c.l.b16 %v3869
    %v3874 = vpack.c.b16 %v3873, %v3872
    %v3876 = vsel %vm367, %v3874, 0
    %3878 = vmatprep.subr.bf16.mxu0 %v182
    %3879 = vmatpush1.bf16.msra.mxu0 %v181
    %3880 = vmatprep.subr.bf16.mxu0 0
    %3881 = vmatpush1.bf16.msra.mxu0 0
    %3882 = vmatprep.subr.bf16.mxu0 0
    %3883 = vmatpush1.bf16.msra.mxu0 0
    %3884 = vmatprep.subr.bf16.mxu0 0
    %3885 = vmatpush1.bf16.msra.mxu0 0
    %3886 = vmatprep.subr.bf16.mxu0 0
    %3887 = vmatpush1.bf16.msra.mxu0 0
    %3888 = vmatprep.subr.bf16.mxu0 0
    %3889 = vmatpush1.bf16.msra.mxu0 0
    %3890 = vmatprep.subr.bf16.mxu0 0
    %3891 = vmatpush1.bf16.msra.mxu0 0
    %3892 = vmatprep.subr.bf16.mxu0 0
    %3893 = vmatpush1.bf16.msra.mxu0 0
    %3894 = vmatprep.subr.bf16.mxu0 0
    %3895 = vmatpush1.bf16.msra.mxu0 0
    %3896 = vmatprep.subr.bf16.mxu0 0
    %3897 = vmatpush1.bf16.msra.mxu0 0
    %3898 = vmatprep.subr.bf16.mxu0 0
    %3899 = vmatpush1.bf16.msra.mxu0 0
    %3900 = vmatprep.subr.bf16.mxu0 0
    %3901 = vmatpush1.bf16.msra.mxu0 0
    %3902 = vmatprep.subr.bf16.mxu0 0
    %3903 = vmatpush1.bf16.msra.mxu0 0
    %3904 = vmatprep.subr.bf16.mxu0 0
    %3905 = vmatpush1.bf16.msra.mxu0 0
    %3906 = vmatprep.subr.bf16.mxu0 0
    %3907 = vmatpush1.bf16.msra.mxu0 0
    %3908 = vmatprep.subr.bf16.mxu0 0
    %3909 = vmatpush1.bf16.msra.mxu0 0
    %3910 = vmatprep.mubr.bf16.mxu0 0
    %3911 = vmatmul.mubr.bf16.gmra.mrb[0].mxu0 %v3876
    %v3912 = vpop.f32.mrb[0].mxu0
    %v3913 = vadd.f32 0.0, %v3912
    %v3914 = vpop.f32.mrb[0].mxu0
    %v3915 = vadd.f32 0.0, %v3914
    %v3916 = vpop.f32.mrb[0].mxu0
    %v3917 = vadd.f32 0.0, %v3916
    %v3918 = vpop.f32.mrb[0].mxu0
    %v3919 = vadd.f32 0.0, %v3918
    %3920 = vdwg.mxu0
    %v3921 = vld [vmem:[%s22] sm:$0xff]
    %v3922 = vld [vmem:[%s22 + $0x8] sm:$0xff]
    %v3923 = vld [vmem:[%s22 + $0x10] sm:$0x3]
    %v3924 = vld [vmem:[%s22 + $0x18] sm:$0x3]
    %v3925 = vand.u32 2147483647, %v3913
    %v3926 = vand.u32 2147483647, %v3915
    %v3927 = vand.u32 2147483647, %v3917
    %v3928 = vand.u32 2147483647, %v3919
    %v3929 = vsub.f32 0.0, %v3925
    %v3930 = vsub.f32 0.0, %v3926
    %v3931 = vsub.f32 0.0, %v3927
    %v3932 = vsub.f32 0.0, %v3928
    %v3933 = vmul.f32 %v3929, 1.442695
    %v3934 = vpow.pop %v3933
    %v3935 = vmul.f32 %v3930, 1.442695
    %v3936 = vpow.pop %v3935
    %v3937 = vmul.f32 %v3931, 1.442695
    %v3938 = vpow.pop %v3937
    %v3939 = vmul.f32 %v3932, 1.442695
    %v3940 = vpow.pop %v3939
    %v3941 = vmax.f32 %v3913, 0.0
    %v3942 = vmax.f32 %v3915, 0.0
    %v3943 = vmax.f32 %v3917, 0.0
    %v3944 = vmax.f32 %v3919, 0.0
    %v3945 = vmul.f32 %v3913, %v3921
    %v3946 = vmul.f32 %v3915, %v3922
    %v3947 = vmul.f32 %v3917, %v3923
    %v3948 = vmul.f32 %v3919, %v3924
    %v3949 = vsub.f32 %v3941, %v3945
    %v3950 = vsub.f32 %v3942, %v3946
    %v3951 = vsub.f32 %v3943, %v3947
    %v3952 = vsub.f32 %v3944, %v3948
    %v3953 = vadd.f32 %v3934, 1.0
    %v3954 = vadd.f32 %v3936, 1.0
    %v3955 = vadd.f32 %v3938, 1.0
    %v3956 = vadd.f32 %v3940, 1.0
    %v3957 = vlog2.pop %v3953
    %v3958 = vmul.f32 %v3957, 0.6931472
    %v3959 = vlog2.pop %v3954
    %v3960 = vmul.f32 %v3959, 0.6931472
    %v3961 = vlog2.pop %v3955
    %v3962 = vmul.f32 %v3961, 0.6931472
    %v3963 = vlog2.pop %v3956
    %v3964 = vmul.f32 %v3963, 0.6931472
    %v3965 = vadd.f32 %v3949, %v3958
    %v3966 = vadd.f32 %v3950, %v3960
    %v3967 = vadd.f32 %v3951, %v3962
    %v3968 = vadd.f32 %v3952, %v3964
    %vm3969 = vcmp.ge.f32.partialorder %v3913, 0.0
    %vm3970 = vcmp.ge.f32.partialorder %v3915, 0.0
    %vm3971 = vcmp.ge.f32.partialorder %v3917, 0.0
    %vm3972 = vcmp.ge.f32.partialorder %v3919, 0.0
    %v3973 = vsel %vm3969, 1.0, %v3934
    %v3974 = vsel %vm3970, 1.0, %v3936
    %v3975 = vsel %vm3971, 1.0, %v3938
    %v3976 = vsel %vm3972, 1.0, %v3940
    %v3977 = vrcp.pop %v3953
    %v3978 = vmul.f32 %v3973, %v3977
    %v3979 = vrcp.pop %v3954
    %v3980 = vmul.f32 %v3974, %v3979
    %v3981 = vrcp.pop %v3955
    %v3982 = vmul.f32 %v3975, %v3981
    %v3983 = vrcp.pop %v3956
    %v3984 = vmul.f32 %v3976, %v3983
    %v3985 = vadd.f32 %v3965, %v3966
    %3986 = vadd.xlane.f32.xlu0 %v3985
    %v3987 = vpop.xlane.xlu0 %3986
    %vm3988 = vcmask 1041408
    %v3989 = vsel %vm3988, %v3967, 0.0
    %v3990 = vsel %vm3988, %v3968, 0.0
    %v3991 = vadd.f32 %v3989, %v3990
    %3992 = vadd.xlane.f32.xlu0 %v3991
    %v3993 = vpop.xlane.xlu0 %3992
    %v3994 = vmul.f32 %v3978, %v3921
    %v3995 = vmul.f32 %v3980, %v3922
    %v3996 = vmul.f32 %v3982, %v3923
    %v3997 = vmul.f32 %v3984, %v3924
    %v3998 = vadd.f32 %v3994, %v3995
    %3999 = vadd.xlane.f32.xlu0 %v3998
    %v4000 = vpop.xlane.xlu0 %3999
    %v4001 = vsel %vm3988, %v3996, 0.0
    %v4002 = vsel %vm3988, %v3997, 0.0
    %v4003 = vadd.f32 %v4001, %v4002
    %4004 = vadd.xlane.f32.xlu0 %v4003
    %v4005 = vpop.xlane.xlu0 %4004
    %v4006 = vadd.f32 %v3978, %v3921
    %v4007 = vadd.f32 %v3980, %v3922
    %v4008 = vadd.f32 %v3982, %v3923
    %v4009 = vadd.f32 %v3984, %v3924
    %v4010 = vadd.f32 %v4006, %v4007
    %4011 = vadd.xlane.f32.xlu0 %v4010
    %v4012 = vpop.xlane.xlu0 %4011
    %v4013 = vsel %vm3988, %v4008, 0.0
    %v4014 = vsel %vm3988, %v4009, 0.0
    %v4015 = vadd.f32 %v4013, %v4014
    %4016 = vadd.xlane.f32.xlu0 %v4015
    %v4017 = vpop.xlane.xlu0 %4016
    %v4018 = vadd.f32 %v4000, 1.0
    %v4019 = vadd.f32 %v4005, 1.0
    %v4020 = vsub.f32 %v4012, %v4000
    %v4021 = vsub.f32 %v4017, %v4005
    %v4022 = vadd.f32 %v4020, 1.0
    %v4023 = vadd.f32 %v4021, 1.0
    %v4024 = vrcp.pop %v4022
    %v4025 = vmul.f32 %v4018, %v4024
    %v4026 = vrcp.pop %v4023
    %v4027 = vmul.f32 %v4019, %v4026
    %v4028 = vsub.f32 1.0, %v4025
    %v4029 = vsub.f32 1.0, %v4027
    %v4030 = vmul.f32 %v3987, 0.001953125
    %v4031 = vmul.f32 %v3993, 0.001953125
    %v4032 = vmul.f32 %v4028, 0.5
    %v4033 = vmul.f32 %v4029, 0.5
    %v4034 = vadd.f32 %v4030, %v4032
    %v4035 = vadd.f32 %v4031, %v4033
    %v4036 = vld [vmem:[%s23] sm:$0xff]
    %v4037 = vld [vmem:[%s23 + $0x8] sm:$0x3]
    %v4038 = vmul.f32 %v4034, %v4036
    %v4039 = vmul.f32 %v4035, %v4037
    %vm4040 = vcmask 7168
    %v4041 = vsel %vm4040, %v4038, 0.0
    %vm4042 = vcmask 1024
    %v4043 = vsel %vm4042, %v4039, 0.0
    %v4044 = vadd.f32 %v4041, %v4043
    %4045 = vadd.xlane.f32.xlu0 %v4044
    %v4046 = vpop.xlane.xlu0 %4045
    %v4047 = vrot.slane %v4046, 4
    %v4048 = vadd.f32 %v4046, %v4047
    %v4049 = vrot.slane %v4048, 2
    %v4050 = vadd.f32 %v4048, %v4049
    %v4051 = vrot.slane %v4050, 1
    %v4052 = vadd.f32 %v4050, %v4051
    %s4053 = vtos %v4052
    %s4054 = scalar_lea.smem [#allocation7], 0
    %4055 = sst [smem:[%s4054]] %s4053
    // Predicated region
    $region106: #{tpu_custom_call.1} parent=1 // pred_check
      _
    $region107: #{tpu_custom_call.1} parent=1 // pred_check_branch
      %4057 = sbr.rel (0) target = $region109
    $region108: #{tpu_custom_call.1} parent=1 // pred_region
      %s4059 = ssub.s32 16, 16
      %4060 = vsyncadd [#allocation4], %s4059
      %4063 = dma.smem_to_hbm [#allocation7], 16, %s24, [#allocation4]
    $region109: #{tpu_custom_call.1} parent=1 // pred_fallthru
      _
    // Predicated region
    $region110: #{tpu_custom_call.1} parent=1 // pred_check
      _
    $region111: #{tpu_custom_call.1} parent=1 // pred_check_branch
      %4065 = sbr.rel (0) target = $region113
    $region112: #{tpu_custom_call.1} parent=1 // pred_region
      %s4067 = ssub.s32 16, 16
      %4068 = vsyncadd [#allocation9], %s4067
      %4071 = dma.smem_to_hbm [#allocation8], 16, %s25, [#allocation9]
    $region113: #{tpu_custom_call.1} parent=1 // pred_fallthru
      _
    // Predicated region
    $region114: #{tpu_custom_call.1} parent=1 // pred_check
      _
    $region115: #{tpu_custom_call.1} parent=1 // pred_check_branch
      %4073 = sbr.rel (0) target = $region117
    $region116: #{tpu_custom_call.1} parent=1 // pred_region
      %4074 = dma.done [#allocation4], 16
    $region117: #{tpu_custom_call.1} parent=1 // pred_fallthru
      _
    // Predicated region
    $region118: #{tpu_custom_call.1} parent=1 // pred_check
      _
    $region119: #{tpu_custom_call.1} parent=1 // pred_check_branch
      %4076 = sbr.rel (0) target = $region121
    $region120: #{tpu_custom_call.1} parent=1 // pred_region
      %4077 = dma.done [#allocation9], 16
    $region121: #{tpu_custom_call.1} parent=1 // pred_fallthru
      _
    %4078 = sfence
    %4079 = vsyncpa [#allocation3], 1
    %4080 = vsyncpa [#allocation6], 1
    %4081 = vsyncpa [#allocation4], 1
    %4082 = vsyncpa [#allocation9], 1

</llo_original>
